<compile_context>
chip_gen: v7x
topology: tpu7x:2x2x1
jax: 0.10.0
libtpu: 0.0.40
codegen_flags: <defaults>
</compile_context>

<pallas_src>
import functools

import jax
import jax.numpy as jnp
import numpy as np
from jax import lax
from jax.experimental import pallas as pl
from jax.experimental.pallas import tpu as pltpu


# ---------------------------------------------------------------------------
# Fused per-batch-row kernel
# ---------------------------------------------------------------------------
def _make_rnn_kernel(*, T, H, num_layers, dirs):
    """Kernel closure for fixed (static) shapes. Gate order inside: i, f, o, g."""
    G = 4 * H      # gate width per direction
    H3 = 3 * H     # sigmoid-gate (i, f, o) block width

    def kernel(*refs):
        it = iter(refs)
        x_ref = next(it)                       # (T, D)   one batch row
        ln_g_ref = next(it)                    # (1, D)
        ln_b_ref = next(it)                    # (1, D)
        layer_refs = []
        for _ in range(num_layers):
            wih_ref = next(it)                 # (D_l, dirs*G)  [fwd cols | bwd cols]
            bias_ref = next(it)                # (1, dirs*G)    b_ih + b_hh combined
            whh_ref = next(it)                 # (dirs*H, dirs*G) block-diag W_hh^T
            layer_refs.append((wih_ref, bias_ref, whh_ref))
        w1_ref = next(it)                      # (dirs*H, H//2)
        b1_ref = next(it)                      # (1, H//2)
        w2_ref = next(it)                      # (H//2, C)
        b2_ref = next(it)                      # (1, C)
        o_ref = next(it)                       # (T, C)
        xp_scr = next(it)                      # (T, dirs*G)  x @ W_ih + bias
        lo_scr = next(it)                      # (T, dirs*H)  per-layer outputs

        for layer in range(num_layers):
            wih_ref, bias_ref, whh_ref = layer_refs[layer]

            # ---- Bulk input projection (off the serial recurrence path):
            # one (T, D_l) @ (D_l, dirs*4H) matmul; layer 0 fuses LN + ReLU. ----
            if layer == 0:
                xb = x_ref[...]
                mu = jnp.mean(xb, axis=-1, keepdims=True)
                var = jnp.mean((xb - mu) ** 2, axis=-1, keepdims=True)
                y = (xb - mu) * lax.rsqrt(var + 1e-5)
                y = y * ln_g_ref[...] + ln_b_ref[...]
                y = jnp.maximum(y, 0.0)        # ReLU (Dropout = identity, eval)
            else:
                y = lo_scr[...]                # (T, dirs*H)
            xp_scr[...] = (jnp.dot(y, wih_ref[...],
                                   preferred_element_type=jnp.float32)
                           + bias_ref[...])

            whh = whh_ref[...]

            # ---- Serial recurrence: one block-diag dot per step, narrow
            # sigmoid/tanh, pl.ds dynamic row reads/writes on dense scratch. ----
            if dirs == 2:
                def step(t, carry):
                    h_cat, c_f, c_b = carry                     # (1,2H),(1,H),(1,H)
                    gh = jnp.dot(h_cat, whh,
                                 preferred_element_type=jnp.float32)   # (1, 2G)
                    pre_f = gh[:, :G] + xp_scr[pl.ds(t, 1), :G]
                    pre_b = gh[:, G:] + xp_scr[pl.ds(T - 1 - t, 1), G:]
                    sg_f = jax.nn.sigmoid(pre_f[:, :H3])        # i, f, o (fwd)
                    sg_b = jax.nn.sigmoid(pre_b[:, :H3])        # i, f, o (bwd)
                    gg_f = jnp.tanh(pre_f[:, H3:])              # g (fwd)
                    gg_b = jnp.tanh(pre_b[:, H3:])              # g (bwd)
                    c_f = sg_f[:, H:2 * H] * c_f + sg_f[:, :H] * gg_f
                    c_b = sg_b[:, H:2 * H] * c_b + sg_b[:, :H] * gg_b
                    h_f = sg_f[:, 2 * H:] * jnp.tanh(c_f)
                    h_b = sg_b[:, 2 * H:] * jnp.tanh(c_b)
                    lo_scr[pl.ds(t, 1), :H] = h_f               # fwd output @ t
                    lo_scr[pl.ds(T - 1 - t, 1), H:] = h_b       # bwd output @ T-1-t
                    return jnp.concatenate([h_f, h_b], axis=-1), c_f, c_b

                carry0 = (jnp.zeros((1, 2 * H), jnp.float32),
                          jnp.zeros((1, H), jnp.float32),
                          jnp.zeros((1, H), jnp.float32))
            else:
                def step(t, carry):
                    h, c = carry
                    gh = jnp.dot(h, whh, preferred_element_type=jnp.float32)
                    pre = gh + xp_scr[pl.ds(t, 1), :]
                    sg = jax.nn.sigmoid(pre[:, :H3])
                    gg = jnp.tanh(pre[:, H3:])
                    c = sg[:, H:2 * H] * c + sg[:, :H] * gg
                    h = sg[:, 2 * H:] * jnp.tanh(c)
                    lo_scr[pl.ds(t, 1), :] = h
                    return h, c

                carry0 = (jnp.zeros((1, H), jnp.float32),
                          jnp.zeros((1, H), jnp.float32))

            lax.fori_loop(0, T, step, carry0, unroll=min(T, 8))

        # ---- Output head: flattened Linear -> LeakyReLU(0.01) -> Linear. ----
        z = jnp.dot(lo_scr[...], w1_ref[...],
                    preferred_element_type=jnp.float32) + b1_ref[...]
        z = jnp.where(z > 0, z, 0.01 * z)
        # TODO(synk): at realistic sizes pad num_classes to a 128-lane multiple
        # (slice in the wrapper) so this final store is unmasked.
        o_ref[...] = jnp.dot(z, w2_ref[...],
                             preferred_element_type=jnp.float32) + b2_ref[...]

    return kernel


# ---------------------------------------------------------------------------
# Wrapper
# ---------------------------------------------------------------------------
def _reorder_gates(w):
    """Reorder last-axis gate blocks from PyTorch (i, f, g, o) to (i, f, o, g)."""
    h = w.shape[-1] // 4
    return jnp.concatenate([w[..., :2 * h], w[..., 3 * h:], w[..., 2 * h:3 * h]],
                           axis=-1)


def rnn_forward(x, params, *, num_layers, bidirectional):
    """x: (B, T, D) float32 -> (B, T, num_classes)."""
    B, T, D = x.shape
    dirs = 2 if bidirectional else 1
    H = params["lstm"][0]["fwd"][1].shape[0]
    C = params["w2"].shape[1]
    G = 4 * H

    # Pack per-layer weights (wrapper-side, free): reorder gate columns to
    # [i, f, o, g], put both directions' W_ih^T side by side with the combined
    # (b_ih + b_hh) bias folded into the bulk projection, and block-diagonalize
    # W_hh^T so the per-step recurrence is a single dot.
    flat = []
    for layer in range(num_layers):
        wih_f, whh_f, b_f = params["lstm"][layer]["fwd"]
        wih_f, whh_f, b_f = map(_reorder_gates, (wih_f, whh_f, b_f))
        if bidirectional:
            wih_b, whh_b, b_b = params["lstm"][layer]["bwd"]
            wih_b, whh_b, b_b = map(_reorder_gates, (wih_b, whh_b, b_b))
            zero = jnp.zeros((H, G), jnp.float32)
            whh_blk = jnp.concatenate(
                [jnp.concatenate([whh_f, zero], axis=1),
                 jnp.concatenate([zero, whh_b], axis=1)], axis=0)   # (2H, 2G)
            flat += [jnp.concatenate([wih_f, wih_b], axis=1),
                     jnp.concatenate([b_f, b_b]).reshape(1, -1),
                     whh_blk]
        else:
            flat += [wih_f, b_f.reshape(1, -1), whh_f]

    inputs = [x,
              params["ln_gamma"].reshape(1, D), params["ln_beta"].reshape(1, D),
              *flat,
              params["w1"], params["b1"].reshape(1, -1),
              params["w2"], params["b2"].reshape(1, -1)]

    def _const_spec(a):
        nd = a.ndim
        return pl.BlockSpec(a.shape, lambda b: (0,) * nd)

    in_specs = [pl.BlockSpec((None, T, D), lambda b: (b, 0, 0))]
    in_specs += [_const_spec(a) for a in inputs[1:]]

    kernel = _make_rnn_kernel(T=T, H=H, num_layers=num_layers, dirs=dirs)

    # TODO(synk): at realistic (T, H) cast packed weights + matmul LHS to bf16
    # (keep f32 accumulation and f32 h/c state), chunk the T axis of the input
    # projection, and set vmem_limit_bytes explicitly; f32 + whole-T here.
    return pl.pallas_call(
        kernel,
        out_shape=jax.ShapeDtypeStruct((B, T, C), jnp.float32),
        grid=(B,),
        in_specs=in_specs,
        out_specs=pl.BlockSpec((None, T, C), lambda b: (b, 0, 0)),
        scratch_shapes=[
            pltpu.VMEM((T, dirs * G), jnp.float32),   # x @ W_ih (+bias), gate-reordered
            pltpu.VMEM((T, dirs * H), jnp.float32),   # per-layer outputs
        ],
        compiler_params=pltpu.CompilerParams(
            dimension_semantics=("parallel",)),
    )(*inputs)


# ---------------------------------------------------------------------------
# Pure-JAX reference (for correctness check)
# ---------------------------------------------------------------------------
def _ref_lstm_dir(x_tbd, wih, whh, b, reverse):
    T, B, _ = x_tbd.shape
    H = whh.shape[0]

    def step(carry, x_t):
        h, c = carry
        gates = x_t @ wih + h @ whh + b
        i, f, g, o = jnp.split(gates, 4, axis=-1)
        i, f, o = jax.nn.sigmoid(i), jax.nn.sigmoid(f), jax.nn.sigmoid(o)
        g = jnp.tanh(g)
        c = f * c + i * g
        h = o * jnp.tanh(c)
        return (h, c), h

    xs = x_tbd[::-1] if reverse else x_tbd
    _, hs = jax.lax.scan(step, (jnp.zeros((B, H)), jnp.zeros((B, H))), xs)
    return hs[::-1] if reverse else hs


def ref_forward(x, params, *, num_layers, bidirectional):
    mean = x.mean(-1, keepdims=True)
    var = ((x - mean) ** 2).mean(-1, keepdims=True)
    y = (x - mean) / jnp.sqrt(var + 1e-5) * params["ln_gamma"] + params["ln_beta"]
    y = jnp.maximum(y, 0.0)
    h = jnp.transpose(y, (1, 0, 2))
    for layer in range(num_layers):
        wih_f, whh_f, b_f = params["lstm"][layer]["fwd"]
        fwd = _ref_lstm_dir(h, wih_f, whh_f, b_f, False)
        if bidirectional:
            wih_b, whh_b, b_b = params["lstm"][layer]["bwd"]
            bwd = _ref_lstm_dir(h, wih_b, whh_b, b_b, True)
            h = jnp.concatenate([fwd, bwd], -1)
        else:
            h = fwd
    h = jnp.transpose(h, (1, 0, 2))
    z = h @ params["w1"] + params["b1"]
    z = jnp.where(z > 0, z, 0.01 * z)
    return z @ params["w2"] + params["b2"]


# ---------------------------------------------------------------------------
# Main
# ---------------------------------------------------------------------------
if __name__ == "__main__":
    B, T = 2, 8
    INPUT_DIMS, HIDDEN_DIMS = 32, 32
    NUM_LAYERS, BIDIRECTIONAL = 2, True
    NUM_CLASSES = 16
    H2 = HIDDEN_DIMS // 2
    DIRS = 2 if BIDIRECTIONAL else 1

    key = jax.random.PRNGKey(0)
    keys = iter(jax.random.split(key, 64))

    def rnd(shape, scale=0.1):
        return scale * jax.random.normal(next(keys), shape, dtype=jnp.float32)

    params = {
        "ln_gamma": 1.0 + rnd((INPUT_DIMS,)),
        "ln_beta": rnd((INPUT_DIMS,)),
        "lstm": [],
        # Linear weights stored already transposed to (in, out)
        "w1": rnd((HIDDEN_DIMS * DIRS, H2)),
        "b1": rnd((H2,)),
        "w2": rnd((H2, NUM_CLASSES)),
        "b2": rnd((NUM_CLASSES,)),
    }
    in_dim = INPUT_DIMS
    for _ in range(NUM_LAYERS):
        layer = {}
        for d in (["fwd", "bwd"] if BIDIRECTIONAL else ["fwd"]):
            wih_t = rnd((in_dim, 4 * HIDDEN_DIMS))          # (D, 4H) == W_ih^T
            whh_t = rnd((HIDDEN_DIMS, 4 * HIDDEN_DIMS))     # (H, 4H) == W_hh^T
            b = rnd((4 * HIDDEN_DIMS,))                     # b_ih + b_hh combined
            layer[d] = (wih_t, whh_t, b)
        params["lstm"].append(layer)
        in_dim = HIDDEN_DIMS * DIRS

    x = jax.random.normal(next(keys), (B, T, INPUT_DIMS), dtype=jnp.float32)

    fwd = jax.jit(functools.partial(rnn_forward, num_layers=NUM_LAYERS,
                                    bidirectional=BIDIRECTIONAL))
    out = jax.block_until_ready(fwd(x, params))

    ref = jax.block_until_ready(
        ref_forward(x, params, num_layers=NUM_LAYERS,
                    bidirectional=BIDIRECTIONAL))

    assert out.shape == (B, T, NUM_CLASSES), out.shape
    np.testing.assert_allclose(np.asarray(out), np.asarray(ref),
                               rtol=2e-4, atol=3e-5)
    print("KERNEL_OK")
</pallas_src>

<mosaic_0001>
module attributes {stable_mosaic.version = 11 : i64} {
  func.func @kernel(%arg0: i32, %arg1: memref<1x8x32xf32, #tpu.memory_space<vmem>>, %arg2: memref<1x32xf32, #tpu.memory_space<vmem>>, %arg3: memref<1x32xf32, #tpu.memory_space<vmem>>, %arg4: memref<32x256xf32, #tpu.memory_space<vmem>>, %arg5: memref<1x256xf32, #tpu.memory_space<vmem>>, %arg6: memref<64x256xf32, #tpu.memory_space<vmem>>, %arg7: memref<64x256xf32, #tpu.memory_space<vmem>>, %arg8: memref<1x256xf32, #tpu.memory_space<vmem>>, %arg9: memref<64x256xf32, #tpu.memory_space<vmem>>, %arg10: memref<64x16xf32, #tpu.memory_space<vmem>>, %arg11: memref<1x16xf32, #tpu.memory_space<vmem>>, %arg12: memref<16x16xf32, #tpu.memory_space<vmem>>, %arg13: memref<1x16xf32, #tpu.memory_space<vmem>>, %arg14: memref<1x8x16xf32, #tpu.memory_space<vmem>>, %arg15: memref<8x256xf32, #tpu.memory_space<vmem>>, %arg16: memref<8x64xf32, #tpu.memory_space<vmem>>) attributes {dimension_semantics = [#tpu.dimension_semantics<parallel>], iteration_bounds = array<i64: 2>, scalar_prefetch = 0 : i64, scratch_operands = 2 : i64, tpu.core_type = #tpu.core_type<tc>, window_params = [{transform_indices = @transform_0, window_bounds = array<i64: 1, 8, 32>}, {pipeline_mode = #tpu.pipeline_mode<synchronous>, transform_indices = @transform_1, window_bounds = array<i64: 1, 32>}, {pipeline_mode = #tpu.pipeline_mode<synchronous>, transform_indices = @transform_2, window_bounds = array<i64: 1, 32>}, {pipeline_mode = #tpu.pipeline_mode<synchronous>, transform_indices = @transform_3, window_bounds = array<i64: 32, 256>}, {pipeline_mode = #tpu.pipeline_mode<synchronous>, transform_indices = @transform_4, window_bounds = array<i64: 1, 256>}, {pipeline_mode = #tpu.pipeline_mode<synchronous>, transform_indices = @transform_5, window_bounds = array<i64: 64, 256>}, {pipeline_mode = #tpu.pipeline_mode<synchronous>, transform_indices = @transform_6, window_bounds = array<i64: 64, 256>}, {pipeline_mode = #tpu.pipeline_mode<synchronous>, transform_indices = @transform_7, window_bounds = array<i64: 1, 256>}, {pipeline_mode = #tpu.pipeline_mode<synchronous>, transform_indices = @transform_8, window_bounds = array<i64: 64, 256>}, {pipeline_mode = #tpu.pipeline_mode<synchronous>, transform_indices = @transform_9, window_bounds = array<i64: 64, 16>}, {pipeline_mode = #tpu.pipeline_mode<synchronous>, transform_indices = @transform_10, window_bounds = array<i64: 1, 16>}, {pipeline_mode = #tpu.pipeline_mode<synchronous>, transform_indices = @transform_11, window_bounds = array<i64: 16, 16>}, {pipeline_mode = #tpu.pipeline_mode<synchronous>, transform_indices = @transform_12, window_bounds = array<i64: 1, 16>}, {transform_indices = @transform_13, window_bounds = array<i64: 1, 8, 16>}]} {
    %c0 = arith.constant 0 : index
    %c0_0 = arith.constant 0 : index
    %c0_1 = arith.constant 0 : index
    %0 = vector.load %arg1[%c0, %c0_0, %c0_1] : memref<1x8x32xf32, #tpu.memory_space<vmem>>, vector<1x8x32xf32>
    %1 = vector.shape_cast %0 : vector<1x8x32xf32> to vector<8x32xf32>
    %cst = arith.constant dense<0.000000e+00> : vector<8xf32>
    %2 = vector.multi_reduction <add>, %1, %cst [1] : vector<8x32xf32> to vector<8xf32>
    %3 = vector.shape_cast %2 : vector<8xf32> to vector<8x1xf32>
    %cst_2 = arith.constant 3.200000e+01 : f32
    %4 = vector.broadcast %cst_2 : f32 to vector<8x1xf32>
    %5 = arith.divf %3, %4 : vector<8x1xf32>
    %6 = vector.broadcast %5 : vector<8x1xf32> to vector<8x32xf32>
    %7 = arith.subf %1, %6 : vector<8x32xf32>
    %8 = arith.mulf %7, %7 : vector<8x32xf32>
    %cst_3 = arith.constant dense<0.000000e+00> : vector<8xf32>
    %9 = vector.multi_reduction <add>, %8, %cst_3 [1] : vector<8x32xf32> to vector<8xf32>
    %10 = vector.shape_cast %9 : vector<8xf32> to vector<8x1xf32>
    %cst_4 = arith.constant 3.200000e+01 : f32
    %11 = vector.broadcast %cst_4 : f32 to vector<8x1xf32>
    %12 = arith.divf %10, %11 : vector<8x1xf32>
    %13 = vector.broadcast %5 : vector<8x1xf32> to vector<8x32xf32>
    %14 = arith.subf %1, %13 : vector<8x32xf32>
    %cst_5 = arith.constant 9.99999974E-6 : f32
    %15 = vector.broadcast %cst_5 : f32 to vector<8x1xf32>
    %16 = arith.addf %12, %15 : vector<8x1xf32>
    %17 = math.rsqrt %16 : vector<8x1xf32>
    %18 = vector.broadcast %17 : vector<8x1xf32> to vector<8x32xf32>
    %19 = arith.mulf %14, %18 : vector<8x32xf32>
    %c0_6 = arith.constant 0 : index
    %c0_7 = arith.constant 0 : index
    %20 = vector.load %arg2[%c0_6, %c0_7] : memref<1x32xf32, #tpu.memory_space<vmem>>, vector<1x32xf32>
    %21 = vector.broadcast %20 : vector<1x32xf32> to vector<8x32xf32>
    %22 = arith.mulf %19, %21 : vector<8x32xf32>
    %c0_8 = arith.constant 0 : index
    %c0_9 = arith.constant 0 : index
    %23 = vector.load %arg3[%c0_8, %c0_9] : memref<1x32xf32, #tpu.memory_space<vmem>>, vector<1x32xf32>
    %24 = vector.broadcast %23 : vector<1x32xf32> to vector<8x32xf32>
    %25 = arith.addf %22, %24 : vector<8x32xf32>
    %cst_10 = arith.constant 0.000000e+00 : f32
    %26 = vector.broadcast %cst_10 : f32 to vector<8x32xf32>
    %27 = arith.maximumf %25, %26 : vector<8x32xf32>
    %c0_11 = arith.constant 0 : index
    %c0_12 = arith.constant 0 : index
    %28 = vector.load %arg4[%c0_11, %c0_12] : memref<32x256xf32, #tpu.memory_space<vmem>>, vector<32x256xf32>
    %cst_13 = arith.constant dense<0.000000e+00> : vector<8x256xf32>
    %29 = tpu.matmul %27, %28, %cst_13 {dimension_numbers = #tpu.dot_dimension_numbers<[1], [0], [0], [1], [0, 0, 1, 1], [], []>} : vector<8x32xf32>, vector<32x256xf32>, vector<8x256xf32> -> vector<8x256xf32>
    %c0_14 = arith.constant 0 : index
    %c0_15 = arith.constant 0 : index
    %30 = vector.load %arg5[%c0_14, %c0_15] : memref<1x256xf32, #tpu.memory_space<vmem>>, vector<1x256xf32>
    %31 = vector.broadcast %30 : vector<1x256xf32> to vector<8x256xf32>
    %32 = arith.addf %29, %31 : vector<8x256xf32>
    %c0_16 = arith.constant 0 : index
    %c0_17 = arith.constant 0 : index
    %33 = vector.load %arg15[%c0_16, %c0_17] : memref<8x256xf32, #tpu.memory_space<vmem>>, vector<8x256xf32>
    tpu.vector_store %arg15[%c0_16, %c0_17], %32 {strides = array<i32>} : memref<8x256xf32, #tpu.memory_space<vmem>>, vector<8x256xf32>,
    %c0_18 = arith.constant 0 : index
    %c0_19 = arith.constant 0 : index
    %34 = vector.load %arg6[%c0_18, %c0_19] : memref<64x256xf32, #tpu.memory_space<vmem>>, vector<64x256xf32>
    %cst_20 = arith.constant 0.000000e+00 : f32
    %35 = vector.broadcast %cst_20 : f32 to vector<1x64xf32>
    %cst_21 = arith.constant 0.000000e+00 : f32
    %36 = vector.broadcast %cst_21 : f32 to vector<1x32xf32>
    %cst_22 = arith.constant 0.000000e+00 : f32
    %37 = vector.broadcast %cst_22 : f32 to vector<1x32xf32>
    %c0_i32 = arith.constant 0 : i32
    %cst_23 = arith.constant dense<0.000000e+00> : vector<1x256xf32>
    %38 = tpu.matmul %35, %34, %cst_23 {dimension_numbers = #tpu.dot_dimension_numbers<[1], [0], [0], [1], [0, 0, 1, 1], [], []>} : vector<1x64xf32>, vector<64x256xf32>, vector<1x256xf32> -> vector<1x256xf32>
    %39 = vector.extract_strided_slice %38 {offsets = [0, 0], sizes = [1, 128], strides = [1, 1]} : vector<1x256xf32> to vector<1x128xf32>
    %40 = arith.index_cast %c0_i32 : i32 to index
    %c0_24 = arith.constant 0 : index
    %41 = vector.load %arg15[%40, %c0_24] : memref<8x256xf32, #tpu.memory_space<vmem>>, vector<1x128xf32>
    %42 = arith.addf %39, %41 : vector<1x128xf32>
    %43 = vector.extract_strided_slice %38 {offsets = [0, 128], sizes = [1, 128], strides = [1, 1]} : vector<1x256xf32> to vector<1x128xf32>
    %c7_i32 = arith.constant 7 : i32
    %44 = arith.subi %c7_i32, %c0_i32 : i32
    %45 = arith.index_cast %44 : i32 to index
    %c128 = arith.constant 128 : index
    %46 = vector.load %arg15[%45, %c128] : memref<8x256xf32, #tpu.memory_space<vmem>>, vector<1x128xf32>
    %47 = arith.addf %43, %46 : vector<1x128xf32>
    %48 = vector.extract_strided_slice %42 {offsets = [0, 0], sizes = [1, 96], strides = [1, 1]} : vector<1x128xf32> to vector<1x96xf32>
    %49 = arith.negf %48 : vector<1x96xf32>
    %50 = math.exp %49 : vector<1x96xf32>
    %cst_25 = arith.constant 1.000000e+00 : f32
    %51 = vector.broadcast %cst_25 : f32 to vector<1x96xf32>
    %52 = arith.addf %51, %50 : vector<1x96xf32>
    %53 = arith.divf %51, %52 : vector<1x96xf32>
    %54 = vector.extract_strided_slice %47 {offsets = [0, 0], sizes = [1, 96], strides = [1, 1]} : vector<1x128xf32> to vector<1x96xf32>
    %55 = arith.negf %54 : vector<1x96xf32>
    %56 = math.exp %55 : vector<1x96xf32>
    %cst_26 = arith.constant 1.000000e+00 : f32
    %57 = vector.broadcast %cst_26 : f32 to vector<1x96xf32>
    %58 = arith.addf %57, %56 : vector<1x96xf32>
    %59 = arith.divf %57, %58 : vector<1x96xf32>
    %60 = vector.extract_strided_slice %42 {offsets = [0, 96], sizes = [1, 32], strides = [1, 1]} : vector<1x128xf32> to vector<1x32xf32>
    %61 = math.tanh %60 : vector<1x32xf32>
    %62 = vector.extract_strided_slice %47 {offsets = [0, 96], sizes = [1, 32], strides = [1, 1]} : vector<1x128xf32> to vector<1x32xf32>
    %63 = math.tanh %62 : vector<1x32xf32>
    %64 = vector.extract_strided_slice %53 {offsets = [0, 32], sizes = [1, 32], strides = [1, 1]} : vector<1x96xf32> to vector<1x32xf32>
    %65 = arith.mulf %64, %36 : vector<1x32xf32>
    %66 = vector.extract_strided_slice %53 {offsets = [0, 0], sizes = [1, 32], strides = [1, 1]} : vector<1x96xf32> to vector<1x32xf32>
    %67 = arith.mulf %66, %61 : vector<1x32xf32>
    %68 = arith.addf %65, %67 : vector<1x32xf32>
    %69 = vector.extract_strided_slice %59 {offsets = [0, 32], sizes = [1, 32], strides = [1, 1]} : vector<1x96xf32> to vector<1x32xf32>
    %70 = arith.mulf %69, %37 : vector<1x32xf32>
    %71 = vector.extract_strided_slice %59 {offsets = [0, 0], sizes = [1, 32], strides = [1, 1]} : vector<1x96xf32> to vector<1x32xf32>
    %72 = arith.mulf %71, %63 : vector<1x32xf32>
    %73 = arith.addf %70, %72 : vector<1x32xf32>
    %74 = vector.extract_strided_slice %53 {offsets = [0, 64], sizes = [1, 32], strides = [1, 1]} : vector<1x96xf32> to vector<1x32xf32>
    %75 = math.tanh %68 : vector<1x32xf32>
    %76 = arith.mulf %74, %75 : vector<1x32xf32>
    %77 = vector.extract_strided_slice %59 {offsets = [0, 64], sizes = [1, 32], strides = [1, 1]} : vector<1x96xf32> to vector<1x32xf32>
    %78 = math.tanh %73 : vector<1x32xf32>
    %79 = arith.mulf %77, %78 : vector<1x32xf32>
    %80 = arith.index_cast %c0_i32 : i32 to index
    %c0_27 = arith.constant 0 : index
    %81 = vector.load %arg16[%80, %c0_27] : memref<8x64xf32, #tpu.memory_space<vmem>>, vector<1x32xf32>
    tpu.vector_store %arg16[%80, %c0_27], %76 {strides = array<i32>} : memref<8x64xf32, #tpu.memory_space<vmem>>, vector<1x32xf32>,
    %c7_i32_28 = arith.constant 7 : i32
    %82 = arith.subi %c7_i32_28, %c0_i32 : i32
    %83 = arith.index_cast %82 : i32 to index
    %c32 = arith.constant 32 : index
    %84 = vector.load %arg16[%83, %c32] : memref<8x64xf32, #tpu.memory_space<vmem>>, vector<1x32xf32>
    tpu.vector_store %arg16[%83, %c32], %79 {strides = array<i32>} : memref<8x64xf32, #tpu.memory_space<vmem>>, vector<1x32xf32>,
    %85 = tpu.concatenate %76, %79 in 1 : vector<1x32xf32>, vector<1x32xf32> -> vector<1x64xf32>
    %c1_i32 = arith.constant 1 : i32
    %cst_29 = arith.constant dense<0.000000e+00> : vector<1x256xf32>
    %86 = tpu.matmul %85, %34, %cst_29 {dimension_numbers = #tpu.dot_dimension_numbers<[1], [0], [0], [1], [0, 0, 1, 1], [], []>} : vector<1x64xf32>, vector<64x256xf32>, vector<1x256xf32> -> vector<1x256xf32>
    %87 = vector.extract_strided_slice %86 {offsets = [0, 0], sizes = [1, 128], strides = [1, 1]} : vector<1x256xf32> to vector<1x128xf32>
    %88 = arith.index_cast %c1_i32 : i32 to index
    %c0_30 = arith.constant 0 : index
    %89 = vector.load %arg15[%88, %c0_30] : memref<8x256xf32, #tpu.memory_space<vmem>>, vector<1x128xf32>
    %90 = arith.addf %87, %89 : vector<1x128xf32>
    %91 = vector.extract_strided_slice %86 {offsets = [0, 128], sizes = [1, 128], strides = [1, 1]} : vector<1x256xf32> to vector<1x128xf32>
    %c7_i32_31 = arith.constant 7 : i32
    %92 = arith.subi %c7_i32_31, %c1_i32 : i32
    %93 = arith.index_cast %92 : i32 to index
    %c128_32 = arith.constant 128 : index
    %94 = vector.load %arg15[%93, %c128_32] : memref<8x256xf32, #tpu.memory_space<vmem>>, vector<1x128xf32>
    %95 = arith.addf %91, %94 : vector<1x128xf32>
    %96 = vector.extract_strided_slice %90 {offsets = [0, 0], sizes = [1, 96], strides = [1, 1]} : vector<1x128xf32> to vector<1x96xf32>
    %97 = arith.negf %96 : vector<1x96xf32>
    %98 = math.exp %97 : vector<1x96xf32>
    %cst_33 = arith.constant 1.000000e+00 : f32
    %99 = vector.broadcast %cst_33 : f32 to vector<1x96xf32>
    %100 = arith.addf %99, %98 : vector<1x96xf32>
    %101 = arith.divf %99, %100 : vector<1x96xf32>
    %102 = vector.extract_strided_slice %95 {offsets = [0, 0], sizes = [1, 96], strides = [1, 1]} : vector<1x128xf32> to vector<1x96xf32>
    %103 = arith.negf %102 : vector<1x96xf32>
    %104 = math.exp %103 : vector<1x96xf32>
    %cst_34 = arith.constant 1.000000e+00 : f32
    %105 = vector.broadcast %cst_34 : f32 to vector<1x96xf32>
    %106 = arith.addf %105, %104 : vector<1x96xf32>
    %107 = arith.divf %105, %106 : vector<1x96xf32>
    %108 = vector.extract_strided_slice %90 {offsets = [0, 96], sizes = [1, 32], strides = [1, 1]} : vector<1x128xf32> to vector<1x32xf32>
    %109 = math.tanh %108 : vector<1x32xf32>
    %110 = vector.extract_strided_slice %95 {offsets = [0, 96], sizes = [1, 32], strides = [1, 1]} : vector<1x128xf32> to vector<1x32xf32>
    %111 = math.tanh %110 : vector<1x32xf32>
    %112 = vector.extract_strided_slice %101 {offsets = [0, 32], sizes = [1, 32], strides = [1, 1]} : vector<1x96xf32> to vector<1x32xf32>
    %113 = arith.mulf %112, %68 : vector<1x32xf32>
    %114 = vector.extract_strided_slice %101 {offsets = [0, 0], sizes = [1, 32], strides = [1, 1]} : vector<1x96xf32> to vector<1x32xf32>
    %115 = arith.mulf %114, %109 : vector<1x32xf32>
    %116 = arith.addf %113, %115 : vector<1x32xf32>
    %117 = vector.extract_strided_slice %107 {offsets = [0, 32], sizes = [1, 32], strides = [1, 1]} : vector<1x96xf32> to vector<1x32xf32>
    %118 = arith.mulf %117, %73 : vector<1x32xf32>
    %119 = vector.extract_strided_slice %107 {offsets = [0, 0], sizes = [1, 32], strides = [1, 1]} : vector<1x96xf32> to vector<1x32xf32>
    %120 = arith.mulf %119, %111 : vector<1x32xf32>
    %121 = arith.addf %118, %120 : vector<1x32xf32>
    %122 = vector.extract_strided_slice %101 {offsets = [0, 64], sizes = [1, 32], strides = [1, 1]} : vector<1x96xf32> to vector<1x32xf32>
    %123 = math.tanh %116 : vector<1x32xf32>
    %124 = arith.mulf %122, %123 : vector<1x32xf32>
    %125 = vector.extract_strided_slice %107 {offsets = [0, 64], sizes = [1, 32], strides = [1, 1]} : vector<1x96xf32> to vector<1x32xf32>
    %126 = math.tanh %121 : vector<1x32xf32>
    %127 = arith.mulf %125, %126 : vector<1x32xf32>
    %128 = arith.index_cast %c1_i32 : i32 to index
    %c0_35 = arith.constant 0 : index
    %129 = vector.load %arg16[%128, %c0_35] : memref<8x64xf32, #tpu.memory_space<vmem>>, vector<1x32xf32>
    tpu.vector_store %arg16[%128, %c0_35], %124 {strides = array<i32>} : memref<8x64xf32, #tpu.memory_space<vmem>>, vector<1x32xf32>,
    %c7_i32_36 = arith.constant 7 : i32
    %130 = arith.subi %c7_i32_36, %c1_i32 : i32
    %131 = arith.index_cast %130 : i32 to index
    %c32_37 = arith.constant 32 : index
    %132 = vector.load %arg16[%131, %c32_37] : memref<8x64xf32, #tpu.memory_space<vmem>>, vector<1x32xf32>
    tpu.vector_store %arg16[%131, %c32_37], %127 {strides = array<i32>} : memref<8x64xf32, #tpu.memory_space<vmem>>, vector<1x32xf32>,
    %133 = tpu.concatenate %124, %127 in 1 : vector<1x32xf32>, vector<1x32xf32> -> vector<1x64xf32>
    %c2_i32 = arith.constant 2 : i32
    %cst_38 = arith.constant dense<0.000000e+00> : vector<1x256xf32>
    %134 = tpu.matmul %133, %34, %cst_38 {dimension_numbers = #tpu.dot_dimension_numbers<[1], [0], [0], [1], [0, 0, 1, 1], [], []>} : vector<1x64xf32>, vector<64x256xf32>, vector<1x256xf32> -> vector<1x256xf32>
    %135 = vector.extract_strided_slice %134 {offsets = [0, 0], sizes = [1, 128], strides = [1, 1]} : vector<1x256xf32> to vector<1x128xf32>
    %136 = arith.index_cast %c2_i32 : i32 to index
    %c0_39 = arith.constant 0 : index
    %137 = vector.load %arg15[%136, %c0_39] : memref<8x256xf32, #tpu.memory_space<vmem>>, vector<1x128xf32>
    %138 = arith.addf %135, %137 : vector<1x128xf32>
    %139 = vector.extract_strided_slice %134 {offsets = [0, 128], sizes = [1, 128], strides = [1, 1]} : vector<1x256xf32> to vector<1x128xf32>
    %c7_i32_40 = arith.constant 7 : i32
    %140 = arith.subi %c7_i32_40, %c2_i32 : i32
    %141 = arith.index_cast %140 : i32 to index
    %c128_41 = arith.constant 128 : index
    %142 = vector.load %arg15[%141, %c128_41] : memref<8x256xf32, #tpu.memory_space<vmem>>, vector<1x128xf32>
    %143 = arith.addf %139, %142 : vector<1x128xf32>
    %144 = vector.extract_strided_slice %138 {offsets = [0, 0], sizes = [1, 96], strides = [1, 1]} : vector<1x128xf32> to vector<1x96xf32>
    %145 = arith.negf %144 : vector<1x96xf32>
    %146 = math.exp %145 : vector<1x96xf32>
    %cst_42 = arith.constant 1.000000e+00 : f32
    %147 = vector.broadcast %cst_42 : f32 to vector<1x96xf32>
    %148 = arith.addf %147, %146 : vector<1x96xf32>
    %149 = arith.divf %147, %148 : vector<1x96xf32>
    %150 = vector.extract_strided_slice %143 {offsets = [0, 0], sizes = [1, 96], strides = [1, 1]} : vector<1x128xf32> to vector<1x96xf32>
    %151 = arith.negf %150 : vector<1x96xf32>
    %152 = math.exp %151 : vector<1x96xf32>
    %cst_43 = arith.constant 1.000000e+00 : f32
    %153 = vector.broadcast %cst_43 : f32 to vector<1x96xf32>
    %154 = arith.addf %153, %152 : vector<1x96xf32>
    %155 = arith.divf %153, %154 : vector<1x96xf32>
    %156 = vector.extract_strided_slice %138 {offsets = [0, 96], sizes = [1, 32], strides = [1, 1]} : vector<1x128xf32> to vector<1x32xf32>
    %157 = math.tanh %156 : vector<1x32xf32>
    %158 = vector.extract_strided_slice %143 {offsets = [0, 96], sizes = [1, 32], strides = [1, 1]} : vector<1x128xf32> to vector<1x32xf32>
    %159 = math.tanh %158 : vector<1x32xf32>
    %160 = vector.extract_strided_slice %149 {offsets = [0, 32], sizes = [1, 32], strides = [1, 1]} : vector<1x96xf32> to vector<1x32xf32>
    %161 = arith.mulf %160, %116 : vector<1x32xf32>
    %162 = vector.extract_strided_slice %149 {offsets = [0, 0], sizes = [1, 32], strides = [1, 1]} : vector<1x96xf32> to vector<1x32xf32>
    %163 = arith.mulf %162, %157 : vector<1x32xf32>
    %164 = arith.addf %161, %163 : vector<1x32xf32>
    %165 = vector.extract_strided_slice %155 {offsets = [0, 32], sizes = [1, 32], strides = [1, 1]} : vector<1x96xf32> to vector<1x32xf32>
    %166 = arith.mulf %165, %121 : vector<1x32xf32>
    %167 = vector.extract_strided_slice %155 {offsets = [0, 0], sizes = [1, 32], strides = [1, 1]} : vector<1x96xf32> to vector<1x32xf32>
    %168 = arith.mulf %167, %159 : vector<1x32xf32>
    %169 = arith.addf %166, %168 : vector<1x32xf32>
    %170 = vector.extract_strided_slice %149 {offsets = [0, 64], sizes = [1, 32], strides = [1, 1]} : vector<1x96xf32> to vector<1x32xf32>
    %171 = math.tanh %164 : vector<1x32xf32>
    %172 = arith.mulf %170, %171 : vector<1x32xf32>
    %173 = vector.extract_strided_slice %155 {offsets = [0, 64], sizes = [1, 32], strides = [1, 1]} : vector<1x96xf32> to vector<1x32xf32>
    %174 = math.tanh %169 : vector<1x32xf32>
    %175 = arith.mulf %173, %174 : vector<1x32xf32>
    %176 = arith.index_cast %c2_i32 : i32 to index
    %c0_44 = arith.constant 0 : index
    %177 = vector.load %arg16[%176, %c0_44] : memref<8x64xf32, #tpu.memory_space<vmem>>, vector<1x32xf32>
    tpu.vector_store %arg16[%176, %c0_44], %172 {strides = array<i32>} : memref<8x64xf32, #tpu.memory_space<vmem>>, vector<1x32xf32>,
    %c7_i32_45 = arith.constant 7 : i32
    %178 = arith.subi %c7_i32_45, %c2_i32 : i32
    %179 = arith.index_cast %178 : i32 to index
    %c32_46 = arith.constant 32 : index
    %180 = vector.load %arg16[%179, %c32_46] : memref<8x64xf32, #tpu.memory_space<vmem>>, vector<1x32xf32>
    tpu.vector_store %arg16[%179, %c32_46], %175 {strides = array<i32>} : memref<8x64xf32, #tpu.memory_space<vmem>>, vector<1x32xf32>,
    %181 = tpu.concatenate %172, %175 in 1 : vector<1x32xf32>, vector<1x32xf32> -> vector<1x64xf32>
    %c3_i32 = arith.constant 3 : i32
    %cst_47 = arith.constant dense<0.000000e+00> : vector<1x256xf32>
    %182 = tpu.matmul %181, %34, %cst_47 {dimension_numbers = #tpu.dot_dimension_numbers<[1], [0], [0], [1], [0, 0, 1, 1], [], []>} : vector<1x64xf32>, vector<64x256xf32>, vector<1x256xf32> -> vector<1x256xf32>
    %183 = vector.extract_strided_slice %182 {offsets = [0, 0], sizes = [1, 128], strides = [1, 1]} : vector<1x256xf32> to vector<1x128xf32>
    %184 = arith.index_cast %c3_i32 : i32 to index
    %c0_48 = arith.constant 0 : index
    %185 = vector.load %arg15[%184, %c0_48] : memref<8x256xf32, #tpu.memory_space<vmem>>, vector<1x128xf32>
    %186 = arith.addf %183, %185 : vector<1x128xf32>
    %187 = vector.extract_strided_slice %182 {offsets = [0, 128], sizes = [1, 128], strides = [1, 1]} : vector<1x256xf32> to vector<1x128xf32>
    %c7_i32_49 = arith.constant 7 : i32
    %188 = arith.subi %c7_i32_49, %c3_i32 : i32
    %189 = arith.index_cast %188 : i32 to index
    %c128_50 = arith.constant 128 : index
    %190 = vector.load %arg15[%189, %c128_50] : memref<8x256xf32, #tpu.memory_space<vmem>>, vector<1x128xf32>
    %191 = arith.addf %187, %190 : vector<1x128xf32>
    %192 = vector.extract_strided_slice %186 {offsets = [0, 0], sizes = [1, 96], strides = [1, 1]} : vector<1x128xf32> to vector<1x96xf32>
    %193 = arith.negf %192 : vector<1x96xf32>
    %194 = math.exp %193 : vector<1x96xf32>
    %cst_51 = arith.constant 1.000000e+00 : f32
    %195 = vector.broadcast %cst_51 : f32 to vector<1x96xf32>
    %196 = arith.addf %195, %194 : vector<1x96xf32>
    %197 = arith.divf %195, %196 : vector<1x96xf32>
    %198 = vector.extract_strided_slice %191 {offsets = [0, 0], sizes = [1, 96], strides = [1, 1]} : vector<1x128xf32> to vector<1x96xf32>
    %199 = arith.negf %198 : vector<1x96xf32>
    %200 = math.exp %199 : vector<1x96xf32>
    %cst_52 = arith.constant 1.000000e+00 : f32
    %201 = vector.broadcast %cst_52 : f32 to vector<1x96xf32>
    %202 = arith.addf %201, %200 : vector<1x96xf32>
    %203 = arith.divf %201, %202 : vector<1x96xf32>
    %204 = vector.extract_strided_slice %186 {offsets = [0, 96], sizes = [1, 32], strides = [1, 1]} : vector<1x128xf32> to vector<1x32xf32>
    %205 = math.tanh %204 : vector<1x32xf32>
    %206 = vector.extract_strided_slice %191 {offsets = [0, 96], sizes = [1, 32], strides = [1, 1]} : vector<1x128xf32> to vector<1x32xf32>
    %207 = math.tanh %206 : vector<1x32xf32>
    %208 = vector.extract_strided_slice %197 {offsets = [0, 32], sizes = [1, 32], strides = [1, 1]} : vector<1x96xf32> to vector<1x32xf32>
    %209 = arith.mulf %208, %164 : vector<1x32xf32>
    %210 = vector.extract_strided_slice %197 {offsets = [0, 0], sizes = [1, 32], strides = [1, 1]} : vector<1x96xf32> to vector<1x32xf32>
    %211 = arith.mulf %210, %205 : vector<1x32xf32>
    %212 = arith.addf %209, %211 : vector<1x32xf32>
    %213 = vector.extract_strided_slice %203 {offsets = [0, 32], sizes = [1, 32], strides = [1, 1]} : vector<1x96xf32> to vector<1x32xf32>
    %214 = arith.mulf %213, %169 : vector<1x32xf32>
    %215 = vector.extract_strided_slice %203 {offsets = [0, 0], sizes = [1, 32], strides = [1, 1]} : vector<1x96xf32> to vector<1x32xf32>
    %216 = arith.mulf %215, %207 : vector<1x32xf32>
    %217 = arith.addf %214, %216 : vector<1x32xf32>
    %218 = vector.extract_strided_slice %197 {offsets = [0, 64], sizes = [1, 32], strides = [1, 1]} : vector<1x96xf32> to vector<1x32xf32>
    %219 = math.tanh %212 : vector<1x32xf32>
    %220 = arith.mulf %218, %219 : vector<1x32xf32>
    %221 = vector.extract_strided_slice %203 {offsets = [0, 64], sizes = [1, 32], strides = [1, 1]} : vector<1x96xf32> to vector<1x32xf32>
    %222 = math.tanh %217 : vector<1x32xf32>
    %223 = arith.mulf %221, %222 : vector<1x32xf32>
    %224 = arith.index_cast %c3_i32 : i32 to index
    %c0_53 = arith.constant 0 : index
    %225 = vector.load %arg16[%224, %c0_53] : memref<8x64xf32, #tpu.memory_space<vmem>>, vector<1x32xf32>
    tpu.vector_store %arg16[%224, %c0_53], %220 {strides = array<i32>} : memref<8x64xf32, #tpu.memory_space<vmem>>, vector<1x32xf32>,
    %c7_i32_54 = arith.constant 7 : i32
    %226 = arith.subi %c7_i32_54, %c3_i32 : i32
    %227 = arith.index_cast %226 : i32 to index
    %c32_55 = arith.constant 32 : index
    %228 = vector.load %arg16[%227, %c32_55] : memref<8x64xf32, #tpu.memory_space<vmem>>, vector<1x32xf32>
    tpu.vector_store %arg16[%227, %c32_55], %223 {strides = array<i32>} : memref<8x64xf32, #tpu.memory_space<vmem>>, vector<1x32xf32>,
    %229 = tpu.concatenate %220, %223 in 1 : vector<1x32xf32>, vector<1x32xf32> -> vector<1x64xf32>
    %c4_i32 = arith.constant 4 : i32
    %cst_56 = arith.constant dense<0.000000e+00> : vector<1x256xf32>
    %230 = tpu.matmul %229, %34, %cst_56 {dimension_numbers = #tpu.dot_dimension_numbers<[1], [0], [0], [1], [0, 0, 1, 1], [], []>} : vector<1x64xf32>, vector<64x256xf32>, vector<1x256xf32> -> vector<1x256xf32>
    %231 = vector.extract_strided_slice %230 {offsets = [0, 0], sizes = [1, 128], strides = [1, 1]} : vector<1x256xf32> to vector<1x128xf32>
    %232 = arith.index_cast %c4_i32 : i32 to index
    %c0_57 = arith.constant 0 : index
    %233 = vector.load %arg15[%232, %c0_57] : memref<8x256xf32, #tpu.memory_space<vmem>>, vector<1x128xf32>
    %234 = arith.addf %231, %233 : vector<1x128xf32>
    %235 = vector.extract_strided_slice %230 {offsets = [0, 128], sizes = [1, 128], strides = [1, 1]} : vector<1x256xf32> to vector<1x128xf32>
    %c7_i32_58 = arith.constant 7 : i32
    %236 = arith.subi %c7_i32_58, %c4_i32 : i32
    %237 = arith.index_cast %236 : i32 to index
    %c128_59 = arith.constant 128 : index
    %238 = vector.load %arg15[%237, %c128_59] : memref<8x256xf32, #tpu.memory_space<vmem>>, vector<1x128xf32>
    %239 = arith.addf %235, %238 : vector<1x128xf32>
    %240 = vector.extract_strided_slice %234 {offsets = [0, 0], sizes = [1, 96], strides = [1, 1]} : vector<1x128xf32> to vector<1x96xf32>
    %241 = arith.negf %240 : vector<1x96xf32>
    %242 = math.exp %241 : vector<1x96xf32>
    %cst_60 = arith.constant 1.000000e+00 : f32
    %243 = vector.broadcast %cst_60 : f32 to vector<1x96xf32>
    %244 = arith.addf %243, %242 : vector<1x96xf32>
    %245 = arith.divf %243, %244 : vector<1x96xf32>
    %246 = vector.extract_strided_slice %239 {offsets = [0, 0], sizes = [1, 96], strides = [1, 1]} : vector<1x128xf32> to vector<1x96xf32>
    %247 = arith.negf %246 : vector<1x96xf32>
    %248 = math.exp %247 : vector<1x96xf32>
    %cst_61 = arith.constant 1.000000e+00 : f32
    %249 = vector.broadcast %cst_61 : f32 to vector<1x96xf32>
    %250 = arith.addf %249, %248 : vector<1x96xf32>
    %251 = arith.divf %249, %250 : vector<1x96xf32>
    %252 = vector.extract_strided_slice %234 {offsets = [0, 96], sizes = [1, 32], strides = [1, 1]} : vector<1x128xf32> to vector<1x32xf32>
    %253 = math.tanh %252 : vector<1x32xf32>
    %254 = vector.extract_strided_slice %239 {offsets = [0, 96], sizes = [1, 32], strides = [1, 1]} : vector<1x128xf32> to vector<1x32xf32>
    %255 = math.tanh %254 : vector<1x32xf32>
    %256 = vector.extract_strided_slice %245 {offsets = [0, 32], sizes = [1, 32], strides = [1, 1]} : vector<1x96xf32> to vector<1x32xf32>
    %257 = arith.mulf %256, %212 : vector<1x32xf32>
    %258 = vector.extract_strided_slice %245 {offsets = [0, 0], sizes = [1, 32], strides = [1, 1]} : vector<1x96xf32> to vector<1x32xf32>
    %259 = arith.mulf %258, %253 : vector<1x32xf32>
    %260 = arith.addf %257, %259 : vector<1x32xf32>
    %261 = vector.extract_strided_slice %251 {offsets = [0, 32], sizes = [1, 32], strides = [1, 1]} : vector<1x96xf32> to vector<1x32xf32>
    %262 = arith.mulf %261, %217 : vector<1x32xf32>
    %263 = vector.extract_strided_slice %251 {offsets = [0, 0], sizes = [1, 32], strides = [1, 1]} : vector<1x96xf32> to vector<1x32xf32>
    %264 = arith.mulf %263, %255 : vector<1x32xf32>
    %265 = arith.addf %262, %264 : vector<1x32xf32>
    %266 = vector.extract_strided_slice %245 {offsets = [0, 64], sizes = [1, 32], strides = [1, 1]} : vector<1x96xf32> to vector<1x32xf32>
    %267 = math.tanh %260 : vector<1x32xf32>
    %268 = arith.mulf %266, %267 : vector<1x32xf32>
    %269 = vector.extract_strided_slice %251 {offsets = [0, 64], sizes = [1, 32], strides = [1, 1]} : vector<1x96xf32> to vector<1x32xf32>
    %270 = math.tanh %265 : vector<1x32xf32>
    %271 = arith.mulf %269, %270 : vector<1x32xf32>
    %272 = arith.index_cast %c4_i32 : i32 to index
    %c0_62 = arith.constant 0 : index
    %273 = vector.load %arg16[%272, %c0_62] : memref<8x64xf32, #tpu.memory_space<vmem>>, vector<1x32xf32>
    tpu.vector_store %arg16[%272, %c0_62], %268 {strides = array<i32>} : memref<8x64xf32, #tpu.memory_space<vmem>>, vector<1x32xf32>,
    %c7_i32_63 = arith.constant 7 : i32
    %274 = arith.subi %c7_i32_63, %c4_i32 : i32
    %275 = arith.index_cast %274 : i32 to index
    %c32_64 = arith.constant 32 : index
    %276 = vector.load %arg16[%275, %c32_64] : memref<8x64xf32, #tpu.memory_space<vmem>>, vector<1x32xf32>
    tpu.vector_store %arg16[%275, %c32_64], %271 {strides = array<i32>} : memref<8x64xf32, #tpu.memory_space<vmem>>, vector<1x32xf32>,
    %277 = tpu.concatenate %268, %271 in 1 : vector<1x32xf32>, vector<1x32xf32> -> vector<1x64xf32>
    %c5_i32 = arith.constant 5 : i32
    %cst_65 = arith.constant dense<0.000000e+00> : vector<1x256xf32>
    %278 = tpu.matmul %277, %34, %cst_65 {dimension_numbers = #tpu.dot_dimension_numbers<[1], [0], [0], [1], [0, 0, 1, 1], [], []>} : vector<1x64xf32>, vector<64x256xf32>, vector<1x256xf32> -> vector<1x256xf32>
    %279 = vector.extract_strided_slice %278 {offsets = [0, 0], sizes = [1, 128], strides = [1, 1]} : vector<1x256xf32> to vector<1x128xf32>
    %280 = arith.index_cast %c5_i32 : i32 to index
    %c0_66 = arith.constant 0 : index
    %281 = vector.load %arg15[%280, %c0_66] : memref<8x256xf32, #tpu.memory_space<vmem>>, vector<1x128xf32>
    %282 = arith.addf %279, %281 : vector<1x128xf32>
    %283 = vector.extract_strided_slice %278 {offsets = [0, 128], sizes = [1, 128], strides = [1, 1]} : vector<1x256xf32> to vector<1x128xf32>
    %c7_i32_67 = arith.constant 7 : i32
    %284 = arith.subi %c7_i32_67, %c5_i32 : i32
    %285 = arith.index_cast %284 : i32 to index
    %c128_68 = arith.constant 128 : index
    %286 = vector.load %arg15[%285, %c128_68] : memref<8x256xf32, #tpu.memory_space<vmem>>, vector<1x128xf32>
    %287 = arith.addf %283, %286 : vector<1x128xf32>
    %288 = vector.extract_strided_slice %282 {offsets = [0, 0], sizes = [1, 96], strides = [1, 1]} : vector<1x128xf32> to vector<1x96xf32>
    %289 = arith.negf %288 : vector<1x96xf32>
    %290 = math.exp %289 : vector<1x96xf32>
    %cst_69 = arith.constant 1.000000e+00 : f32
    %291 = vector.broadcast %cst_69 : f32 to vector<1x96xf32>
    %292 = arith.addf %291, %290 : vector<1x96xf32>
    %293 = arith.divf %291, %292 : vector<1x96xf32>
    %294 = vector.extract_strided_slice %287 {offsets = [0, 0], sizes = [1, 96], strides = [1, 1]} : vector<1x128xf32> to vector<1x96xf32>
    %295 = arith.negf %294 : vector<1x96xf32>
    %296 = math.exp %295 : vector<1x96xf32>
    %cst_70 = arith.constant 1.000000e+00 : f32
    %297 = vector.broadcast %cst_70 : f32 to vector<1x96xf32>
    %298 = arith.addf %297, %296 : vector<1x96xf32>
    %299 = arith.divf %297, %298 : vector<1x96xf32>
    %300 = vector.extract_strided_slice %282 {offsets = [0, 96], sizes = [1, 32], strides = [1, 1]} : vector<1x128xf32> to vector<1x32xf32>
    %301 = math.tanh %300 : vector<1x32xf32>
    %302 = vector.extract_strided_slice %287 {offsets = [0, 96], sizes = [1, 32], strides = [1, 1]} : vector<1x128xf32> to vector<1x32xf32>
    %303 = math.tanh %302 : vector<1x32xf32>
    %304 = vector.extract_strided_slice %293 {offsets = [0, 32], sizes = [1, 32], strides = [1, 1]} : vector<1x96xf32> to vector<1x32xf32>
    %305 = arith.mulf %304, %260 : vector<1x32xf32>
    %306 = vector.extract_strided_slice %293 {offsets = [0, 0], sizes = [1, 32], strides = [1, 1]} : vector<1x96xf32> to vector<1x32xf32>
    %307 = arith.mulf %306, %301 : vector<1x32xf32>
    %308 = arith.addf %305, %307 : vector<1x32xf32>
    %309 = vector.extract_strided_slice %299 {offsets = [0, 32], sizes = [1, 32], strides = [1, 1]} : vector<1x96xf32> to vector<1x32xf32>
    %310 = arith.mulf %309, %265 : vector<1x32xf32>
    %311 = vector.extract_strided_slice %299 {offsets = [0, 0], sizes = [1, 32], strides = [1, 1]} : vector<1x96xf32> to vector<1x32xf32>
    %312 = arith.mulf %311, %303 : vector<1x32xf32>
    %313 = arith.addf %310, %312 : vector<1x32xf32>
    %314 = vector.extract_strided_slice %293 {offsets = [0, 64], sizes = [1, 32], strides = [1, 1]} : vector<1x96xf32> to vector<1x32xf32>
    %315 = math.tanh %308 : vector<1x32xf32>
    %316 = arith.mulf %314, %315 : vector<1x32xf32>
    %317 = vector.extract_strided_slice %299 {offsets = [0, 64], sizes = [1, 32], strides = [1, 1]} : vector<1x96xf32> to vector<1x32xf32>
    %318 = math.tanh %313 : vector<1x32xf32>
    %319 = arith.mulf %317, %318 : vector<1x32xf32>
    %320 = arith.index_cast %c5_i32 : i32 to index
    %c0_71 = arith.constant 0 : index
    %321 = vector.load %arg16[%320, %c0_71] : memref<8x64xf32, #tpu.memory_space<vmem>>, vector<1x32xf32>
    tpu.vector_store %arg16[%320, %c0_71], %316 {strides = array<i32>} : memref<8x64xf32, #tpu.memory_space<vmem>>, vector<1x32xf32>,
    %c7_i32_72 = arith.constant 7 : i32
    %322 = arith.subi %c7_i32_72, %c5_i32 : i32
    %323 = arith.index_cast %322 : i32 to index
    %c32_73 = arith.constant 32 : index
    %324 = vector.load %arg16[%323, %c32_73] : memref<8x64xf32, #tpu.memory_space<vmem>>, vector<1x32xf32>
    tpu.vector_store %arg16[%323, %c32_73], %319 {strides = array<i32>} : memref<8x64xf32, #tpu.memory_space<vmem>>, vector<1x32xf32>,
    %325 = tpu.concatenate %316, %319 in 1 : vector<1x32xf32>, vector<1x32xf32> -> vector<1x64xf32>
    %c6_i32 = arith.constant 6 : i32
    %cst_74 = arith.constant dense<0.000000e+00> : vector<1x256xf32>
    %326 = tpu.matmul %325, %34, %cst_74 {dimension_numbers = #tpu.dot_dimension_numbers<[1], [0], [0], [1], [0, 0, 1, 1], [], []>} : vector<1x64xf32>, vector<64x256xf32>, vector<1x256xf32> -> vector<1x256xf32>
    %327 = vector.extract_strided_slice %326 {offsets = [0, 0], sizes = [1, 128], strides = [1, 1]} : vector<1x256xf32> to vector<1x128xf32>
    %328 = arith.index_cast %c6_i32 : i32 to index
    %c0_75 = arith.constant 0 : index
    %329 = vector.load %arg15[%328, %c0_75] : memref<8x256xf32, #tpu.memory_space<vmem>>, vector<1x128xf32>
    %330 = arith.addf %327, %329 : vector<1x128xf32>
    %331 = vector.extract_strided_slice %326 {offsets = [0, 128], sizes = [1, 128], strides = [1, 1]} : vector<1x256xf32> to vector<1x128xf32>
    %c7_i32_76 = arith.constant 7 : i32
    %332 = arith.subi %c7_i32_76, %c6_i32 : i32
    %333 = arith.index_cast %332 : i32 to index
    %c128_77 = arith.constant 128 : index
    %334 = vector.load %arg15[%333, %c128_77] : memref<8x256xf32, #tpu.memory_space<vmem>>, vector<1x128xf32>
    %335 = arith.addf %331, %334 : vector<1x128xf32>
    %336 = vector.extract_strided_slice %330 {offsets = [0, 0], sizes = [1, 96], strides = [1, 1]} : vector<1x128xf32> to vector<1x96xf32>
    %337 = arith.negf %336 : vector<1x96xf32>
    %338 = math.exp %337 : vector<1x96xf32>
    %cst_78 = arith.constant 1.000000e+00 : f32
    %339 = vector.broadcast %cst_78 : f32 to vector<1x96xf32>
    %340 = arith.addf %339, %338 : vector<1x96xf32>
    %341 = arith.divf %339, %340 : vector<1x96xf32>
    %342 = vector.extract_strided_slice %335 {offsets = [0, 0], sizes = [1, 96], strides = [1, 1]} : vector<1x128xf32> to vector<1x96xf32>
    %343 = arith.negf %342 : vector<1x96xf32>
    %344 = math.exp %343 : vector<1x96xf32>
    %cst_79 = arith.constant 1.000000e+00 : f32
    %345 = vector.broadcast %cst_79 : f32 to vector<1x96xf32>
    %346 = arith.addf %345, %344 : vector<1x96xf32>
    %347 = arith.divf %345, %346 : vector<1x96xf32>
    %348 = vector.extract_strided_slice %330 {offsets = [0, 96], sizes = [1, 32], strides = [1, 1]} : vector<1x128xf32> to vector<1x32xf32>
    %349 = math.tanh %348 : vector<1x32xf32>
    %350 = vector.extract_strided_slice %335 {offsets = [0, 96], sizes = [1, 32], strides = [1, 1]} : vector<1x128xf32> to vector<1x32xf32>
    %351 = math.tanh %350 : vector<1x32xf32>
    %352 = vector.extract_strided_slice %341 {offsets = [0, 32], sizes = [1, 32], strides = [1, 1]} : vector<1x96xf32> to vector<1x32xf32>
    %353 = arith.mulf %352, %308 : vector<1x32xf32>
    %354 = vector.extract_strided_slice %341 {offsets = [0, 0], sizes = [1, 32], strides = [1, 1]} : vector<1x96xf32> to vector<1x32xf32>
    %355 = arith.mulf %354, %349 : vector<1x32xf32>
    %356 = arith.addf %353, %355 : vector<1x32xf32>
    %357 = vector.extract_strided_slice %347 {offsets = [0, 32], sizes = [1, 32], strides = [1, 1]} : vector<1x96xf32> to vector<1x32xf32>
    %358 = arith.mulf %357, %313 : vector<1x32xf32>
    %359 = vector.extract_strided_slice %347 {offsets = [0, 0], sizes = [1, 32], strides = [1, 1]} : vector<1x96xf32> to vector<1x32xf32>
    %360 = arith.mulf %359, %351 : vector<1x32xf32>
    %361 = arith.addf %358, %360 : vector<1x32xf32>
    %362 = vector.extract_strided_slice %341 {offsets = [0, 64], sizes = [1, 32], strides = [1, 1]} : vector<1x96xf32> to vector<1x32xf32>
    %363 = math.tanh %356 : vector<1x32xf32>
    %364 = arith.mulf %362, %363 : vector<1x32xf32>
    %365 = vector.extract_strided_slice %347 {offsets = [0, 64], sizes = [1, 32], strides = [1, 1]} : vector<1x96xf32> to vector<1x32xf32>
    %366 = math.tanh %361 : vector<1x32xf32>
    %367 = arith.mulf %365, %366 : vector<1x32xf32>
    %368 = arith.index_cast %c6_i32 : i32 to index
    %c0_80 = arith.constant 0 : index
    %369 = vector.load %arg16[%368, %c0_80] : memref<8x64xf32, #tpu.memory_space<vmem>>, vector<1x32xf32>
    tpu.vector_store %arg16[%368, %c0_80], %364 {strides = array<i32>} : memref<8x64xf32, #tpu.memory_space<vmem>>, vector<1x32xf32>,
    %c7_i32_81 = arith.constant 7 : i32
    %370 = arith.subi %c7_i32_81, %c6_i32 : i32
    %371 = arith.index_cast %370 : i32 to index
    %c32_82 = arith.constant 32 : index
    %372 = vector.load %arg16[%371, %c32_82] : memref<8x64xf32, #tpu.memory_space<vmem>>, vector<1x32xf32>
    tpu.vector_store %arg16[%371, %c32_82], %367 {strides = array<i32>} : memref<8x64xf32, #tpu.memory_space<vmem>>, vector<1x32xf32>,
    %373 = tpu.concatenate %364, %367 in 1 : vector<1x32xf32>, vector<1x32xf32> -> vector<1x64xf32>
    %c7_i32_83 = arith.constant 7 : i32
    %cst_84 = arith.constant dense<0.000000e+00> : vector<1x256xf32>
    %374 = tpu.matmul %373, %34, %cst_84 {dimension_numbers = #tpu.dot_dimension_numbers<[1], [0], [0], [1], [0, 0, 1, 1], [], []>} : vector<1x64xf32>, vector<64x256xf32>, vector<1x256xf32> -> vector<1x256xf32>
    %375 = vector.extract_strided_slice %374 {offsets = [0, 0], sizes = [1, 128], strides = [1, 1]} : vector<1x256xf32> to vector<1x128xf32>
    %376 = arith.index_cast %c7_i32_83 : i32 to index
    %c0_85 = arith.constant 0 : index
    %377 = vector.load %arg15[%376, %c0_85] : memref<8x256xf32, #tpu.memory_space<vmem>>, vector<1x128xf32>
    %378 = arith.addf %375, %377 : vector<1x128xf32>
    %379 = vector.extract_strided_slice %374 {offsets = [0, 128], sizes = [1, 128], strides = [1, 1]} : vector<1x256xf32> to vector<1x128xf32>
    %c7_i32_86 = arith.constant 7 : i32
    %380 = arith.subi %c7_i32_86, %c7_i32_83 : i32
    %381 = arith.index_cast %380 : i32 to index
    %c128_87 = arith.constant 128 : index
    %382 = vector.load %arg15[%381, %c128_87] : memref<8x256xf32, #tpu.memory_space<vmem>>, vector<1x128xf32>
    %383 = arith.addf %379, %382 : vector<1x128xf32>
    %384 = vector.extract_strided_slice %378 {offsets = [0, 0], sizes = [1, 96], strides = [1, 1]} : vector<1x128xf32> to vector<1x96xf32>
    %385 = arith.negf %384 : vector<1x96xf32>
    %386 = math.exp %385 : vector<1x96xf32>
    %cst_88 = arith.constant 1.000000e+00 : f32
    %387 = vector.broadcast %cst_88 : f32 to vector<1x96xf32>
    %388 = arith.addf %387, %386 : vector<1x96xf32>
    %389 = arith.divf %387, %388 : vector<1x96xf32>
    %390 = vector.extract_strided_slice %383 {offsets = [0, 0], sizes = [1, 96], strides = [1, 1]} : vector<1x128xf32> to vector<1x96xf32>
    %391 = arith.negf %390 : vector<1x96xf32>
    %392 = math.exp %391 : vector<1x96xf32>
    %cst_89 = arith.constant 1.000000e+00 : f32
    %393 = vector.broadcast %cst_89 : f32 to vector<1x96xf32>
    %394 = arith.addf %393, %392 : vector<1x96xf32>
    %395 = arith.divf %393, %394 : vector<1x96xf32>
    %396 = vector.extract_strided_slice %378 {offsets = [0, 96], sizes = [1, 32], strides = [1, 1]} : vector<1x128xf32> to vector<1x32xf32>
    %397 = math.tanh %396 : vector<1x32xf32>
    %398 = vector.extract_strided_slice %383 {offsets = [0, 96], sizes = [1, 32], strides = [1, 1]} : vector<1x128xf32> to vector<1x32xf32>
    %399 = math.tanh %398 : vector<1x32xf32>
    %400 = vector.extract_strided_slice %389 {offsets = [0, 32], sizes = [1, 32], strides = [1, 1]} : vector<1x96xf32> to vector<1x32xf32>
    %401 = arith.mulf %400, %356 : vector<1x32xf32>
    %402 = vector.extract_strided_slice %389 {offsets = [0, 0], sizes = [1, 32], strides = [1, 1]} : vector<1x96xf32> to vector<1x32xf32>
    %403 = arith.mulf %402, %397 : vector<1x32xf32>
    %404 = arith.addf %401, %403 : vector<1x32xf32>
    %405 = vector.extract_strided_slice %395 {offsets = [0, 32], sizes = [1, 32], strides = [1, 1]} : vector<1x96xf32> to vector<1x32xf32>
    %406 = arith.mulf %405, %361 : vector<1x32xf32>
    %407 = vector.extract_strided_slice %395 {offsets = [0, 0], sizes = [1, 32], strides = [1, 1]} : vector<1x96xf32> to vector<1x32xf32>
    %408 = arith.mulf %407, %399 : vector<1x32xf32>
    %409 = arith.addf %406, %408 : vector<1x32xf32>
    %410 = vector.extract_strided_slice %389 {offsets = [0, 64], sizes = [1, 32], strides = [1, 1]} : vector<1x96xf32> to vector<1x32xf32>
    %411 = math.tanh %404 : vector<1x32xf32>
    %412 = arith.mulf %410, %411 : vector<1x32xf32>
    %413 = vector.extract_strided_slice %395 {offsets = [0, 64], sizes = [1, 32], strides = [1, 1]} : vector<1x96xf32> to vector<1x32xf32>
    %414 = math.tanh %409 : vector<1x32xf32>
    %415 = arith.mulf %413, %414 : vector<1x32xf32>
    %416 = arith.index_cast %c7_i32_83 : i32 to index
    %c0_90 = arith.constant 0 : index
    %417 = vector.load %arg16[%416, %c0_90] : memref<8x64xf32, #tpu.memory_space<vmem>>, vector<1x32xf32>
    tpu.vector_store %arg16[%416, %c0_90], %412 {strides = array<i32>} : memref<8x64xf32, #tpu.memory_space<vmem>>, vector<1x32xf32>,
    %c7_i32_91 = arith.constant 7 : i32
    %418 = arith.subi %c7_i32_91, %c7_i32_83 : i32
    %419 = arith.index_cast %418 : i32 to index
    %c32_92 = arith.constant 32 : index
    %420 = vector.load %arg16[%419, %c32_92] : memref<8x64xf32, #tpu.memory_space<vmem>>, vector<1x32xf32>
    tpu.vector_store %arg16[%419, %c32_92], %415 {strides = array<i32>} : memref<8x64xf32, #tpu.memory_space<vmem>>, vector<1x32xf32>,
    %421 = tpu.concatenate %412, %415 in 1 : vector<1x32xf32>, vector<1x32xf32> -> vector<1x64xf32>
    %c8_i32 = arith.constant 8 : i32
    %c0_93 = arith.constant 0 : index
    %c0_94 = arith.constant 0 : index
    %422 = vector.load %arg16[%c0_93, %c0_94] : memref<8x64xf32, #tpu.memory_space<vmem>>, vector<8x64xf32>
    %c0_95 = arith.constant 0 : index
    %c0_96 = arith.constant 0 : index
    %423 = vector.load %arg7[%c0_95, %c0_96] : memref<64x256xf32, #tpu.memory_space<vmem>>, vector<64x256xf32>
    %cst_97 = arith.constant dense<0.000000e+00> : vector<8x256xf32>
    %424 = tpu.matmul %422, %423, %cst_97 {dimension_numbers = #tpu.dot_dimension_numbers<[1], [0], [0], [1], [0, 0, 1, 1], [], []>} : vector<8x64xf32>, vector<64x256xf32>, vector<8x256xf32> -> vector<8x256xf32>
    %c0_98 = arith.constant 0 : index
    %c0_99 = arith.constant 0 : index
    %425 = vector.load %arg8[%c0_98, %c0_99] : memref<1x256xf32, #tpu.memory_space<vmem>>, vector<1x256xf32>
    %426 = vector.broadcast %425 : vector<1x256xf32> to vector<8x256xf32>
    %427 = arith.addf %424, %426 : vector<8x256xf32>
    %c0_100 = arith.constant 0 : index
    %c0_101 = arith.constant 0 : index
    %428 = vector.load %arg15[%c0_100, %c0_101] : memref<8x256xf32, #tpu.memory_space<vmem>>, vector<8x256xf32>
    tpu.vector_store %arg15[%c0_100, %c0_101], %427 {strides = array<i32>} : memref<8x256xf32, #tpu.memory_space<vmem>>, vector<8x256xf32>,
    %c0_102 = arith.constant 0 : index
    %c0_103 = arith.constant 0 : index
    %429 = vector.load %arg9[%c0_102, %c0_103] : memref<64x256xf32, #tpu.memory_space<vmem>>, vector<64x256xf32>
    %cst_104 = arith.constant 0.000000e+00 : f32
    %430 = vector.broadcast %cst_104 : f32 to vector<1x64xf32>
    %cst_105 = arith.constant 0.000000e+00 : f32
    %431 = vector.broadcast %cst_105 : f32 to vector<1x32xf32>
    %cst_106 = arith.constant 0.000000e+00 : f32
    %432 = vector.broadcast %cst_106 : f32 to vector<1x32xf32>
    %c0_i32_107 = arith.constant 0 : i32
    %cst_108 = arith.constant dense<0.000000e+00> : vector<1x256xf32>
    %433 = tpu.matmul %430, %429, %cst_108 {dimension_numbers = #tpu.dot_dimension_numbers<[1], [0], [0], [1], [0, 0, 1, 1], [], []>} : vector<1x64xf32>, vector<64x256xf32>, vector<1x256xf32> -> vector<1x256xf32>
    %434 = vector.extract_strided_slice %433 {offsets = [0, 0], sizes = [1, 128], strides = [1, 1]} : vector<1x256xf32> to vector<1x128xf32>
    %435 = arith.index_cast %c0_i32_107 : i32 to index
    %c0_109 = arith.constant 0 : index
    %436 = vector.load %arg15[%435, %c0_109] : memref<8x256xf32, #tpu.memory_space<vmem>>, vector<1x128xf32>
    %437 = arith.addf %434, %436 : vector<1x128xf32>
    %438 = vector.extract_strided_slice %433 {offsets = [0, 128], sizes = [1, 128], strides = [1, 1]} : vector<1x256xf32> to vector<1x128xf32>
    %c7_i32_110 = arith.constant 7 : i32
    %439 = arith.subi %c7_i32_110, %c0_i32_107 : i32
    %440 = arith.index_cast %439 : i32 to index
    %c128_111 = arith.constant 128 : index
    %441 = vector.load %arg15[%440, %c128_111] : memref<8x256xf32, #tpu.memory_space<vmem>>, vector<1x128xf32>
    %442 = arith.addf %438, %441 : vector<1x128xf32>
    %443 = vector.extract_strided_slice %437 {offsets = [0, 0], sizes = [1, 96], strides = [1, 1]} : vector<1x128xf32> to vector<1x96xf32>
    %444 = arith.negf %443 : vector<1x96xf32>
    %445 = math.exp %444 : vector<1x96xf32>
    %cst_112 = arith.constant 1.000000e+00 : f32
    %446 = vector.broadcast %cst_112 : f32 to vector<1x96xf32>
    %447 = arith.addf %446, %445 : vector<1x96xf32>
    %448 = arith.divf %446, %447 : vector<1x96xf32>
    %449 = vector.extract_strided_slice %442 {offsets = [0, 0], sizes = [1, 96], strides = [1, 1]} : vector<1x128xf32> to vector<1x96xf32>
    %450 = arith.negf %449 : vector<1x96xf32>
    %451 = math.exp %450 : vector<1x96xf32>
    %cst_113 = arith.constant 1.000000e+00 : f32
    %452 = vector.broadcast %cst_113 : f32 to vector<1x96xf32>
    %453 = arith.addf %452, %451 : vector<1x96xf32>
    %454 = arith.divf %452, %453 : vector<1x96xf32>
    %455 = vector.extract_strided_slice %437 {offsets = [0, 96], sizes = [1, 32], strides = [1, 1]} : vector<1x128xf32> to vector<1x32xf32>
    %456 = math.tanh %455 : vector<1x32xf32>
    %457 = vector.extract_strided_slice %442 {offsets = [0, 96], sizes = [1, 32], strides = [1, 1]} : vector<1x128xf32> to vector<1x32xf32>
    %458 = math.tanh %457 : vector<1x32xf32>
    %459 = vector.extract_strided_slice %448 {offsets = [0, 32], sizes = [1, 32], strides = [1, 1]} : vector<1x96xf32> to vector<1x32xf32>
    %460 = arith.mulf %459, %431 : vector<1x32xf32>
    %461 = vector.extract_strided_slice %448 {offsets = [0, 0], sizes = [1, 32], strides = [1, 1]} : vector<1x96xf32> to vector<1x32xf32>
    %462 = arith.mulf %461, %456 : vector<1x32xf32>
    %463 = arith.addf %460, %462 : vector<1x32xf32>
    %464 = vector.extract_strided_slice %454 {offsets = [0, 32], sizes = [1, 32], strides = [1, 1]} : vector<1x96xf32> to vector<1x32xf32>
    %465 = arith.mulf %464, %432 : vector<1x32xf32>
    %466 = vector.extract_strided_slice %454 {offsets = [0, 0], sizes = [1, 32], strides = [1, 1]} : vector<1x96xf32> to vector<1x32xf32>
    %467 = arith.mulf %466, %458 : vector<1x32xf32>
    %468 = arith.addf %465, %467 : vector<1x32xf32>
    %469 = vector.extract_strided_slice %448 {offsets = [0, 64], sizes = [1, 32], strides = [1, 1]} : vector<1x96xf32> to vector<1x32xf32>
    %470 = math.tanh %463 : vector<1x32xf32>
    %471 = arith.mulf %469, %470 : vector<1x32xf32>
    %472 = vector.extract_strided_slice %454 {offsets = [0, 64], sizes = [1, 32], strides = [1, 1]} : vector<1x96xf32> to vector<1x32xf32>
    %473 = math.tanh %468 : vector<1x32xf32>
    %474 = arith.mulf %472, %473 : vector<1x32xf32>
    %475 = arith.index_cast %c0_i32_107 : i32 to index
    %c0_114 = arith.constant 0 : index
    %476 = vector.load %arg16[%475, %c0_114] : memref<8x64xf32, #tpu.memory_space<vmem>>, vector<1x32xf32>
    tpu.vector_store %arg16[%475, %c0_114], %471 {strides = array<i32>} : memref<8x64xf32, #tpu.memory_space<vmem>>, vector<1x32xf32>,
    %c7_i32_115 = arith.constant 7 : i32
    %477 = arith.subi %c7_i32_115, %c0_i32_107 : i32
    %478 = arith.index_cast %477 : i32 to index
    %c32_116 = arith.constant 32 : index
    %479 = vector.load %arg16[%478, %c32_116] : memref<8x64xf32, #tpu.memory_space<vmem>>, vector<1x32xf32>
    tpu.vector_store %arg16[%478, %c32_116], %474 {strides = array<i32>} : memref<8x64xf32, #tpu.memory_space<vmem>>, vector<1x32xf32>,
    %480 = tpu.concatenate %471, %474 in 1 : vector<1x32xf32>, vector<1x32xf32> -> vector<1x64xf32>
    %c1_i32_117 = arith.constant 1 : i32
    %cst_118 = arith.constant dense<0.000000e+00> : vector<1x256xf32>
    %481 = tpu.matmul %480, %429, %cst_118 {dimension_numbers = #tpu.dot_dimension_numbers<[1], [0], [0], [1], [0, 0, 1, 1], [], []>} : vector<1x64xf32>, vector<64x256xf32>, vector<1x256xf32> -> vector<1x256xf32>
    %482 = vector.extract_strided_slice %481 {offsets = [0, 0], sizes = [1, 128], strides = [1, 1]} : vector<1x256xf32> to vector<1x128xf32>
    %483 = arith.index_cast %c1_i32_117 : i32 to index
    %c0_119 = arith.constant 0 : index
    %484 = vector.load %arg15[%483, %c0_119] : memref<8x256xf32, #tpu.memory_space<vmem>>, vector<1x128xf32>
    %485 = arith.addf %482, %484 : vector<1x128xf32>
    %486 = vector.extract_strided_slice %481 {offsets = [0, 128], sizes = [1, 128], strides = [1, 1]} : vector<1x256xf32> to vector<1x128xf32>
    %c7_i32_120 = arith.constant 7 : i32
    %487 = arith.subi %c7_i32_120, %c1_i32_117 : i32
    %488 = arith.index_cast %487 : i32 to index
    %c128_121 = arith.constant 128 : index
    %489 = vector.load %arg15[%488, %c128_121] : memref<8x256xf32, #tpu.memory_space<vmem>>, vector<1x128xf32>
    %490 = arith.addf %486, %489 : vector<1x128xf32>
    %491 = vector.extract_strided_slice %485 {offsets = [0, 0], sizes = [1, 96], strides = [1, 1]} : vector<1x128xf32> to vector<1x96xf32>
    %492 = arith.negf %491 : vector<1x96xf32>
    %493 = math.exp %492 : vector<1x96xf32>
    %cst_122 = arith.constant 1.000000e+00 : f32
    %494 = vector.broadcast %cst_122 : f32 to vector<1x96xf32>
    %495 = arith.addf %494, %493 : vector<1x96xf32>
    %496 = arith.divf %494, %495 : vector<1x96xf32>
    %497 = vector.extract_strided_slice %490 {offsets = [0, 0], sizes = [1, 96], strides = [1, 1]} : vector<1x128xf32> to vector<1x96xf32>
    %498 = arith.negf %497 : vector<1x96xf32>
    %499 = math.exp %498 : vector<1x96xf32>
    %cst_123 = arith.constant 1.000000e+00 : f32
    %500 = vector.broadcast %cst_123 : f32 to vector<1x96xf32>
    %501 = arith.addf %500, %499 : vector<1x96xf32>
    %502 = arith.divf %500, %501 : vector<1x96xf32>
    %503 = vector.extract_strided_slice %485 {offsets = [0, 96], sizes = [1, 32], strides = [1, 1]} : vector<1x128xf32> to vector<1x32xf32>
    %504 = math.tanh %503 : vector<1x32xf32>
    %505 = vector.extract_strided_slice %490 {offsets = [0, 96], sizes = [1, 32], strides = [1, 1]} : vector<1x128xf32> to vector<1x32xf32>
    %506 = math.tanh %505 : vector<1x32xf32>
    %507 = vector.extract_strided_slice %496 {offsets = [0, 32], sizes = [1, 32], strides = [1, 1]} : vector<1x96xf32> to vector<1x32xf32>
    %508 = arith.mulf %507, %463 : vector<1x32xf32>
    %509 = vector.extract_strided_slice %496 {offsets = [0, 0], sizes = [1, 32], strides = [1, 1]} : vector<1x96xf32> to vector<1x32xf32>
    %510 = arith.mulf %509, %504 : vector<1x32xf32>
    %511 = arith.addf %508, %510 : vector<1x32xf32>
    %512 = vector.extract_strided_slice %502 {offsets = [0, 32], sizes = [1, 32], strides = [1, 1]} : vector<1x96xf32> to vector<1x32xf32>
    %513 = arith.mulf %512, %468 : vector<1x32xf32>
    %514 = vector.extract_strided_slice %502 {offsets = [0, 0], sizes = [1, 32], strides = [1, 1]} : vector<1x96xf32> to vector<1x32xf32>
    %515 = arith.mulf %514, %506 : vector<1x32xf32>
    %516 = arith.addf %513, %515 : vector<1x32xf32>
    %517 = vector.extract_strided_slice %496 {offsets = [0, 64], sizes = [1, 32], strides = [1, 1]} : vector<1x96xf32> to vector<1x32xf32>
    %518 = math.tanh %511 : vector<1x32xf32>
    %519 = arith.mulf %517, %518 : vector<1x32xf32>
    %520 = vector.extract_strided_slice %502 {offsets = [0, 64], sizes = [1, 32], strides = [1, 1]} : vector<1x96xf32> to vector<1x32xf32>
    %521 = math.tanh %516 : vector<1x32xf32>
    %522 = arith.mulf %520, %521 : vector<1x32xf32>
    %523 = arith.index_cast %c1_i32_117 : i32 to index
    %c0_124 = arith.constant 0 : index
    %524 = vector.load %arg16[%523, %c0_124] : memref<8x64xf32, #tpu.memory_space<vmem>>, vector<1x32xf32>
    tpu.vector_store %arg16[%523, %c0_124], %519 {strides = array<i32>} : memref<8x64xf32, #tpu.memory_space<vmem>>, vector<1x32xf32>,
    %c7_i32_125 = arith.constant 7 : i32
    %525 = arith.subi %c7_i32_125, %c1_i32_117 : i32
    %526 = arith.index_cast %525 : i32 to index
    %c32_126 = arith.constant 32 : index
    %527 = vector.load %arg16[%526, %c32_126] : memref<8x64xf32, #tpu.memory_space<vmem>>, vector<1x32xf32>
    tpu.vector_store %arg16[%526, %c32_126], %522 {strides = array<i32>} : memref<8x64xf32, #tpu.memory_space<vmem>>, vector<1x32xf32>,
    %528 = tpu.concatenate %519, %522 in 1 : vector<1x32xf32>, vector<1x32xf32> -> vector<1x64xf32>
    %c2_i32_127 = arith.constant 2 : i32
    %cst_128 = arith.constant dense<0.000000e+00> : vector<1x256xf32>
    %529 = tpu.matmul %528, %429, %cst_128 {dimension_numbers = #tpu.dot_dimension_numbers<[1], [0], [0], [1], [0, 0, 1, 1], [], []>} : vector<1x64xf32>, vector<64x256xf32>, vector<1x256xf32> -> vector<1x256xf32>
    %530 = vector.extract_strided_slice %529 {offsets = [0, 0], sizes = [1, 128], strides = [1, 1]} : vector<1x256xf32> to vector<1x128xf32>
    %531 = arith.index_cast %c2_i32_127 : i32 to index
    %c0_129 = arith.constant 0 : index
    %532 = vector.load %arg15[%531, %c0_129] : memref<8x256xf32, #tpu.memory_space<vmem>>, vector<1x128xf32>
    %533 = arith.addf %530, %532 : vector<1x128xf32>
    %534 = vector.extract_strided_slice %529 {offsets = [0, 128], sizes = [1, 128], strides = [1, 1]} : vector<1x256xf32> to vector<1x128xf32>
    %c7_i32_130 = arith.constant 7 : i32
    %535 = arith.subi %c7_i32_130, %c2_i32_127 : i32
    %536 = arith.index_cast %535 : i32 to index
    %c128_131 = arith.constant 128 : index
    %537 = vector.load %arg15[%536, %c128_131] : memref<8x256xf32, #tpu.memory_space<vmem>>, vector<1x128xf32>
    %538 = arith.addf %534, %537 : vector<1x128xf32>
    %539 = vector.extract_strided_slice %533 {offsets = [0, 0], sizes = [1, 96], strides = [1, 1]} : vector<1x128xf32> to vector<1x96xf32>
    %540 = arith.negf %539 : vector<1x96xf32>
    %541 = math.exp %540 : vector<1x96xf32>
    %cst_132 = arith.constant 1.000000e+00 : f32
    %542 = vector.broadcast %cst_132 : f32 to vector<1x96xf32>
    %543 = arith.addf %542, %541 : vector<1x96xf32>
    %544 = arith.divf %542, %543 : vector<1x96xf32>
    %545 = vector.extract_strided_slice %538 {offsets = [0, 0], sizes = [1, 96], strides = [1, 1]} : vector<1x128xf32> to vector<1x96xf32>
    %546 = arith.negf %545 : vector<1x96xf32>
    %547 = math.exp %546 : vector<1x96xf32>
    %cst_133 = arith.constant 1.000000e+00 : f32
    %548 = vector.broadcast %cst_133 : f32 to vector<1x96xf32>
    %549 = arith.addf %548, %547 : vector<1x96xf32>
    %550 = arith.divf %548, %549 : vector<1x96xf32>
    %551 = vector.extract_strided_slice %533 {offsets = [0, 96], sizes = [1, 32], strides = [1, 1]} : vector<1x128xf32> to vector<1x32xf32>
    %552 = math.tanh %551 : vector<1x32xf32>
    %553 = vector.extract_strided_slice %538 {offsets = [0, 96], sizes = [1, 32], strides = [1, 1]} : vector<1x128xf32> to vector<1x32xf32>
    %554 = math.tanh %553 : vector<1x32xf32>
    %555 = vector.extract_strided_slice %544 {offsets = [0, 32], sizes = [1, 32], strides = [1, 1]} : vector<1x96xf32> to vector<1x32xf32>
    %556 = arith.mulf %555, %511 : vector<1x32xf32>
    %557 = vector.extract_strided_slice %544 {offsets = [0, 0], sizes = [1, 32], strides = [1, 1]} : vector<1x96xf32> to vector<1x32xf32>
    %558 = arith.mulf %557, %552 : vector<1x32xf32>
    %559 = arith.addf %556, %558 : vector<1x32xf32>
    %560 = vector.extract_strided_slice %550 {offsets = [0, 32], sizes = [1, 32], strides = [1, 1]} : vector<1x96xf32> to vector<1x32xf32>
    %561 = arith.mulf %560, %516 : vector<1x32xf32>
    %562 = vector.extract_strided_slice %550 {offsets = [0, 0], sizes = [1, 32], strides = [1, 1]} : vector<1x96xf32> to vector<1x32xf32>
    %563 = arith.mulf %562, %554 : vector<1x32xf32>
    %564 = arith.addf %561, %563 : vector<1x32xf32>
    %565 = vector.extract_strided_slice %544 {offsets = [0, 64], sizes = [1, 32], strides = [1, 1]} : vector<1x96xf32> to vector<1x32xf32>
    %566 = math.tanh %559 : vector<1x32xf32>
    %567 = arith.mulf %565, %566 : vector<1x32xf32>
    %568 = vector.extract_strided_slice %550 {offsets = [0, 64], sizes = [1, 32], strides = [1, 1]} : vector<1x96xf32> to vector<1x32xf32>
    %569 = math.tanh %564 : vector<1x32xf32>
    %570 = arith.mulf %568, %569 : vector<1x32xf32>
    %571 = arith.index_cast %c2_i32_127 : i32 to index
    %c0_134 = arith.constant 0 : index
    %572 = vector.load %arg16[%571, %c0_134] : memref<8x64xf32, #tpu.memory_space<vmem>>, vector<1x32xf32>
    tpu.vector_store %arg16[%571, %c0_134], %567 {strides = array<i32>} : memref<8x64xf32, #tpu.memory_space<vmem>>, vector<1x32xf32>,
    %c7_i32_135 = arith.constant 7 : i32
    %573 = arith.subi %c7_i32_135, %c2_i32_127 : i32
    %574 = arith.index_cast %573 : i32 to index
    %c32_136 = arith.constant 32 : index
    %575 = vector.load %arg16[%574, %c32_136] : memref<8x64xf32, #tpu.memory_space<vmem>>, vector<1x32xf32>
    tpu.vector_store %arg16[%574, %c32_136], %570 {strides = array<i32>} : memref<8x64xf32, #tpu.memory_space<vmem>>, vector<1x32xf32>,
    %576 = tpu.concatenate %567, %570 in 1 : vector<1x32xf32>, vector<1x32xf32> -> vector<1x64xf32>
    %c3_i32_137 = arith.constant 3 : i32
    %cst_138 = arith.constant dense<0.000000e+00> : vector<1x256xf32>
    %577 = tpu.matmul %576, %429, %cst_138 {dimension_numbers = #tpu.dot_dimension_numbers<[1], [0], [0], [1], [0, 0, 1, 1], [], []>} : vector<1x64xf32>, vector<64x256xf32>, vector<1x256xf32> -> vector<1x256xf32>
    %578 = vector.extract_strided_slice %577 {offsets = [0, 0], sizes = [1, 128], strides = [1, 1]} : vector<1x256xf32> to vector<1x128xf32>
    %579 = arith.index_cast %c3_i32_137 : i32 to index
    %c0_139 = arith.constant 0 : index
    %580 = vector.load %arg15[%579, %c0_139] : memref<8x256xf32, #tpu.memory_space<vmem>>, vector<1x128xf32>
    %581 = arith.addf %578, %580 : vector<1x128xf32>
    %582 = vector.extract_strided_slice %577 {offsets = [0, 128], sizes = [1, 128], strides = [1, 1]} : vector<1x256xf32> to vector<1x128xf32>
    %c7_i32_140 = arith.constant 7 : i32
    %583 = arith.subi %c7_i32_140, %c3_i32_137 : i32
    %584 = arith.index_cast %583 : i32 to index
    %c128_141 = arith.constant 128 : index
    %585 = vector.load %arg15[%584, %c128_141] : memref<8x256xf32, #tpu.memory_space<vmem>>, vector<1x128xf32>
    %586 = arith.addf %582, %585 : vector<1x128xf32>
    %587 = vector.extract_strided_slice %581 {offsets = [0, 0], sizes = [1, 96], strides = [1, 1]} : vector<1x128xf32> to vector<1x96xf32>
    %588 = arith.negf %587 : vector<1x96xf32>
    %589 = math.exp %588 : vector<1x96xf32>
    %cst_142 = arith.constant 1.000000e+00 : f32
    %590 = vector.broadcast %cst_142 : f32 to vector<1x96xf32>
    %591 = arith.addf %590, %589 : vector<1x96xf32>
    %592 = arith.divf %590, %591 : vector<1x96xf32>
    %593 = vector.extract_strided_slice %586 {offsets = [0, 0], sizes = [1, 96], strides = [1, 1]} : vector<1x128xf32> to vector<1x96xf32>
    %594 = arith.negf %593 : vector<1x96xf32>
    %595 = math.exp %594 : vector<1x96xf32>
    %cst_143 = arith.constant 1.000000e+00 : f32
    %596 = vector.broadcast %cst_143 : f32 to vector<1x96xf32>
    %597 = arith.addf %596, %595 : vector<1x96xf32>
    %598 = arith.divf %596, %597 : vector<1x96xf32>
    %599 = vector.extract_strided_slice %581 {offsets = [0, 96], sizes = [1, 32], strides = [1, 1]} : vector<1x128xf32> to vector<1x32xf32>
    %600 = math.tanh %599 : vector<1x32xf32>
    %601 = vector.extract_strided_slice %586 {offsets = [0, 96], sizes = [1, 32], strides = [1, 1]} : vector<1x128xf32> to vector<1x32xf32>
    %602 = math.tanh %601 : vector<1x32xf32>
    %603 = vector.extract_strided_slice %592 {offsets = [0, 32], sizes = [1, 32], strides = [1, 1]} : vector<1x96xf32> to vector<1x32xf32>
    %604 = arith.mulf %603, %559 : vector<1x32xf32>
    %605 = vector.extract_strided_slice %592 {offsets = [0, 0], sizes = [1, 32], strides = [1, 1]} : vector<1x96xf32> to vector<1x32xf32>
    %606 = arith.mulf %605, %600 : vector<1x32xf32>
    %607 = arith.addf %604, %606 : vector<1x32xf32>
    %608 = vector.extract_strided_slice %598 {offsets = [0, 32], sizes = [1, 32], strides = [1, 1]} : vector<1x96xf32> to vector<1x32xf32>
    %609 = arith.mulf %608, %564 : vector<1x32xf32>
    %610 = vector.extract_strided_slice %598 {offsets = [0, 0], sizes = [1, 32], strides = [1, 1]} : vector<1x96xf32> to vector<1x32xf32>
    %611 = arith.mulf %610, %602 : vector<1x32xf32>
    %612 = arith.addf %609, %611 : vector<1x32xf32>
    %613 = vector.extract_strided_slice %592 {offsets = [0, 64], sizes = [1, 32], strides = [1, 1]} : vector<1x96xf32> to vector<1x32xf32>
    %614 = math.tanh %607 : vector<1x32xf32>
    %615 = arith.mulf %613, %614 : vector<1x32xf32>
    %616 = vector.extract_strided_slice %598 {offsets = [0, 64], sizes = [1, 32], strides = [1, 1]} : vector<1x96xf32> to vector<1x32xf32>
    %617 = math.tanh %612 : vector<1x32xf32>
    %618 = arith.mulf %616, %617 : vector<1x32xf32>
    %619 = arith.index_cast %c3_i32_137 : i32 to index
    %c0_144 = arith.constant 0 : index
    %620 = vector.load %arg16[%619, %c0_144] : memref<8x64xf32, #tpu.memory_space<vmem>>, vector<1x32xf32>
    tpu.vector_store %arg16[%619, %c0_144], %615 {strides = array<i32>} : memref<8x64xf32, #tpu.memory_space<vmem>>, vector<1x32xf32>,
    %c7_i32_145 = arith.constant 7 : i32
    %621 = arith.subi %c7_i32_145, %c3_i32_137 : i32
    %622 = arith.index_cast %621 : i32 to index
    %c32_146 = arith.constant 32 : index
    %623 = vector.load %arg16[%622, %c32_146] : memref<8x64xf32, #tpu.memory_space<vmem>>, vector<1x32xf32>
    tpu.vector_store %arg16[%622, %c32_146], %618 {strides = array<i32>} : memref<8x64xf32, #tpu.memory_space<vmem>>, vector<1x32xf32>,
    %624 = tpu.concatenate %615, %618 in 1 : vector<1x32xf32>, vector<1x32xf32> -> vector<1x64xf32>
    %c4_i32_147 = arith.constant 4 : i32
    %cst_148 = arith.constant dense<0.000000e+00> : vector<1x256xf32>
    %625 = tpu.matmul %624, %429, %cst_148 {dimension_numbers = #tpu.dot_dimension_numbers<[1], [0], [0], [1], [0, 0, 1, 1], [], []>} : vector<1x64xf32>, vector<64x256xf32>, vector<1x256xf32> -> vector<1x256xf32>
    %626 = vector.extract_strided_slice %625 {offsets = [0, 0], sizes = [1, 128], strides = [1, 1]} : vector<1x256xf32> to vector<1x128xf32>
    %627 = arith.index_cast %c4_i32_147 : i32 to index
    %c0_149 = arith.constant 0 : index
    %628 = vector.load %arg15[%627, %c0_149] : memref<8x256xf32, #tpu.memory_space<vmem>>, vector<1x128xf32>
    %629 = arith.addf %626, %628 : vector<1x128xf32>
    %630 = vector.extract_strided_slice %625 {offsets = [0, 128], sizes = [1, 128], strides = [1, 1]} : vector<1x256xf32> to vector<1x128xf32>
    %c7_i32_150 = arith.constant 7 : i32
    %631 = arith.subi %c7_i32_150, %c4_i32_147 : i32
    %632 = arith.index_cast %631 : i32 to index
    %c128_151 = arith.constant 128 : index
    %633 = vector.load %arg15[%632, %c128_151] : memref<8x256xf32, #tpu.memory_space<vmem>>, vector<1x128xf32>
    %634 = arith.addf %630, %633 : vector<1x128xf32>
    %635 = vector.extract_strided_slice %629 {offsets = [0, 0], sizes = [1, 96], strides = [1, 1]} : vector<1x128xf32> to vector<1x96xf32>
    %636 = arith.negf %635 : vector<1x96xf32>
    %637 = math.exp %636 : vector<1x96xf32>
    %cst_152 = arith.constant 1.000000e+00 : f32
    %638 = vector.broadcast %cst_152 : f32 to vector<1x96xf32>
    %639 = arith.addf %638, %637 : vector<1x96xf32>
    %640 = arith.divf %638, %639 : vector<1x96xf32>
    %641 = vector.extract_strided_slice %634 {offsets = [0, 0], sizes = [1, 96], strides = [1, 1]} : vector<1x128xf32> to vector<1x96xf32>
    %642 = arith.negf %641 : vector<1x96xf32>
    %643 = math.exp %642 : vector<1x96xf32>
    %cst_153 = arith.constant 1.000000e+00 : f32
    %644 = vector.broadcast %cst_153 : f32 to vector<1x96xf32>
    %645 = arith.addf %644, %643 : vector<1x96xf32>
    %646 = arith.divf %644, %645 : vector<1x96xf32>
    %647 = vector.extract_strided_slice %629 {offsets = [0, 96], sizes = [1, 32], strides = [1, 1]} : vector<1x128xf32> to vector<1x32xf32>
    %648 = math.tanh %647 : vector<1x32xf32>
    %649 = vector.extract_strided_slice %634 {offsets = [0, 96], sizes = [1, 32], strides = [1, 1]} : vector<1x128xf32> to vector<1x32xf32>
    %650 = math.tanh %649 : vector<1x32xf32>
    %651 = vector.extract_strided_slice %640 {offsets = [0, 32], sizes = [1, 32], strides = [1, 1]} : vector<1x96xf32> to vector<1x32xf32>
    %652 = arith.mulf %651, %607 : vector<1x32xf32>
    %653 = vector.extract_strided_slice %640 {offsets = [0, 0], sizes = [1, 32], strides = [1, 1]} : vector<1x96xf32> to vector<1x32xf32>
    %654 = arith.mulf %653, %648 : vector<1x32xf32>
    %655 = arith.addf %652, %654 : vector<1x32xf32>
    %656 = vector.extract_strided_slice %646 {offsets = [0, 32], sizes = [1, 32], strides = [1, 1]} : vector<1x96xf32> to vector<1x32xf32>
    %657 = arith.mulf %656, %612 : vector<1x32xf32>
    %658 = vector.extract_strided_slice %646 {offsets = [0, 0], sizes = [1, 32], strides = [1, 1]} : vector<1x96xf32> to vector<1x32xf32>
    %659 = arith.mulf %658, %650 : vector<1x32xf32>
    %660 = arith.addf %657, %659 : vector<1x32xf32>
    %661 = vector.extract_strided_slice %640 {offsets = [0, 64], sizes = [1, 32], strides = [1, 1]} : vector<1x96xf32> to vector<1x32xf32>
    %662 = math.tanh %655 : vector<1x32xf32>
    %663 = arith.mulf %661, %662 : vector<1x32xf32>
    %664 = vector.extract_strided_slice %646 {offsets = [0, 64], sizes = [1, 32], strides = [1, 1]} : vector<1x96xf32> to vector<1x32xf32>
    %665 = math.tanh %660 : vector<1x32xf32>
    %666 = arith.mulf %664, %665 : vector<1x32xf32>
    %667 = arith.index_cast %c4_i32_147 : i32 to index
    %c0_154 = arith.constant 0 : index
    %668 = vector.load %arg16[%667, %c0_154] : memref<8x64xf32, #tpu.memory_space<vmem>>, vector<1x32xf32>
    tpu.vector_store %arg16[%667, %c0_154], %663 {strides = array<i32>} : memref<8x64xf32, #tpu.memory_space<vmem>>, vector<1x32xf32>,
    %c7_i32_155 = arith.constant 7 : i32
    %669 = arith.subi %c7_i32_155, %c4_i32_147 : i32
    %670 = arith.index_cast %669 : i32 to index
    %c32_156 = arith.constant 32 : index
    %671 = vector.load %arg16[%670, %c32_156] : memref<8x64xf32, #tpu.memory_space<vmem>>, vector<1x32xf32>
    tpu.vector_store %arg16[%670, %c32_156], %666 {strides = array<i32>} : memref<8x64xf32, #tpu.memory_space<vmem>>, vector<1x32xf32>,
    %672 = tpu.concatenate %663, %666 in 1 : vector<1x32xf32>, vector<1x32xf32> -> vector<1x64xf32>
    %c5_i32_157 = arith.constant 5 : i32
    %cst_158 = arith.constant dense<0.000000e+00> : vector<1x256xf32>
    %673 = tpu.matmul %672, %429, %cst_158 {dimension_numbers = #tpu.dot_dimension_numbers<[1], [0], [0], [1], [0, 0, 1, 1], [], []>} : vector<1x64xf32>, vector<64x256xf32>, vector<1x256xf32> -> vector<1x256xf32>
    %674 = vector.extract_strided_slice %673 {offsets = [0, 0], sizes = [1, 128], strides = [1, 1]} : vector<1x256xf32> to vector<1x128xf32>
    %675 = arith.index_cast %c5_i32_157 : i32 to index
    %c0_159 = arith.constant 0 : index
    %676 = vector.load %arg15[%675, %c0_159] : memref<8x256xf32, #tpu.memory_space<vmem>>, vector<1x128xf32>
    %677 = arith.addf %674, %676 : vector<1x128xf32>
    %678 = vector.extract_strided_slice %673 {offsets = [0, 128], sizes = [1, 128], strides = [1, 1]} : vector<1x256xf32> to vector<1x128xf32>
    %c7_i32_160 = arith.constant 7 : i32
    %679 = arith.subi %c7_i32_160, %c5_i32_157 : i32
    %680 = arith.index_cast %679 : i32 to index
    %c128_161 = arith.constant 128 : index
    %681 = vector.load %arg15[%680, %c128_161] : memref<8x256xf32, #tpu.memory_space<vmem>>, vector<1x128xf32>
    %682 = arith.addf %678, %681 : vector<1x128xf32>
    %683 = vector.extract_strided_slice %677 {offsets = [0, 0], sizes = [1, 96], strides = [1, 1]} : vector<1x128xf32> to vector<1x96xf32>
    %684 = arith.negf %683 : vector<1x96xf32>
    %685 = math.exp %684 : vector<1x96xf32>
    %cst_162 = arith.constant 1.000000e+00 : f32
    %686 = vector.broadcast %cst_162 : f32 to vector<1x96xf32>
    %687 = arith.addf %686, %685 : vector<1x96xf32>
    %688 = arith.divf %686, %687 : vector<1x96xf32>
    %689 = vector.extract_strided_slice %682 {offsets = [0, 0], sizes = [1, 96], strides = [1, 1]} : vector<1x128xf32> to vector<1x96xf32>
    %690 = arith.negf %689 : vector<1x96xf32>
    %691 = math.exp %690 : vector<1x96xf32>
    %cst_163 = arith.constant 1.000000e+00 : f32
    %692 = vector.broadcast %cst_163 : f32 to vector<1x96xf32>
    %693 = arith.addf %692, %691 : vector<1x96xf32>
    %694 = arith.divf %692, %693 : vector<1x96xf32>
    %695 = vector.extract_strided_slice %677 {offsets = [0, 96], sizes = [1, 32], strides = [1, 1]} : vector<1x128xf32> to vector<1x32xf32>
    %696 = math.tanh %695 : vector<1x32xf32>
    %697 = vector.extract_strided_slice %682 {offsets = [0, 96], sizes = [1, 32], strides = [1, 1]} : vector<1x128xf32> to vector<1x32xf32>
    %698 = math.tanh %697 : vector<1x32xf32>
    %699 = vector.extract_strided_slice %688 {offsets = [0, 32], sizes = [1, 32], strides = [1, 1]} : vector<1x96xf32> to vector<1x32xf32>
    %700 = arith.mulf %699, %655 : vector<1x32xf32>
    %701 = vector.extract_strided_slice %688 {offsets = [0, 0], sizes = [1, 32], strides = [1, 1]} : vector<1x96xf32> to vector<1x32xf32>
    %702 = arith.mulf %701, %696 : vector<1x32xf32>
    %703 = arith.addf %700, %702 : vector<1x32xf32>
    %704 = vector.extract_strided_slice %694 {offsets = [0, 32], sizes = [1, 32], strides = [1, 1]} : vector<1x96xf32> to vector<1x32xf32>
    %705 = arith.mulf %704, %660 : vector<1x32xf32>
    %706 = vector.extract_strided_slice %694 {offsets = [0, 0], sizes = [1, 32], strides = [1, 1]} : vector<1x96xf32> to vector<1x32xf32>
    %707 = arith.mulf %706, %698 : vector<1x32xf32>
    %708 = arith.addf %705, %707 : vector<1x32xf32>
    %709 = vector.extract_strided_slice %688 {offsets = [0, 64], sizes = [1, 32], strides = [1, 1]} : vector<1x96xf32> to vector<1x32xf32>
    %710 = math.tanh %703 : vector<1x32xf32>
    %711 = arith.mulf %709, %710 : vector<1x32xf32>
    %712 = vector.extract_strided_slice %694 {offsets = [0, 64], sizes = [1, 32], strides = [1, 1]} : vector<1x96xf32> to vector<1x32xf32>
    %713 = math.tanh %708 : vector<1x32xf32>
    %714 = arith.mulf %712, %713 : vector<1x32xf32>
    %715 = arith.index_cast %c5_i32_157 : i32 to index
    %c0_164 = arith.constant 0 : index
    %716 = vector.load %arg16[%715, %c0_164] : memref<8x64xf32, #tpu.memory_space<vmem>>, vector<1x32xf32>
    tpu.vector_store %arg16[%715, %c0_164], %711 {strides = array<i32>} : memref<8x64xf32, #tpu.memory_space<vmem>>, vector<1x32xf32>,
    %c7_i32_165 = arith.constant 7 : i32
    %717 = arith.subi %c7_i32_165, %c5_i32_157 : i32
    %718 = arith.index_cast %717 : i32 to index
    %c32_166 = arith.constant 32 : index
    %719 = vector.load %arg16[%718, %c32_166] : memref<8x64xf32, #tpu.memory_space<vmem>>, vector<1x32xf32>
    tpu.vector_store %arg16[%718, %c32_166], %714 {strides = array<i32>} : memref<8x64xf32, #tpu.memory_space<vmem>>, vector<1x32xf32>,
    %720 = tpu.concatenate %711, %714 in 1 : vector<1x32xf32>, vector<1x32xf32> -> vector<1x64xf32>
    %c6_i32_167 = arith.constant 6 : i32
    %cst_168 = arith.constant dense<0.000000e+00> : vector<1x256xf32>
    %721 = tpu.matmul %720, %429, %cst_168 {dimension_numbers = #tpu.dot_dimension_numbers<[1], [0], [0], [1], [0, 0, 1, 1], [], []>} : vector<1x64xf32>, vector<64x256xf32>, vector<1x256xf32> -> vector<1x256xf32>
    %722 = vector.extract_strided_slice %721 {offsets = [0, 0], sizes = [1, 128], strides = [1, 1]} : vector<1x256xf32> to vector<1x128xf32>
    %723 = arith.index_cast %c6_i32_167 : i32 to index
    %c0_169 = arith.constant 0 : index
    %724 = vector.load %arg15[%723, %c0_169] : memref<8x256xf32, #tpu.memory_space<vmem>>, vector<1x128xf32>
    %725 = arith.addf %722, %724 : vector<1x128xf32>
    %726 = vector.extract_strided_slice %721 {offsets = [0, 128], sizes = [1, 128], strides = [1, 1]} : vector<1x256xf32> to vector<1x128xf32>
    %c7_i32_170 = arith.constant 7 : i32
    %727 = arith.subi %c7_i32_170, %c6_i32_167 : i32
    %728 = arith.index_cast %727 : i32 to index
    %c128_171 = arith.constant 128 : index
    %729 = vector.load %arg15[%728, %c128_171] : memref<8x256xf32, #tpu.memory_space<vmem>>, vector<1x128xf32>
    %730 = arith.addf %726, %729 : vector<1x128xf32>
    %731 = vector.extract_strided_slice %725 {offsets = [0, 0], sizes = [1, 96], strides = [1, 1]} : vector<1x128xf32> to vector<1x96xf32>
    %732 = arith.negf %731 : vector<1x96xf32>
    %733 = math.exp %732 : vector<1x96xf32>
    %cst_172 = arith.constant 1.000000e+00 : f32
    %734 = vector.broadcast %cst_172 : f32 to vector<1x96xf32>
    %735 = arith.addf %734, %733 : vector<1x96xf32>
    %736 = arith.divf %734, %735 : vector<1x96xf32>
    %737 = vector.extract_strided_slice %730 {offsets = [0, 0], sizes = [1, 96], strides = [1, 1]} : vector<1x128xf32> to vector<1x96xf32>
    %738 = arith.negf %737 : vector<1x96xf32>
    %739 = math.exp %738 : vector<1x96xf32>
    %cst_173 = arith.constant 1.000000e+00 : f32
    %740 = vector.broadcast %cst_173 : f32 to vector<1x96xf32>
    %741 = arith.addf %740, %739 : vector<1x96xf32>
    %742 = arith.divf %740, %741 : vector<1x96xf32>
    %743 = vector.extract_strided_slice %725 {offsets = [0, 96], sizes = [1, 32], strides = [1, 1]} : vector<1x128xf32> to vector<1x32xf32>
    %744 = math.tanh %743 : vector<1x32xf32>
    %745 = vector.extract_strided_slice %730 {offsets = [0, 96], sizes = [1, 32], strides = [1, 1]} : vector<1x128xf32> to vector<1x32xf32>
    %746 = math.tanh %745 : vector<1x32xf32>
    %747 = vector.extract_strided_slice %736 {offsets = [0, 32], sizes = [1, 32], strides = [1, 1]} : vector<1x96xf32> to vector<1x32xf32>
    %748 = arith.mulf %747, %703 : vector<1x32xf32>
    %749 = vector.extract_strided_slice %736 {offsets = [0, 0], sizes = [1, 32], strides = [1, 1]} : vector<1x96xf32> to vector<1x32xf32>
    %750 = arith.mulf %749, %744 : vector<1x32xf32>
    %751 = arith.addf %748, %750 : vector<1x32xf32>
    %752 = vector.extract_strided_slice %742 {offsets = [0, 32], sizes = [1, 32], strides = [1, 1]} : vector<1x96xf32> to vector<1x32xf32>
    %753 = arith.mulf %752, %708 : vector<1x32xf32>
    %754 = vector.extract_strided_slice %742 {offsets = [0, 0], sizes = [1, 32], strides = [1, 1]} : vector<1x96xf32> to vector<1x32xf32>
    %755 = arith.mulf %754, %746 : vector<1x32xf32>
    %756 = arith.addf %753, %755 : vector<1x32xf32>
    %757 = vector.extract_strided_slice %736 {offsets = [0, 64], sizes = [1, 32], strides = [1, 1]} : vector<1x96xf32> to vector<1x32xf32>
    %758 = math.tanh %751 : vector<1x32xf32>
    %759 = arith.mulf %757, %758 : vector<1x32xf32>
    %760 = vector.extract_strided_slice %742 {offsets = [0, 64], sizes = [1, 32], strides = [1, 1]} : vector<1x96xf32> to vector<1x32xf32>
    %761 = math.tanh %756 : vector<1x32xf32>
    %762 = arith.mulf %760, %761 : vector<1x32xf32>
    %763 = arith.index_cast %c6_i32_167 : i32 to index
    %c0_174 = arith.constant 0 : index
    %764 = vector.load %arg16[%763, %c0_174] : memref<8x64xf32, #tpu.memory_space<vmem>>, vector<1x32xf32>
    tpu.vector_store %arg16[%763, %c0_174], %759 {strides = array<i32>} : memref<8x64xf32, #tpu.memory_space<vmem>>, vector<1x32xf32>,
    %c7_i32_175 = arith.constant 7 : i32
    %765 = arith.subi %c7_i32_175, %c6_i32_167 : i32
    %766 = arith.index_cast %765 : i32 to index
    %c32_176 = arith.constant 32 : index
    %767 = vector.load %arg16[%766, %c32_176] : memref<8x64xf32, #tpu.memory_space<vmem>>, vector<1x32xf32>
    tpu.vector_store %arg16[%766, %c32_176], %762 {strides = array<i32>} : memref<8x64xf32, #tpu.memory_space<vmem>>, vector<1x32xf32>,
    %768 = tpu.concatenate %759, %762 in 1 : vector<1x32xf32>, vector<1x32xf32> -> vector<1x64xf32>
    %c7_i32_177 = arith.constant 7 : i32
    %cst_178 = arith.constant dense<0.000000e+00> : vector<1x256xf32>
    %769 = tpu.matmul %768, %429, %cst_178 {dimension_numbers = #tpu.dot_dimension_numbers<[1], [0], [0], [1], [0, 0, 1, 1], [], []>} : vector<1x64xf32>, vector<64x256xf32>, vector<1x256xf32> -> vector<1x256xf32>
    %770 = vector.extract_strided_slice %769 {offsets = [0, 0], sizes = [1, 128], strides = [1, 1]} : vector<1x256xf32> to vector<1x128xf32>
    %771 = arith.index_cast %c7_i32_177 : i32 to index
    %c0_179 = arith.constant 0 : index
    %772 = vector.load %arg15[%771, %c0_179] : memref<8x256xf32, #tpu.memory_space<vmem>>, vector<1x128xf32>
    %773 = arith.addf %770, %772 : vector<1x128xf32>
    %774 = vector.extract_strided_slice %769 {offsets = [0, 128], sizes = [1, 128], strides = [1, 1]} : vector<1x256xf32> to vector<1x128xf32>
    %c7_i32_180 = arith.constant 7 : i32
    %775 = arith.subi %c7_i32_180, %c7_i32_177 : i32
    %776 = arith.index_cast %775 : i32 to index
    %c128_181 = arith.constant 128 : index
    %777 = vector.load %arg15[%776, %c128_181] : memref<8x256xf32, #tpu.memory_space<vmem>>, vector<1x128xf32>
    %778 = arith.addf %774, %777 : vector<1x128xf32>
    %779 = vector.extract_strided_slice %773 {offsets = [0, 0], sizes = [1, 96], strides = [1, 1]} : vector<1x128xf32> to vector<1x96xf32>
    %780 = arith.negf %779 : vector<1x96xf32>
    %781 = math.exp %780 : vector<1x96xf32>
    %cst_182 = arith.constant 1.000000e+00 : f32
    %782 = vector.broadcast %cst_182 : f32 to vector<1x96xf32>
    %783 = arith.addf %782, %781 : vector<1x96xf32>
    %784 = arith.divf %782, %783 : vector<1x96xf32>
    %785 = vector.extract_strided_slice %778 {offsets = [0, 0], sizes = [1, 96], strides = [1, 1]} : vector<1x128xf32> to vector<1x96xf32>
    %786 = arith.negf %785 : vector<1x96xf32>
    %787 = math.exp %786 : vector<1x96xf32>
    %cst_183 = arith.constant 1.000000e+00 : f32
    %788 = vector.broadcast %cst_183 : f32 to vector<1x96xf32>
    %789 = arith.addf %788, %787 : vector<1x96xf32>
    %790 = arith.divf %788, %789 : vector<1x96xf32>
    %791 = vector.extract_strided_slice %773 {offsets = [0, 96], sizes = [1, 32], strides = [1, 1]} : vector<1x128xf32> to vector<1x32xf32>
    %792 = math.tanh %791 : vector<1x32xf32>
    %793 = vector.extract_strided_slice %778 {offsets = [0, 96], sizes = [1, 32], strides = [1, 1]} : vector<1x128xf32> to vector<1x32xf32>
    %794 = math.tanh %793 : vector<1x32xf32>
    %795 = vector.extract_strided_slice %784 {offsets = [0, 32], sizes = [1, 32], strides = [1, 1]} : vector<1x96xf32> to vector<1x32xf32>
    %796 = arith.mulf %795, %751 : vector<1x32xf32>
    %797 = vector.extract_strided_slice %784 {offsets = [0, 0], sizes = [1, 32], strides = [1, 1]} : vector<1x96xf32> to vector<1x32xf32>
    %798 = arith.mulf %797, %792 : vector<1x32xf32>
    %799 = arith.addf %796, %798 : vector<1x32xf32>
    %800 = vector.extract_strided_slice %790 {offsets = [0, 32], sizes = [1, 32], strides = [1, 1]} : vector<1x96xf32> to vector<1x32xf32>
    %801 = arith.mulf %800, %756 : vector<1x32xf32>
    %802 = vector.extract_strided_slice %790 {offsets = [0, 0], sizes = [1, 32], strides = [1, 1]} : vector<1x96xf32> to vector<1x32xf32>
    %803 = arith.mulf %802, %794 : vector<1x32xf32>
    %804 = arith.addf %801, %803 : vector<1x32xf32>
    %805 = vector.extract_strided_slice %784 {offsets = [0, 64], sizes = [1, 32], strides = [1, 1]} : vector<1x96xf32> to vector<1x32xf32>
    %806 = math.tanh %799 : vector<1x32xf32>
    %807 = arith.mulf %805, %806 : vector<1x32xf32>
    %808 = vector.extract_strided_slice %790 {offsets = [0, 64], sizes = [1, 32], strides = [1, 1]} : vector<1x96xf32> to vector<1x32xf32>
    %809 = math.tanh %804 : vector<1x32xf32>
    %810 = arith.mulf %808, %809 : vector<1x32xf32>
    %811 = arith.index_cast %c7_i32_177 : i32 to index
    %c0_184 = arith.constant 0 : index
    %812 = vector.load %arg16[%811, %c0_184] : memref<8x64xf32, #tpu.memory_space<vmem>>, vector<1x32xf32>
    tpu.vector_store %arg16[%811, %c0_184], %807 {strides = array<i32>} : memref<8x64xf32, #tpu.memory_space<vmem>>, vector<1x32xf32>,
    %c7_i32_185 = arith.constant 7 : i32
    %813 = arith.subi %c7_i32_185, %c7_i32_177 : i32
    %814 = arith.index_cast %813 : i32 to index
    %c32_186 = arith.constant 32 : index
    %815 = vector.load %arg16[%814, %c32_186] : memref<8x64xf32, #tpu.memory_space<vmem>>, vector<1x32xf32>
    tpu.vector_store %arg16[%814, %c32_186], %810 {strides = array<i32>} : memref<8x64xf32, #tpu.memory_space<vmem>>, vector<1x32xf32>,
    %816 = tpu.concatenate %807, %810 in 1 : vector<1x32xf32>, vector<1x32xf32> -> vector<1x64xf32>
    %c8_i32_187 = arith.constant 8 : i32
    %c0_188 = arith.constant 0 : index
    %c0_189 = arith.constant 0 : index
    %817 = vector.load %arg16[%c0_188, %c0_189] : memref<8x64xf32, #tpu.memory_space<vmem>>, vector<8x64xf32>
    %c0_190 = arith.constant 0 : index
    %c0_191 = arith.constant 0 : index
    %818 = vector.load %arg10[%c0_190, %c0_191] : memref<64x16xf32, #tpu.memory_space<vmem>>, vector<64x16xf32>
    %cst_192 = arith.constant dense<0.000000e+00> : vector<8x16xf32>
    %819 = tpu.matmul %817, %818, %cst_192 {dimension_numbers = #tpu.dot_dimension_numbers<[1], [0], [0], [1], [0, 0, 1, 1], [], []>} : vector<8x64xf32>, vector<64x16xf32>, vector<8x16xf32> -> vector<8x16xf32>
    %c0_193 = arith.constant 0 : index
    %c0_194 = arith.constant 0 : index
    %820 = vector.load %arg11[%c0_193, %c0_194] : memref<1x16xf32, #tpu.memory_space<vmem>>, vector<1x16xf32>
    %821 = vector.broadcast %820 : vector<1x16xf32> to vector<8x16xf32>
    %822 = arith.addf %819, %821 : vector<8x16xf32>
    %cst_195 = arith.constant 0.000000e+00 : f32
    %823 = vector.broadcast %cst_195 : f32 to vector<8x16xf32>
    %824 = arith.cmpf ogt, %822, %823 : vector<8x16xf32>
    %cst_196 = arith.constant 0.00999999977 : f32
    %825 = vector.broadcast %cst_196 : f32 to vector<8x16xf32>
    %826 = arith.mulf %825, %822 : vector<8x16xf32>
    %827 = arith.select %824, %822, %826 : vector<8x16xi1>, vector<8x16xf32>
    %c0_197 = arith.constant 0 : index
    %c0_198 = arith.constant 0 : index
    %828 = vector.load %arg12[%c0_197, %c0_198] : memref<16x16xf32, #tpu.memory_space<vmem>>, vector<16x16xf32>
    %cst_199 = arith.constant dense<0.000000e+00> : vector<8x16xf32>
    %829 = tpu.matmul %827, %828, %cst_199 {dimension_numbers = #tpu.dot_dimension_numbers<[1], [0], [0], [1], [0, 0, 1, 1], [], []>} : vector<8x16xf32>, vector<16x16xf32>, vector<8x16xf32> -> vector<8x16xf32>
    %c0_200 = arith.constant 0 : index
    %c0_201 = arith.constant 0 : index
    %830 = vector.load %arg13[%c0_200, %c0_201] : memref<1x16xf32, #tpu.memory_space<vmem>>, vector<1x16xf32>
    %831 = vector.broadcast %830 : vector<1x16xf32> to vector<8x16xf32>
    %832 = arith.addf %829, %831 : vector<8x16xf32>
    %c0_202 = arith.constant 0 : index
    %c0_203 = arith.constant 0 : index
    %c0_204 = arith.constant 0 : index
    %833 = vector.load %arg14[%c0_202, %c0_203, %c0_204] : memref<1x8x16xf32, #tpu.memory_space<vmem>>, vector<1x8x16xf32>
    %834 = vector.shape_cast %833 : vector<1x8x16xf32> to vector<8x16xf32>
    %835 = vector.shape_cast %832 : vector<8x16xf32> to vector<1x8x16xf32>
    tpu.vector_store %arg14[%c0_202, %c0_203, %c0_204], %835 {strides = array<i32>} : memref<1x8x16xf32, #tpu.memory_space<vmem>>, vector<1x8x16xf32>,
    return
  }
  func.func @transform_0(%arg0: i32) -> (i32, i32, i32) {
    %c0_i32 = arith.constant 0 : i32
    %c0_i32_0 = arith.constant 0 : i32
    %c0_i32_1 = arith.constant 0 : i32
    return %arg0, %c0_i32, %c0_i32_0 : i32, i32, i32
  }
  func.func @transform_1(%arg0: i32) -> (i32, i32) {
    %c0_i32 = arith.constant 0 : i32
    %c0_i32_0 = arith.constant 0 : i32
    %c0_i32_1 = arith.constant 0 : i32
    return %c0_i32, %c0_i32_0 : i32, i32
  }
  func.func @transform_2(%arg0: i32) -> (i32, i32) {
    %c0_i32 = arith.constant 0 : i32
    %c0_i32_0 = arith.constant 0 : i32
    %c0_i32_1 = arith.constant 0 : i32
    return %c0_i32, %c0_i32_0 : i32, i32
  }
  func.func @transform_3(%arg0: i32) -> (i32, i32) {
    %c0_i32 = arith.constant 0 : i32
    %c0_i32_0 = arith.constant 0 : i32
    %c0_i32_1 = arith.constant 0 : i32
    return %c0_i32, %c0_i32_0 : i32, i32
  }
  func.func @transform_4(%arg0: i32) -> (i32, i32) {
    %c0_i32 = arith.constant 0 : i32
    %c0_i32_0 = arith.constant 0 : i32
    %c0_i32_1 = arith.constant 0 : i32
    return %c0_i32, %c0_i32_0 : i32, i32
  }
  func.func @transform_5(%arg0: i32) -> (i32, i32) {
    %c0_i32 = arith.constant 0 : i32
    %c0_i32_0 = arith.constant 0 : i32
    %c0_i32_1 = arith.constant 0 : i32
    return %c0_i32, %c0_i32_0 : i32, i32
  }
  func.func @transform_6(%arg0: i32) -> (i32, i32) {
    %c0_i32 = arith.constant 0 : i32
    %c0_i32_0 = arith.constant 0 : i32
    %c0_i32_1 = arith.constant 0 : i32
    return %c0_i32, %c0_i32_0 : i32, i32
  }
  func.func @transform_7(%arg0: i32) -> (i32, i32) {
    %c0_i32 = arith.constant 0 : i32
    %c0_i32_0 = arith.constant 0 : i32
    %c0_i32_1 = arith.constant 0 : i32
    return %c0_i32, %c0_i32_0 : i32, i32
  }
  func.func @transform_8(%arg0: i32) -> (i32, i32) {
    %c0_i32 = arith.constant 0 : i32
    %c0_i32_0 = arith.constant 0 : i32
    %c0_i32_1 = arith.constant 0 : i32
    return %c0_i32, %c0_i32_0 : i32, i32
  }
  func.func @transform_9(%arg0: i32) -> (i32, i32) {
    %c0_i32 = arith.constant 0 : i32
    %c0_i32_0 = arith.constant 0 : i32
    %c0_i32_1 = arith.constant 0 : i32
    return %c0_i32, %c0_i32_0 : i32, i32
  }
  func.func @transform_10(%arg0: i32) -> (i32, i32) {
    %c0_i32 = arith.constant 0 : i32
    %c0_i32_0 = arith.constant 0 : i32
    %c0_i32_1 = arith.constant 0 : i32
    return %c0_i32, %c0_i32_0 : i32, i32
  }
  func.func @transform_11(%arg0: i32) -> (i32, i32) {
    %c0_i32 = arith.constant 0 : i32
    %c0_i32_0 = arith.constant 0 : i32
    %c0_i32_1 = arith.constant 0 : i32
    return %c0_i32, %c0_i32_0 : i32, i32
  }
  func.func @transform_12(%arg0: i32) -> (i32, i32) {
    %c0_i32 = arith.constant 0 : i32
    %c0_i32_0 = arith.constant 0 : i32
    %c0_i32_1 = arith.constant 0 : i32
    return %c0_i32, %c0_i32_0 : i32, i32
  }
  func.func @transform_13(%arg0: i32) -> (i32, i32, i32) {
    %c0_i32 = arith.constant 0 : i32
    %c0_i32_0 = arith.constant 0 : i32
    %c0_i32_1 = arith.constant 0 : i32
    return %arg0, %c0_i32, %c0_i32_0 : i32, i32, i32
  }
}

</mosaic_0001>

<llo_original>
// kernel: rnn_forward.1
$region0: #{rnn_forward.1}
  #allocation0 [shape = 'u32[]', space=smem, size = 0x4, offset = 0x4, fixed_abs, tag = 'smem constant byte address 0x4 - core index']
  #allocation1 [shape = 'u32[144,128]{1,0:T(1,128)}', space=vmem, size = 0x12000, scoped, tag = 'internal scratch']
  #allocation2 [shape = 'f32[8,256]{1,0:T(8,128)}', space=vmem, size = 0x2000, scoped, tag = 'scratch operand']
  #allocation3 [shape = 'f32[8,64]{1,0:T(8,128)}', space=vmem, size = 0x1000, scoped, tag = 'scratch operand']
  %s0 = inlined_call_operand.vmem [shape: f32[2,8,32], index: 0, kind: input, shape index: {}]
  %s1 = inlined_call_operand.vmem [shape: f32[1,32], index: 1, kind: input, shape index: {}]
  %s2 = inlined_call_operand.vmem [shape: f32[1,32], index: 2, kind: input, shape index: {}]
  %s3 = inlined_call_operand.vmem [shape: f32[32,256], index: 3, kind: input, shape index: {}]
  %s4 = inlined_call_operand.vmem [shape: f32[1,256], index: 4, kind: input, shape index: {}]
  %s5 = inlined_call_operand.vmem [shape: f32[64,256], index: 5, kind: input, shape index: {}]
  %s6 = inlined_call_operand.vmem [shape: f32[64,256], index: 6, kind: input, shape index: {}]
  %s7 = inlined_call_operand.vmem [shape: f32[1,256], index: 7, kind: input, shape index: {}]
  %s8 = inlined_call_operand.vmem [shape: f32[64,256], index: 8, kind: input, shape index: {}]
  %s9 = inlined_call_operand.vmem [shape: f32[64,16], index: 9, kind: input, shape index: {}]
  %s10 = inlined_call_operand.vmem [shape: f32[1,16], index: 10, kind: input, shape index: {}]
  %s11 = inlined_call_operand.vmem [shape: f32[16,16], index: 11, kind: input, shape index: {}]
  %s12 = inlined_call_operand.vmem [shape: f32[1,16], index: 12, kind: input, shape index: {}]
  %s13 = inlined_call_operand.hbm [shape: f32[2,8,16], index: 13, kind: output, shape index: {}]
  %s14 = sld [smem:[#allocation0]]
  $region85: #{rnn_forward.1} parent=0
    _
  %s16 = ssub.s32 1, %s14
  %s17 = scalar_select 0, %s16, %s14
  $region1: #{rnn_forward.1} parent=0
    #allocation4 [shape = 'u8[8192]{0}', space=vmem, size = 0x2000, scoped, tag = 'output window, operand 0']
    #allocation5 [shape = 's32[2]{0}', space=sflag, size = 0x8, scoped, tag = 'scoped memory for rnn_forward.1']
    %18 = vsyncpa [#allocation5], 0
    %s19 = scalar_lea.sflag [#allocation5], 1
    %20 = vsyncpa %s19, 0
    loop: start=0, step=1, limit=4
    $region2: #{rnn_forward.1} parent=1 // loop_pre_header
      _
    $region3: #{rnn_forward.1} parent=1 // loop_header
      %s22 = sphi 0, %s26
      %p23 = scmp.ge.s32.totalorder %s22, 4
      %s32 = sphi 0, %s34
      %s35 = sphi 0, %s32
      %s36 = sphi 0, %s35
      %s52 = sphi 0, %s36
      %s56 = sphi 0, %s56
      %s58 = sphi 0, %s56
      %s59 = sphi 0, %s58
      %s73 = sphi 0, %s59
      %s77 = sphi 0, %s77
      %s79 = sphi 0, %s77
      %s80 = sphi 0, %s79
      %s94 = sphi 0, %s80
      %s98 = sphi 0, %s98
      %s100 = sphi 0, %s98
      %s101 = sphi 0, %s100
      %s115 = sphi 0, %s101
      %s119 = sphi 0, %s119
      %s121 = sphi 0, %s119
      %s122 = sphi 0, %s121
      %s136 = sphi 0, %s122
      %s140 = sphi 0, %s140
      %s142 = sphi 0, %s140
      %s143 = sphi 0, %s142
      %s157 = sphi 0, %s143
      %s161 = sphi 0, %s161
      %s163 = sphi 0, %s161
      %s164 = sphi 0, %s163
      %s178 = sphi 0, %s164
      %s182 = sphi 0, %s182
      %s184 = sphi 0, %s182
      %s185 = sphi 0, %s184
      %s199 = sphi 0, %s185
      %s203 = sphi 0, %s203
      %s205 = sphi 0, %s203
      %s206 = sphi 0, %s205
      %s220 = sphi 0, %s206
      %s224 = sphi 0, %s224
      %s226 = sphi 0, %s224
      %s227 = sphi 0, %s226
      %s241 = sphi 0, %s227
      %s245 = sphi 0, %s245
      %s247 = sphi 0, %s245
      %s248 = sphi 0, %s247
      %s262 = sphi 0, %s248
      %s266 = sphi 0, %s266
      %s268 = sphi 0, %s266
      %s269 = sphi 0, %s268
      %s283 = sphi 0, %s269
      %s287 = sphi 0, %s287
      %s289 = sphi 0, %s287
      %s290 = sphi 0, %s289
      %s304 = sphi 0, %s290
      %s310 = sphi 0, %s312
      %s313 = sphi 0, %s310
      %s314 = sphi 0, %s313
      %s330 = sphi 0, %s314
    $region4: #{rnn_forward.1} parent=1 // loop_header_branch
      %25 = sbr.rel (%p23) target = $region8
    $region5: #{rnn_forward.1} parent=1 // loop_body
      %s27 = ssub.s32 %s22, 1
      %s28 = ssub.s32 %s22, 2
      %s29 = sadd.s32 %s22, 1
      %s30 = ssub.s32 %s22, %s29
      %p31 = scmp.eq.s32.totalorder %s30, 0
      %s33 = sadd.s32 %s32, 1
      %s34 = scalar_select %p31, %s32, %s33
      %p37 = pneg %p31
      %p38 = scmp.eq.s32.totalorder %s22, 1
      %p39 = por %p37, %p38
      %p40 = scmp.ne.s32.totalorder %s32, %s35
      %p41 = scmp.eq.s32.totalorder %s22, 0
      %p42 = por %p40, %p41
      %p43 = scmp.ne.s32.totalorder %s32, %s35
      %p44 = scmp.eq.s32.totalorder %s27, 1
      %p45 = por %p43, %p44
      %p46 = scmp.ne.s32.totalorder %s35, %s36
      %p47 = scmp.eq.s32.totalorder %s27, 0
      %p48 = por %p46, %p47
      %p49 = scmp.ne.s32.totalorder %s35, %s36
      %p50 = scmp.eq.s32.totalorder %s28, 1
      %p51 = por %p49, %p50
      %p53 = scmp.ne.s32.totalorder %s36, %s52
      %p54 = scmp.eq.s32.totalorder %s28, 0
      %p55 = por %p53, %p54
      %s57 = sadd.s32 %s56, 1
      %p60 = scmp.eq.s32.totalorder %s22, 1
      %p61 = scmp.ne.s32.totalorder %s56, %s58
      %p62 = scmp.eq.s32.totalorder %s22, 0
      %p63 = por %p61, %p62
      %p64 = scmp.ne.s32.totalorder %s56, %s58
      %p65 = scmp.eq.s32.totalorder %s27, 1
      %p66 = por %p64, %p65
      %p67 = scmp.ne.s32.totalorder %s58, %s59
      %p68 = scmp.eq.s32.totalorder %s27, 0
      %p69 = por %p67, %p68
      %p70 = scmp.ne.s32.totalorder %s58, %s59
      %p71 = scmp.eq.s32.totalorder %s28, 1
      %p72 = por %p70, %p71
      %p74 = scmp.ne.s32.totalorder %s59, %s73
      %p75 = scmp.eq.s32.totalorder %s28, 0
      %p76 = por %p74, %p75
      %s78 = sadd.s32 %s77, 1
      %p81 = scmp.eq.s32.totalorder %s22, 1
      %p82 = scmp.ne.s32.totalorder %s77, %s79
      %p83 = scmp.eq.s32.totalorder %s22, 0
      %p84 = por %p82, %p83
      %p85 = scmp.ne.s32.totalorder %s77, %s79
      %p86 = scmp.eq.s32.totalorder %s27, 1
      %p87 = por %p85, %p86
      %p88 = scmp.ne.s32.totalorder %s79, %s80
      %p89 = scmp.eq.s32.totalorder %s27, 0
      %p90 = por %p88, %p89
      %p91 = scmp.ne.s32.totalorder %s79, %s80
      %p92 = scmp.eq.s32.totalorder %s28, 1
      %p93 = por %p91, %p92
      %p95 = scmp.ne.s32.totalorder %s80, %s94
      %p96 = scmp.eq.s32.totalorder %s28, 0
      %p97 = por %p95, %p96
      %s99 = sadd.s32 %s98, 1
      %p102 = scmp.eq.s32.totalorder %s22, 1
      %p103 = scmp.ne.s32.totalorder %s98, %s100
      %p104 = scmp.eq.s32.totalorder %s22, 0
      %p105 = por %p103, %p104
      %p106 = scmp.ne.s32.totalorder %s98, %s100
      %p107 = scmp.eq.s32.totalorder %s27, 1
      %p108 = por %p106, %p107
      %p109 = scmp.ne.s32.totalorder %s100, %s101
      %p110 = scmp.eq.s32.totalorder %s27, 0
      %p111 = por %p109, %p110
      %p112 = scmp.ne.s32.totalorder %s100, %s101
      %p113 = scmp.eq.s32.totalorder %s28, 1
      %p114 = por %p112, %p113
      %p116 = scmp.ne.s32.totalorder %s101, %s115
      %p117 = scmp.eq.s32.totalorder %s28, 0
      %p118 = por %p116, %p117
      %s120 = sadd.s32 %s119, 1
      %p123 = scmp.eq.s32.totalorder %s22, 1
      %p124 = scmp.ne.s32.totalorder %s119, %s121
      %p125 = scmp.eq.s32.totalorder %s22, 0
      %p126 = por %p124, %p125
      %p127 = scmp.ne.s32.totalorder %s119, %s121
      %p128 = scmp.eq.s32.totalorder %s27, 1
      %p129 = por %p127, %p128
      %p130 = scmp.ne.s32.totalorder %s121, %s122
      %p131 = scmp.eq.s32.totalorder %s27, 0
      %p132 = por %p130, %p131
      %p133 = scmp.ne.s32.totalorder %s121, %s122
      %p134 = scmp.eq.s32.totalorder %s28, 1
      %p135 = por %p133, %p134
      %p137 = scmp.ne.s32.totalorder %s122, %s136
      %p138 = scmp.eq.s32.totalorder %s28, 0
      %p139 = por %p137, %p138
      %s141 = sadd.s32 %s140, 1
      %p144 = scmp.eq.s32.totalorder %s22, 1
      %p145 = scmp.ne.s32.totalorder %s140, %s142
      %p146 = scmp.eq.s32.totalorder %s22, 0
      %p147 = por %p145, %p146
      %p148 = scmp.ne.s32.totalorder %s140, %s142
      %p149 = scmp.eq.s32.totalorder %s27, 1
      %p150 = por %p148, %p149
      %p151 = scmp.ne.s32.totalorder %s142, %s143
      %p152 = scmp.eq.s32.totalorder %s27, 0
      %p153 = por %p151, %p152
      %p154 = scmp.ne.s32.totalorder %s142, %s143
      %p155 = scmp.eq.s32.totalorder %s28, 1
      %p156 = por %p154, %p155
      %p158 = scmp.ne.s32.totalorder %s143, %s157
      %p159 = scmp.eq.s32.totalorder %s28, 0
      %p160 = por %p158, %p159
      %s162 = sadd.s32 %s161, 1
      %p165 = scmp.eq.s32.totalorder %s22, 1
      %p166 = scmp.ne.s32.totalorder %s161, %s163
      %p167 = scmp.eq.s32.totalorder %s22, 0
      %p168 = por %p166, %p167
      %p169 = scmp.ne.s32.totalorder %s161, %s163
      %p170 = scmp.eq.s32.totalorder %s27, 1
      %p171 = por %p169, %p170
      %p172 = scmp.ne.s32.totalorder %s163, %s164
      %p173 = scmp.eq.s32.totalorder %s27, 0
      %p174 = por %p172, %p173
      %p175 = scmp.ne.s32.totalorder %s163, %s164
      %p176 = scmp.eq.s32.totalorder %s28, 1
      %p177 = por %p175, %p176
      %p179 = scmp.ne.s32.totalorder %s164, %s178
      %p180 = scmp.eq.s32.totalorder %s28, 0
      %p181 = por %p179, %p180
      %s183 = sadd.s32 %s182, 1
      %p186 = scmp.eq.s32.totalorder %s22, 1
      %p187 = scmp.ne.s32.totalorder %s182, %s184
      %p188 = scmp.eq.s32.totalorder %s22, 0
      %p189 = por %p187, %p188
      %p190 = scmp.ne.s32.totalorder %s182, %s184
      %p191 = scmp.eq.s32.totalorder %s27, 1
      %p192 = por %p190, %p191
      %p193 = scmp.ne.s32.totalorder %s184, %s185
      %p194 = scmp.eq.s32.totalorder %s27, 0
      %p195 = por %p193, %p194
      %p196 = scmp.ne.s32.totalorder %s184, %s185
      %p197 = scmp.eq.s32.totalorder %s28, 1
      %p198 = por %p196, %p197
      %p200 = scmp.ne.s32.totalorder %s185, %s199
      %p201 = scmp.eq.s32.totalorder %s28, 0
      %p202 = por %p200, %p201
      %s204 = sadd.s32 %s203, 1
      %p207 = scmp.eq.s32.totalorder %s22, 1
      %p208 = scmp.ne.s32.totalorder %s203, %s205
      %p209 = scmp.eq.s32.totalorder %s22, 0
      %p210 = por %p208, %p209
      %p211 = scmp.ne.s32.totalorder %s203, %s205
      %p212 = scmp.eq.s32.totalorder %s27, 1
      %p213 = por %p211, %p212
      %p214 = scmp.ne.s32.totalorder %s205, %s206
      %p215 = scmp.eq.s32.totalorder %s27, 0
      %p216 = por %p214, %p215
      %p217 = scmp.ne.s32.totalorder %s205, %s206
      %p218 = scmp.eq.s32.totalorder %s28, 1
      %p219 = por %p217, %p218
      %p221 = scmp.ne.s32.totalorder %s206, %s220
      %p222 = scmp.eq.s32.totalorder %s28, 0
      %p223 = por %p221, %p222
      %s225 = sadd.s32 %s224, 1
      %p228 = scmp.eq.s32.totalorder %s22, 1
      %p229 = scmp.ne.s32.totalorder %s224, %s226
      %p230 = scmp.eq.s32.totalorder %s22, 0
      %p231 = por %p229, %p230
      %p232 = scmp.ne.s32.totalorder %s224, %s226
      %p233 = scmp.eq.s32.totalorder %s27, 1
      %p234 = por %p232, %p233
      %p235 = scmp.ne.s32.totalorder %s226, %s227
      %p236 = scmp.eq.s32.totalorder %s27, 0
      %p237 = por %p235, %p236
      %p238 = scmp.ne.s32.totalorder %s226, %s227
      %p239 = scmp.eq.s32.totalorder %s28, 1
      %p240 = por %p238, %p239
      %p242 = scmp.ne.s32.totalorder %s227, %s241
      %p243 = scmp.eq.s32.totalorder %s28, 0
      %p244 = por %p242, %p243
      %s246 = sadd.s32 %s245, 1
      %p249 = scmp.eq.s32.totalorder %s22, 1
      %p250 = scmp.ne.s32.totalorder %s245, %s247
      %p251 = scmp.eq.s32.totalorder %s22, 0
      %p252 = por %p250, %p251
      %p253 = scmp.ne.s32.totalorder %s245, %s247
      %p254 = scmp.eq.s32.totalorder %s27, 1
      %p255 = por %p253, %p254
      %p256 = scmp.ne.s32.totalorder %s247, %s248
      %p257 = scmp.eq.s32.totalorder %s27, 0
      %p258 = por %p256, %p257
      %p259 = scmp.ne.s32.totalorder %s247, %s248
      %p260 = scmp.eq.s32.totalorder %s28, 1
      %p261 = por %p259, %p260
      %p263 = scmp.ne.s32.totalorder %s248, %s262
      %p264 = scmp.eq.s32.totalorder %s28, 0
      %p265 = por %p263, %p264
      %s267 = sadd.s32 %s266, 1
      %p270 = scmp.eq.s32.totalorder %s22, 1
      %p271 = scmp.ne.s32.totalorder %s266, %s268
      %p272 = scmp.eq.s32.totalorder %s22, 0
      %p273 = por %p271, %p272
      %p274 = scmp.ne.s32.totalorder %s266, %s268
      %p275 = scmp.eq.s32.totalorder %s27, 1
      %p276 = por %p274, %p275
      %p277 = scmp.ne.s32.totalorder %s268, %s269
      %p278 = scmp.eq.s32.totalorder %s27, 0
      %p279 = por %p277, %p278
      %p280 = scmp.ne.s32.totalorder %s268, %s269
      %p281 = scmp.eq.s32.totalorder %s28, 1
      %p282 = por %p280, %p281
      %p284 = scmp.ne.s32.totalorder %s269, %s283
      %p285 = scmp.eq.s32.totalorder %s28, 0
      %p286 = por %p284, %p285
      %s288 = sadd.s32 %s287, 1
      %p291 = scmp.eq.s32.totalorder %s22, 1
      %p292 = scmp.ne.s32.totalorder %s287, %s289
      %p293 = scmp.eq.s32.totalorder %s22, 0
      %p294 = por %p292, %p293
      %p295 = scmp.ne.s32.totalorder %s287, %s289
      %p296 = scmp.eq.s32.totalorder %s27, 1
      %p297 = por %p295, %p296
      %p298 = scmp.ne.s32.totalorder %s289, %s290
      %p299 = scmp.eq.s32.totalorder %s27, 0
      %p300 = por %p298, %p299
      %p301 = scmp.ne.s32.totalorder %s289, %s290
      %p302 = scmp.eq.s32.totalorder %s28, 1
      %p303 = por %p301, %p302
      %p305 = scmp.ne.s32.totalorder %s290, %s304
      %p306 = scmp.eq.s32.totalorder %s28, 0
      %p307 = por %p305, %p306
      %s308 = ssub.s32 %s22, %s29
      %p309 = scmp.eq.s32.totalorder %s308, 0
      %s311 = sadd.s32 %s310, 1
      %s312 = scalar_select %p309, %s310, %s311
      %p315 = pneg %p309
      %p316 = scmp.eq.s32.totalorder %s22, 1
      %p317 = por %p315, %p316
      %p318 = scmp.ne.s32.totalorder %s310, %s313
      %p319 = scmp.eq.s32.totalorder %s22, 0
      %p320 = por %p318, %p319
      %p321 = scmp.ne.s32.totalorder %s310, %s313
      %p322 = scmp.eq.s32.totalorder %s27, 1
      %p323 = por %p321, %p322
      %p324 = scmp.ne.s32.totalorder %s313, %s314
      %p325 = scmp.eq.s32.totalorder %s27, 0
      %p326 = por %p324, %p325
      %p327 = scmp.ne.s32.totalorder %s313, %s314
      %p328 = scmp.eq.s32.totalorder %s28, 1
      %p329 = por %p327, %p328
      %p331 = scmp.ne.s32.totalorder %s314, %s330
      %p332 = scmp.eq.s32.totalorder %s28, 0
      %p333 = por %p331, %p332
      %p334 = scmp.le.s32.totalorder 1, %s22
      %p335 = scmp.lt.s32.totalorder %s22, 3
      %p336 = pnand %p334, %p335
      %p337 = pneg %p336
      // Predicated region
      $region9: #{rnn_forward.1} parent=5 // pred_check
        _
      $region10: #{rnn_forward.1} parent=5 // pred_check_branch
        %339 = sbr.rel (%p336) target = $region12
      $region11: #{rnn_forward.1} parent=5 // pred_region
        %s340 = ssub.s32 %s22, 1
        // Predicated region
        $region13: #{rnn_forward.1} parent=11 // pred_check
          %p341 = pneg %p69
        $region14: #{rnn_forward.1} parent=11 // pred_check_branch
          %343 = sbr.rel (%p341) target = $region16
        $region15: #{rnn_forward.1} parent=11 // pred_region
          _
        $region16: #{rnn_forward.1} parent=11 // pred_fallthru
          _
        // Predicated region
        $region17: #{rnn_forward.1} parent=11 // pred_check
          %p344 = pneg %p90
        $region18: #{rnn_forward.1} parent=11 // pred_check_branch
          %346 = sbr.rel (%p344) target = $region20
        $region19: #{rnn_forward.1} parent=11 // pred_region
          _
        $region20: #{rnn_forward.1} parent=11 // pred_fallthru
          _
        // Predicated region
        $region21: #{rnn_forward.1} parent=11 // pred_check
          %p347 = pneg %p111
        $region22: #{rnn_forward.1} parent=11 // pred_check_branch
          %349 = sbr.rel (%p347) target = $region24
        $region23: #{rnn_forward.1} parent=11 // pred_region
          _
        $region24: #{rnn_forward.1} parent=11 // pred_fallthru
          _
        // Predicated region
        $region25: #{rnn_forward.1} parent=11 // pred_check
          %p350 = pneg %p132
        $region26: #{rnn_forward.1} parent=11 // pred_check_branch
          %352 = sbr.rel (%p350) target = $region28
        $region27: #{rnn_forward.1} parent=11 // pred_region
          _
        $region28: #{rnn_forward.1} parent=11 // pred_fallthru
          _
        // Predicated region
        $region29: #{rnn_forward.1} parent=11 // pred_check
          %p353 = pneg %p153
        $region30: #{rnn_forward.1} parent=11 // pred_check_branch
          %355 = sbr.rel (%p353) target = $region32
        $region31: #{rnn_forward.1} parent=11 // pred_region
          _
        $region32: #{rnn_forward.1} parent=11 // pred_fallthru
          _
        // Predicated region
        $region33: #{rnn_forward.1} parent=11 // pred_check
          %p356 = pneg %p174
        $region34: #{rnn_forward.1} parent=11 // pred_check_branch
          %358 = sbr.rel (%p356) target = $region36
        $region35: #{rnn_forward.1} parent=11 // pred_region
          _
        $region36: #{rnn_forward.1} parent=11 // pred_fallthru
          _
        // Predicated region
        $region37: #{rnn_forward.1} parent=11 // pred_check
          %p359 = pneg %p195
        $region38: #{rnn_forward.1} parent=11 // pred_check_branch
          %361 = sbr.rel (%p359) target = $region40
        $region39: #{rnn_forward.1} parent=11 // pred_region
          _
        $region40: #{rnn_forward.1} parent=11 // pred_fallthru
          _
        // Predicated region
        $region41: #{rnn_forward.1} parent=11 // pred_check
          %p362 = pneg %p216
        $region42: #{rnn_forward.1} parent=11 // pred_check_branch
          %364 = sbr.rel (%p362) target = $region44
        $region43: #{rnn_forward.1} parent=11 // pred_region
          _
        $region44: #{rnn_forward.1} parent=11 // pred_fallthru
          _
        // Predicated region
        $region45: #{rnn_forward.1} parent=11 // pred_check
          %p365 = pneg %p237
        $region46: #{rnn_forward.1} parent=11 // pred_check_branch
          %367 = sbr.rel (%p365) target = $region48
        $region47: #{rnn_forward.1} parent=11 // pred_region
          _
        $region48: #{rnn_forward.1} parent=11 // pred_fallthru
          _
        // Predicated region
        $region49: #{rnn_forward.1} parent=11 // pred_check
          %p368 = pneg %p258
        $region50: #{rnn_forward.1} parent=11 // pred_check_branch
          %370 = sbr.rel (%p368) target = $region52
        $region51: #{rnn_forward.1} parent=11 // pred_region
          _
        $region52: #{rnn_forward.1} parent=11 // pred_fallthru
          _
        // Predicated region
        $region53: #{rnn_forward.1} parent=11 // pred_check
          %p371 = pneg %p279
        $region54: #{rnn_forward.1} parent=11 // pred_check_branch
          %373 = sbr.rel (%p371) target = $region56
        $region55: #{rnn_forward.1} parent=11 // pred_region
          _
        $region56: #{rnn_forward.1} parent=11 // pred_fallthru
          _
        // Predicated region
        $region57: #{rnn_forward.1} parent=11 // pred_check
          %p374 = pneg %p300
        $region58: #{rnn_forward.1} parent=11 // pred_check_branch
          %376 = sbr.rel (%p374) target = $region60
        $region59: #{rnn_forward.1} parent=11 // pred_region
          _
        $region60: #{rnn_forward.1} parent=11 // pred_fallthru
          _
      $region12: #{rnn_forward.1} parent=5 // pred_fallthru
        _
      %p377 = scmp.lt.s32.totalorder %s22, 2
      // Predicated region
      $region61: #{rnn_forward.1} parent=5 // pred_check
        %p378 = pneg %p377
      $region62: #{rnn_forward.1} parent=5 // pred_check_branch
        %380 = sbr.rel (%p378) target = $region64
      $region63: #{rnn_forward.1} parent=5 // pred_region
        // Predicated region
        $region65: #{rnn_forward.1} parent=63 // pred_check
          %p381 = pneg %p42
        $region66: #{rnn_forward.1} parent=63 // pred_check_branch
          %383 = sbr.rel (%p381) target = $region68
        $region67: #{rnn_forward.1} parent=63 // pred_region
          %p384 = scmp.lt.s32.totalorder %s22, 1
          %s385 = scalar_select %p384, %s22, 1
          %s386 = smul.addr %s385, 8
          %s387 = scalar_lea.vmem %s0, %s386
        $region68: #{rnn_forward.1} parent=63 // pred_fallthru
          _
      $region64: #{rnn_forward.1} parent=5 // pred_fallthru
        _
      %p388 = scmp.le.s32.totalorder 1, %s22
      %p389 = scmp.lt.s32.totalorder %s22, 3
      %p390 = pnand %p388, %p389
      %p391 = pneg %p390
      // Predicated region
      $region69: #{rnn_forward.1} parent=5 // pred_check
        _
      $region70: #{rnn_forward.1} parent=5 // pred_check_branch
        %393 = sbr.rel (%p390) target = $region72
      $region71: #{rnn_forward.1} parent=5 // pred_region
        %s394 = ssub.s32 %s22, 1
        %p395 = scmp.lt.s32.totalorder %s27, 1
        %s396 = scalar_select %p395, %s27, 1
        %s397 = smul.addr %s396, 8
        %s398 = scalar_lea.vmem %s0, %s397
        %p399 = pneg %p48
        %p400 = pneg %p45
        %p401 = pneg %p69
        %p402 = pneg %p66
        %p403 = pneg %p90
        %p404 = pneg %p87
        %p405 = pneg %p111
        %p406 = pneg %p108
        %p407 = pneg %p132
        %p408 = pneg %p129
        %p409 = pneg %p153
        %p410 = pneg %p150
        %p411 = pneg %p174
        %p412 = pneg %p171
        %p413 = pneg %p195
        %p414 = pneg %p192
        %p415 = pneg %p216
        %p416 = pneg %p213
        %p417 = pneg %p237
        %p418 = pneg %p234
        %p419 = pneg %p258
        %p420 = pneg %p255
        %p421 = pneg %p279
        %p422 = pneg %p276
        %p423 = pneg %p300
        %p424 = pneg %p297
        %p425 = pneg %p326
        %p426 = pneg %p323
        %s427 = sand.u32 %s313, 1
        %s428 = scalar_lea.sflag [#allocation5], %s427
        %s429 = sand.u32 %s313, 1
        %s430 = smul.addr %s429, 8
        %s431 = scalar_lea.vmem [#allocation4], %s430
        %p432 = scmp.lt.s32.totalorder %s27, 1
        %s433 = scalar_select %p432, %s27, 1
        %s434 = smul.addr %s433, 8
        %s435 = scalar_lea.vmem %s0, %s434
        %v436 = vld [vmem:[%s435] sm:$0xff]
        %vm437 = vcmask 261120
        %v438 = vsel %vm437, %v436, 0.0
        %439 = vadd.xlane.f32.xlu0 %v438
        %v440 = vpop.xlane.xlu0 %439
        %v441 = vrcp.pop 32.0
        %v442 = vmul.f32 %v440, %v441
        %v443 = vsub.f32 %v436, %v442
        %v444 = vmul.f32 %v443, %v443
        %v445 = vsel %vm437, %v444, 0.0
        %446 = vadd.xlane.f32.xlu0 %v445
        %v447 = vpop.xlane.xlu0 %446
        %v448 = vmul.f32 %v447, %v441
        %v449 = vadd.f32 %v448, 1e-05
        %v450 = vrsqrt.pop %v449
        %v451 = vmul.f32 %v443, %v450
        %v452 = vld [vmem:[%s1] sm:$0x1]
        %v454 = vlaneseq
        %v455 = vshrl.u32 %v454, 7
        %v456 = vsub.s32 0, %v455
        %v457 = vrot.slane %v452, %v456
        %v459 = vmul.f32 %v451, %v457
        %v460 = vld [vmem:[%s2] sm:$0x1]
        %v462 = vlaneseq
        %v463 = vshrl.u32 %v462, 7
        %v464 = vsub.s32 0, %v463
        %v465 = vrot.slane %v460, %v464
        %v467 = vadd.f32 %v459, %v465
        %v468 = vmax.f32 %v467, 0.0
        %v469 = vld [vmem:[%s3] sm:$0xff]
        %v470 = vld [vmem:[%s3 + $0x8] sm:$0xff]
        %v471 = vld [vmem:[%s3 + $0x10] sm:$0xff]
        %v472 = vld [vmem:[%s3 + $0x18] sm:$0xff]
        %v473 = vld [vmem:[%s3 + $0x20] sm:$0xff]
        %v474 = vld [vmem:[%s3 + $0x28] sm:$0xff]
        %v475 = vld [vmem:[%s3 + $0x30] sm:$0xff]
        %v476 = vld [vmem:[%s3 + $0x38] sm:$0xff]
        %v477 = vld [vmem:[%s4] sm:$0x3]
        %v479 = vlaneseq
        %v480 = vshrl.u32 %v479, 7
        %v481 = vsub.s32 0, %v480
        %v482 = vrot.slane %v477, %v481
        %v483 = vlaneseq
        %v484 = vshrl.u32 %v483, 7
        %v485 = vsub.s32 1, %v484
        %v486 = vrot.slane %v477, %v485
        %v490 = vsel %vm437, %v468, 0
        %492 = vmatprep.subr.mxu0 %v470
        %493 = vmatpush1.msra.mxu0 %v469
        %494 = vmatprep.subr.mxu0 %v472
        %495 = vmatpush1.msra.mxu0 %v471
        %496 = vmatprep.subr.mxu0 %v474
        %497 = vmatpush1.msra.mxu0 %v473
        %498 = vmatprep.subr.mxu0 %v476
        %499 = vmatpush1.msra.mxu0 %v475
        %500 = vmatprep.subr.mxu0 0.0
        %501 = vmatpush1.msra.mxu0 0.0
        %502 = vmatprep.subr.mxu0 0.0
        %503 = vmatpush1.msra.mxu0 0.0
        %504 = vmatprep.subr.mxu0 0.0
        %505 = vmatpush1.msra.mxu0 0.0
        %506 = vmatprep.subr.mxu0 0.0
        %507 = vmatpush1.msra.mxu0 0.0
        %508 = vmatprep.subr.mxu0 0.0
        %509 = vmatpush1.msra.mxu0 0.0
        %510 = vmatprep.subr.mxu0 0.0
        %511 = vmatpush1.msra.mxu0 0.0
        %512 = vmatprep.subr.mxu0 0.0
        %513 = vmatpush1.msra.mxu0 0.0
        %514 = vmatprep.subr.mxu0 0.0
        %515 = vmatpush1.msra.mxu0 0.0
        %516 = vmatprep.subr.mxu0 0.0
        %517 = vmatpush1.msra.mxu0 0.0
        %518 = vmatprep.subr.mxu0 0.0
        %519 = vmatpush1.msra.mxu0 0.0
        %520 = vmatprep.subr.mxu0 0.0
        %521 = vmatpush1.msra.mxu0 0.0
        %522 = vmatprep.subr.mxu0 0.0
        %523 = vmatpush1.msra.mxu0 0.0
        %524 = vmatprep.subr.mxu0 0.0
        %525 = vmatpush1.msra.mxu0 0.0
        %526 = vmatprep.subr.mxu0 0.0
        %527 = vmatpush1.msra.mxu0 0.0
        %528 = vmatprep.subr.mxu0 0.0
        %529 = vmatpush1.msra.mxu0 0.0
        %530 = vmatprep.subr.mxu0 0.0
        %531 = vmatpush1.msra.mxu0 0.0
        %532 = vmatprep.subr.mxu0 0.0
        %533 = vmatpush1.msra.mxu0 0.0
        %534 = vmatprep.subr.mxu0 0.0
        %535 = vmatpush1.msra.mxu0 0.0
        %536 = vmatprep.subr.mxu0 0.0
        %537 = vmatpush1.msra.mxu0 0.0
        %538 = vmatprep.subr.mxu0 0.0
        %539 = vmatpush1.msra.mxu0 0.0
        %540 = vmatprep.subr.mxu0 0.0
        %541 = vmatpush1.msra.mxu0 0.0
        %542 = vmatprep.subr.mxu0 0.0
        %543 = vmatpush1.msra.mxu0 0.0
        %544 = vmatprep.subr.mxu0 0.0
        %545 = vmatpush1.msra.mxu0 0.0
        %546 = vmatprep.subr.mxu0 0.0
        %547 = vmatpush1.msra.mxu0 0.0
        %548 = vmatprep.subr.mxu0 0.0
        %549 = vmatpush1.msra.mxu0 0.0
        %550 = vmatprep.subr.mxu0 0.0
        %551 = vmatpush1.msra.mxu0 0.0
        %552 = vmatprep.subr.mxu0 0.0
        %553 = vmatpush1.msra.mxu0 0.0
        %554 = vmatprep.subr.mxu0 0.0
        %555 = vmatpush1.msra.mxu0 0.0
        %556 = vmatprep.mubr.f32.mxu0 0.0
        %557 = vmatmul.mubr.f32.gmra.mrb[0].mxu0 %v490
        %v558 = vpop.f32.mrb[0].mxu0
        %v559 = vadd.f32 %v482, %v558
        %v560 = vpop.f32.mrb[0].mxu0
        %v561 = vadd.f32 %v486, %v560
        %562 = vdwg.mxu0
        %563 = vst [vmem:[#allocation2] sm:$0xff] %v559
        %564 = vst [vmem:[#allocation2 + $0x8] sm:$0xff] %v561
        %v565 = vld [vmem:[%s5] sm:$0xff]
        %v566 = vld [vmem:[%s5 + $0x8] sm:$0xff]
        %v567 = vld [vmem:[%s5 + $0x10] sm:$0xff]
        %v568 = vld [vmem:[%s5 + $0x18] sm:$0xff]
        %v569 = vld [vmem:[%s5 + $0x20] sm:$0xff]
        %v570 = vld [vmem:[%s5 + $0x28] sm:$0xff]
        %v571 = vld [vmem:[%s5 + $0x30] sm:$0xff]
        %v572 = vld [vmem:[%s5 + $0x38] sm:$0xff]
        %v573 = vld [vmem:[%s5 + $0x40] sm:$0xff]
        %v574 = vld [vmem:[%s5 + $0x48] sm:$0xff]
        %v575 = vld [vmem:[%s5 + $0x50] sm:$0xff]
        %v576 = vld [vmem:[%s5 + $0x58] sm:$0xff]
        %v577 = vld [vmem:[%s5 + $0x60] sm:$0xff]
        %v578 = vld [vmem:[%s5 + $0x68] sm:$0xff]
        %v579 = vld [vmem:[%s5 + $0x70] sm:$0xff]
        %v580 = vld [vmem:[%s5 + $0x78] sm:$0xff]
        %vm581 = vcmask 523264
        %v583 = vsel %vm581, 0.0, 0
        %585 = vmatprep.subr.mxu0 %v566
        %586 = vmatpush1.msra.mxu0 %v565
        %587 = vmatprep.subr.mxu0 %v568
        %588 = vmatpush1.msra.mxu0 %v567
        %589 = vmatprep.subr.mxu0 %v570
        %590 = vmatpush1.msra.mxu0 %v569
        %591 = vmatprep.subr.mxu0 %v572
        %592 = vmatpush1.msra.mxu0 %v571
        %593 = vmatprep.subr.mxu0 %v574
        %594 = vmatpush1.msra.mxu0 %v573
        %595 = vmatprep.subr.mxu0 %v576
        %596 = vmatpush1.msra.mxu0 %v575
        %597 = vmatprep.subr.mxu0 %v578
        %598 = vmatpush1.msra.mxu0 %v577
        %599 = vmatprep.subr.mxu0 %v580
        %600 = vmatpush1.msra.mxu0 %v579
        %601 = vmatprep.subr.mxu0 0.0
        %602 = vmatpush1.msra.mxu0 0.0
        %603 = vmatprep.subr.mxu0 0.0
        %604 = vmatpush1.msra.mxu0 0.0
        %605 = vmatprep.subr.mxu0 0.0
        %606 = vmatpush1.msra.mxu0 0.0
        %607 = vmatprep.subr.mxu0 0.0
        %608 = vmatpush1.msra.mxu0 0.0
        %609 = vmatprep.subr.mxu0 0.0
        %610 = vmatpush1.msra.mxu0 0.0
        %611 = vmatprep.subr.mxu0 0.0
        %612 = vmatpush1.msra.mxu0 0.0
        %613 = vmatprep.subr.mxu0 0.0
        %614 = vmatpush1.msra.mxu0 0.0
        %615 = vmatprep.subr.mxu0 0.0
        %616 = vmatpush1.msra.mxu0 0.0
        %617 = vmatprep.subr.mxu0 0.0
        %618 = vmatpush1.msra.mxu0 0.0
        %619 = vmatprep.subr.mxu0 0.0
        %620 = vmatpush1.msra.mxu0 0.0
        %621 = vmatprep.subr.mxu0 0.0
        %622 = vmatpush1.msra.mxu0 0.0
        %623 = vmatprep.subr.mxu0 0.0
        %624 = vmatpush1.msra.mxu0 0.0
        %625 = vmatprep.subr.mxu0 0.0
        %626 = vmatpush1.msra.mxu0 0.0
        %627 = vmatprep.subr.mxu0 0.0
        %628 = vmatpush1.msra.mxu0 0.0
        %629 = vmatprep.subr.mxu0 0.0
        %630 = vmatpush1.msra.mxu0 0.0
        %631 = vmatprep.subr.mxu0 0.0
        %632 = vmatpush1.msra.mxu0 0.0
        %633 = vmatprep.subr.mxu0 0.0
        %634 = vmatpush1.msra.mxu0 0.0
        %635 = vmatprep.subr.mxu0 0.0
        %636 = vmatpush1.msra.mxu0 0.0
        %637 = vmatprep.subr.mxu0 0.0
        %638 = vmatpush1.msra.mxu0 0.0
        %639 = vmatprep.subr.mxu0 0.0
        %640 = vmatpush1.msra.mxu0 0.0
        %641 = vmatprep.subr.mxu0 0.0
        %642 = vmatpush1.msra.mxu0 0.0
        %643 = vmatprep.subr.mxu0 0.0
        %644 = vmatpush1.msra.mxu0 0.0
        %645 = vmatprep.subr.mxu0 0.0
        %646 = vmatpush1.msra.mxu0 0.0
        %647 = vmatprep.subr.mxu0 0.0
        %648 = vmatpush1.msra.mxu0 0.0
        %649 = vmatprep.mubr.f32.mxu0 0.0
        %650 = vmatmul.mubr.f32.gmra.mrb[0].mxu0 %v583
        %v651 = vpop.f32.mrb[0].mxu0
        %v652 = vadd.f32 0.0, %v651
        %v653 = vpop.f32.mrb[0].mxu0
        %v654 = vadd.f32 0.0, %v653
        %655 = vdwg.mxu0
        %v656 = vld [vmem:[#allocation2] ss:$0 sm:$0xff]
        %v657 = vadd.f32 %v652, %v656
        %v658 = vld [vmem:[#allocation2 + $0xf] ss:$0 sm:$0xff]
        %v659 = vadd.f32 %v654, %v658
        %v660 = vxor.u32 %v657, 2147483648
        %v661 = vmul.f32 %v660, 1.442695
        %v662 = vpow.pop %v661
        %v663 = vadd.f32 %v662, 1.0
        %v664 = vrcp.pop %v663
        %v665 = vmul.f32 1.0, %v664
        %v666 = vxor.u32 %v659, 2147483648
        %v667 = vmul.f32 %v666, 1.442695
        %v668 = vpow.pop %v667
        %v669 = vadd.f32 %v668, 1.0
        %v670 = vrcp.pop %v669
        %v671 = vmul.f32 1.0, %v670
        %v672 = vtanh.pop %v657
        %v673 = vtanh.pop %v659
        %v674 = vmul.f32 %v665, 0.0
        %676 = vrot.lane.b32.xlu0 %v672, 32
        %v677 = vpop.permute.xlu0 %676
        %v679 = vmul.f32 %v665, %v677
        %681 = vrot.lane.b32.xlu0 %v679, 32
        %v682 = vpop.permute.xlu0 %681
        %v684 = vadd.f32 %v674, %v682
        %v685 = vmul.f32 %v671, 0.0
        %687 = vrot.lane.b32.xlu0 %v673, 32
        %v688 = vpop.permute.xlu0 %687
        %v690 = vmul.f32 %v671, %v688
        %692 = vrot.lane.b32.xlu0 %v690, 32
        %v693 = vpop.permute.xlu0 %692
        %v695 = vadd.f32 %v685, %v693
        %v696 = vtanh.pop %v684
        %698 = vrot.lane.b32.xlu0 %v696, 32
        %v699 = vpop.permute.xlu0 %698
        %v701 = vmul.f32 %v665, %v699
        %v702 = vtanh.pop %v695
        %704 = vrot.lane.b32.xlu0 %v702, 32
        %v705 = vpop.permute.xlu0 %704
        %v707 = vmul.f32 %v671, %v705
        %709 = vrot.lane.b32.xlu0 %v701, 64
        %v710 = vpop.permute.xlu0 %709
        %vm712 = vcmask 253952
        %713 = vst.msk [vmem:[#allocation3] sm:$0x1] %vm712, %v710
        %715 = vrot.lane.b32.xlu0 %v707, 96
        %v716 = vpop.permute.xlu0 %715
        %vm718 = vcmask 516352
        %719 = vst.msk [vmem:[#allocation3 + $0x7] sm:$0x1] %vm718, %v716
        %v720 = vsel %vm437, %v710, %v716
        %v722 = vsel %vm581, %v720, 0
        %724 = vmatprep.subr.mxu0 %v566
        %725 = vmatpush1.msra.mxu0 %v565
        %726 = vmatprep.subr.mxu0 %v568
        %727 = vmatpush1.msra.mxu0 %v567
        %728 = vmatprep.subr.mxu0 %v570
        %729 = vmatpush1.msra.mxu0 %v569
        %730 = vmatprep.subr.mxu0 %v572
        %731 = vmatpush1.msra.mxu0 %v571
        %732 = vmatprep.subr.mxu0 %v574
        %733 = vmatpush1.msra.mxu0 %v573
        %734 = vmatprep.subr.mxu0 %v576
        %735 = vmatpush1.msra.mxu0 %v575
        %736 = vmatprep.subr.mxu0 %v578
        %737 = vmatpush1.msra.mxu0 %v577
        %738 = vmatprep.subr.mxu0 %v580
        %739 = vmatpush1.msra.mxu0 %v579
        %740 = vmatprep.subr.mxu0 0.0
        %741 = vmatpush1.msra.mxu0 0.0
        %742 = vmatprep.subr.mxu0 0.0
        %743 = vmatpush1.msra.mxu0 0.0
        %744 = vmatprep.subr.mxu0 0.0
        %745 = vmatpush1.msra.mxu0 0.0
        %746 = vmatprep.subr.mxu0 0.0
        %747 = vmatpush1.msra.mxu0 0.0
        %748 = vmatprep.subr.mxu0 0.0
        %749 = vmatpush1.msra.mxu0 0.0
        %750 = vmatprep.subr.mxu0 0.0
        %751 = vmatpush1.msra.mxu0 0.0
        %752 = vmatprep.subr.mxu0 0.0
        %753 = vmatpush1.msra.mxu0 0.0
        %754 = vmatprep.subr.mxu0 0.0
        %755 = vmatpush1.msra.mxu0 0.0
        %756 = vmatprep.subr.mxu0 0.0
        %757 = vmatpush1.msra.mxu0 0.0
        %758 = vmatprep.subr.mxu0 0.0
        %759 = vmatpush1.msra.mxu0 0.0
        %760 = vmatprep.subr.mxu0 0.0
        %761 = vmatpush1.msra.mxu0 0.0
        %762 = vmatprep.subr.mxu0 0.0
        %763 = vmatpush1.msra.mxu0 0.0
        %764 = vmatprep.subr.mxu0 0.0
        %765 = vmatpush1.msra.mxu0 0.0
        %766 = vmatprep.subr.mxu0 0.0
        %767 = vmatpush1.msra.mxu0 0.0
        %768 = vmatprep.subr.mxu0 0.0
        %769 = vmatpush1.msra.mxu0 0.0
        %770 = vmatprep.subr.mxu0 0.0
        %771 = vmatpush1.msra.mxu0 0.0
        %772 = vmatprep.subr.mxu0 0.0
        %773 = vmatpush1.msra.mxu0 0.0
        %774 = vmatprep.subr.mxu0 0.0
        %775 = vmatpush1.msra.mxu0 0.0
        %776 = vmatprep.subr.mxu0 0.0
        %777 = vmatpush1.msra.mxu0 0.0
        %778 = vmatprep.subr.mxu0 0.0
        %779 = vmatpush1.msra.mxu0 0.0
        %780 = vmatprep.subr.mxu0 0.0
        %781 = vmatpush1.msra.mxu0 0.0
        %782 = vmatprep.subr.mxu0 0.0
        %783 = vmatpush1.msra.mxu0 0.0
        %784 = vmatprep.subr.mxu0 0.0
        %785 = vmatpush1.msra.mxu0 0.0
        %786 = vmatprep.subr.mxu0 0.0
        %787 = vmatpush1.msra.mxu0 0.0
        %788 = vmatprep.mubr.f32.mxu0 0.0
        %789 = vmatmul.mubr.f32.gmra.mrb[0].mxu0 %v722
        %v790 = vpop.f32.mrb[0].mxu0
        %v791 = vadd.f32 0.0, %v790
        %v792 = vpop.f32.mrb[0].mxu0
        %v793 = vadd.f32 0.0, %v792
        %794 = vdwg.mxu0
        %v795 = vld [vmem:[#allocation2 + $0x1] ss:$0 sm:$0xff]
        %v796 = vadd.f32 %v791, %v795
        %v797 = vld [vmem:[#allocation2 + $0xe] ss:$0 sm:$0xff]
        %v798 = vadd.f32 %v793, %v797
        %v799 = vxor.u32 %v796, 2147483648
        %v800 = vmul.f32 %v799, 1.442695
        %v801 = vpow.pop %v800
        %v802 = vadd.f32 %v801, 1.0
        %v803 = vrcp.pop %v802
        %v804 = vmul.f32 1.0, %v803
        %v805 = vxor.u32 %v798, 2147483648
        %v806 = vmul.f32 %v805, 1.442695
        %v807 = vpow.pop %v806
        %v808 = vadd.f32 %v807, 1.0
        %v809 = vrcp.pop %v808
        %v810 = vmul.f32 1.0, %v809
        %v811 = vtanh.pop %v796
        %v812 = vtanh.pop %v798
        %v813 = vmul.f32 %v804, %v684
        %815 = vrot.lane.b32.xlu0 %v811, 32
        %v816 = vpop.permute.xlu0 %815
        %v818 = vmul.f32 %v804, %v816
        %820 = vrot.lane.b32.xlu0 %v818, 32
        %v821 = vpop.permute.xlu0 %820
        %v823 = vadd.f32 %v813, %v821
        %v824 = vmul.f32 %v810, %v695
        %826 = vrot.lane.b32.xlu0 %v812, 32
        %v827 = vpop.permute.xlu0 %826
        %v829 = vmul.f32 %v810, %v827
        %831 = vrot.lane.b32.xlu0 %v829, 32
        %v832 = vpop.permute.xlu0 %831
        %v834 = vadd.f32 %v824, %v832
        %v835 = vtanh.pop %v823
        %837 = vrot.lane.b32.xlu0 %v835, 32
        %v838 = vpop.permute.xlu0 %837
        %v840 = vmul.f32 %v804, %v838
        %v841 = vtanh.pop %v834
        %843 = vrot.lane.b32.xlu0 %v841, 32
        %v844 = vpop.permute.xlu0 %843
        %v846 = vmul.f32 %v810, %v844
        %848 = vrot.lane.b32.xlu0 %v840, 64
        %v849 = vpop.permute.xlu0 %848
        %851 = vst.msk [vmem:[#allocation3 + $0x1] sm:$0x1] %vm712, %v849
        %853 = vrot.lane.b32.xlu0 %v846, 96
        %v854 = vpop.permute.xlu0 %853
        %856 = vst.msk [vmem:[#allocation3 + $0x6] sm:$0x1] %vm718, %v854
        %v857 = vsel %vm437, %v849, %v854
        %v859 = vsel %vm581, %v857, 0
        %861 = vmatprep.subr.mxu0 %v566
        %862 = vmatpush1.msra.mxu0 %v565
        %863 = vmatprep.subr.mxu0 %v568
        %864 = vmatpush1.msra.mxu0 %v567
        %865 = vmatprep.subr.mxu0 %v570
        %866 = vmatpush1.msra.mxu0 %v569
        %867 = vmatprep.subr.mxu0 %v572
        %868 = vmatpush1.msra.mxu0 %v571
        %869 = vmatprep.subr.mxu0 %v574
        %870 = vmatpush1.msra.mxu0 %v573
        %871 = vmatprep.subr.mxu0 %v576
        %872 = vmatpush1.msra.mxu0 %v575
        %873 = vmatprep.subr.mxu0 %v578
        %874 = vmatpush1.msra.mxu0 %v577
        %875 = vmatprep.subr.mxu0 %v580
        %876 = vmatpush1.msra.mxu0 %v579
        %877 = vmatprep.subr.mxu0 0.0
        %878 = vmatpush1.msra.mxu0 0.0
        %879 = vmatprep.subr.mxu0 0.0
        %880 = vmatpush1.msra.mxu0 0.0
        %881 = vmatprep.subr.mxu0 0.0
        %882 = vmatpush1.msra.mxu0 0.0
        %883 = vmatprep.subr.mxu0 0.0
        %884 = vmatpush1.msra.mxu0 0.0
        %885 = vmatprep.subr.mxu0 0.0
        %886 = vmatpush1.msra.mxu0 0.0
        %887 = vmatprep.subr.mxu0 0.0
        %888 = vmatpush1.msra.mxu0 0.0
        %889 = vmatprep.subr.mxu0 0.0
        %890 = vmatpush1.msra.mxu0 0.0
        %891 = vmatprep.subr.mxu0 0.0
        %892 = vmatpush1.msra.mxu0 0.0
        %893 = vmatprep.subr.mxu0 0.0
        %894 = vmatpush1.msra.mxu0 0.0
        %895 = vmatprep.subr.mxu0 0.0
        %896 = vmatpush1.msra.mxu0 0.0
        %897 = vmatprep.subr.mxu0 0.0
        %898 = vmatpush1.msra.mxu0 0.0
        %899 = vmatprep.subr.mxu0 0.0
        %900 = vmatpush1.msra.mxu0 0.0
        %901 = vmatprep.subr.mxu0 0.0
        %902 = vmatpush1.msra.mxu0 0.0
        %903 = vmatprep.subr.mxu0 0.0
        %904 = vmatpush1.msra.mxu0 0.0
        %905 = vmatprep.subr.mxu0 0.0
        %906 = vmatpush1.msra.mxu0 0.0
        %907 = vmatprep.subr.mxu0 0.0
        %908 = vmatpush1.msra.mxu0 0.0
        %909 = vmatprep.subr.mxu0 0.0
        %910 = vmatpush1.msra.mxu0 0.0
        %911 = vmatprep.subr.mxu0 0.0
        %912 = vmatpush1.msra.mxu0 0.0
        %913 = vmatprep.subr.mxu0 0.0
        %914 = vmatpush1.msra.mxu0 0.0
        %915 = vmatprep.subr.mxu0 0.0
        %916 = vmatpush1.msra.mxu0 0.0
        %917 = vmatprep.subr.mxu0 0.0
        %918 = vmatpush1.msra.mxu0 0.0
        %919 = vmatprep.subr.mxu0 0.0
        %920 = vmatpush1.msra.mxu0 0.0
        %921 = vmatprep.subr.mxu0 0.0
        %922 = vmatpush1.msra.mxu0 0.0
        %923 = vmatprep.subr.mxu0 0.0
        %924 = vmatpush1.msra.mxu0 0.0
        %925 = vmatprep.mubr.f32.mxu0 0.0
        %926 = vmatmul.mubr.f32.gmra.mrb[0].mxu0 %v859
        %v927 = vpop.f32.mrb[0].mxu0
        %v928 = vadd.f32 0.0, %v927
        %v929 = vpop.f32.mrb[0].mxu0
        %v930 = vadd.f32 0.0, %v929
        %931 = vdwg.mxu0
        %v932 = vld [vmem:[#allocation2 + $0x2] ss:$0 sm:$0xff]
        %v933 = vadd.f32 %v928, %v932
        %v934 = vld [vmem:[#allocation2 + $0xd] ss:$0 sm:$0xff]
        %v935 = vadd.f32 %v930, %v934
        %v936 = vxor.u32 %v933, 2147483648
        %v937 = vmul.f32 %v936, 1.442695
        %v938 = vpow.pop %v937
        %v939 = vadd.f32 %v938, 1.0
        %v940 = vrcp.pop %v939
        %v941 = vmul.f32 1.0, %v940
        %v942 = vxor.u32 %v935, 2147483648
        %v943 = vmul.f32 %v942, 1.442695
        %v944 = vpow.pop %v943
        %v945 = vadd.f32 %v944, 1.0
        %v946 = vrcp.pop %v945
        %v947 = vmul.f32 1.0, %v946
        %v948 = vtanh.pop %v933
        %v949 = vtanh.pop %v935
        %v950 = vmul.f32 %v941, %v823
        %952 = vrot.lane.b32.xlu0 %v948, 32
        %v953 = vpop.permute.xlu0 %952
        %v955 = vmul.f32 %v941, %v953
        %957 = vrot.lane.b32.xlu0 %v955, 32
        %v958 = vpop.permute.xlu0 %957
        %v960 = vadd.f32 %v950, %v958
        %v961 = vmul.f32 %v947, %v834
        %963 = vrot.lane.b32.xlu0 %v949, 32
        %v964 = vpop.permute.xlu0 %963
        %v966 = vmul.f32 %v947, %v964
        %968 = vrot.lane.b32.xlu0 %v966, 32
        %v969 = vpop.permute.xlu0 %968
        %v971 = vadd.f32 %v961, %v969
        %v972 = vtanh.pop %v960
        %974 = vrot.lane.b32.xlu0 %v972, 32
        %v975 = vpop.permute.xlu0 %974
        %v977 = vmul.f32 %v941, %v975
        %v978 = vtanh.pop %v971
        %980 = vrot.lane.b32.xlu0 %v978, 32
        %v981 = vpop.permute.xlu0 %980
        %v983 = vmul.f32 %v947, %v981
        %985 = vrot.lane.b32.xlu0 %v977, 64
        %v986 = vpop.permute.xlu0 %985
        %988 = vst.msk [vmem:[#allocation3 + $0x2] sm:$0x1] %vm712, %v986
        %990 = vrot.lane.b32.xlu0 %v983, 96
        %v991 = vpop.permute.xlu0 %990
        %993 = vst.msk [vmem:[#allocation3 + $0x5] sm:$0x1] %vm718, %v991
        %v994 = vsel %vm437, %v986, %v991
        %v996 = vsel %vm581, %v994, 0
        %998 = vmatprep.subr.mxu0 %v566
        %999 = vmatpush1.msra.mxu0 %v565
        %1000 = vmatprep.subr.mxu0 %v568
        %1001 = vmatpush1.msra.mxu0 %v567
        %1002 = vmatprep.subr.mxu0 %v570
        %1003 = vmatpush1.msra.mxu0 %v569
        %1004 = vmatprep.subr.mxu0 %v572
        %1005 = vmatpush1.msra.mxu0 %v571
        %1006 = vmatprep.subr.mxu0 %v574
        %1007 = vmatpush1.msra.mxu0 %v573
        %1008 = vmatprep.subr.mxu0 %v576
        %1009 = vmatpush1.msra.mxu0 %v575
        %1010 = vmatprep.subr.mxu0 %v578
        %1011 = vmatpush1.msra.mxu0 %v577
        %1012 = vmatprep.subr.mxu0 %v580
        %1013 = vmatpush1.msra.mxu0 %v579
        %1014 = vmatprep.subr.mxu0 0.0
        %1015 = vmatpush1.msra.mxu0 0.0
        %1016 = vmatprep.subr.mxu0 0.0
        %1017 = vmatpush1.msra.mxu0 0.0
        %1018 = vmatprep.subr.mxu0 0.0
        %1019 = vmatpush1.msra.mxu0 0.0
        %1020 = vmatprep.subr.mxu0 0.0
        %1021 = vmatpush1.msra.mxu0 0.0
        %1022 = vmatprep.subr.mxu0 0.0
        %1023 = vmatpush1.msra.mxu0 0.0
        %1024 = vmatprep.subr.mxu0 0.0
        %1025 = vmatpush1.msra.mxu0 0.0
        %1026 = vmatprep.subr.mxu0 0.0
        %1027 = vmatpush1.msra.mxu0 0.0
        %1028 = vmatprep.subr.mxu0 0.0
        %1029 = vmatpush1.msra.mxu0 0.0
        %1030 = vmatprep.subr.mxu0 0.0
        %1031 = vmatpush1.msra.mxu0 0.0
        %1032 = vmatprep.subr.mxu0 0.0
        %1033 = vmatpush1.msra.mxu0 0.0
        %1034 = vmatprep.subr.mxu0 0.0
        %1035 = vmatpush1.msra.mxu0 0.0
        %1036 = vmatprep.subr.mxu0 0.0
        %1037 = vmatpush1.msra.mxu0 0.0
        %1038 = vmatprep.subr.mxu0 0.0
        %1039 = vmatpush1.msra.mxu0 0.0
        %1040 = vmatprep.subr.mxu0 0.0
        %1041 = vmatpush1.msra.mxu0 0.0
        %1042 = vmatprep.subr.mxu0 0.0
        %1043 = vmatpush1.msra.mxu0 0.0
        %1044 = vmatprep.subr.mxu0 0.0
        %1045 = vmatpush1.msra.mxu0 0.0
        %1046 = vmatprep.subr.mxu0 0.0
        %1047 = vmatpush1.msra.mxu0 0.0
        %1048 = vmatprep.subr.mxu0 0.0
        %1049 = vmatpush1.msra.mxu0 0.0
        %1050 = vmatprep.subr.mxu0 0.0
        %1051 = vmatpush1.msra.mxu0 0.0
        %1052 = vmatprep.subr.mxu0 0.0
        %1053 = vmatpush1.msra.mxu0 0.0
        %1054 = vmatprep.subr.mxu0 0.0
        %1055 = vmatpush1.msra.mxu0 0.0
        %1056 = vmatprep.subr.mxu0 0.0
        %1057 = vmatpush1.msra.mxu0 0.0
        %1058 = vmatprep.subr.mxu0 0.0
        %1059 = vmatpush1.msra.mxu0 0.0
        %1060 = vmatprep.subr.mxu0 0.0
        %1061 = vmatpush1.msra.mxu0 0.0
        %1062 = vmatprep.mubr.f32.mxu0 0.0
        %1063 = vmatmul.mubr.f32.gmra.mrb[0].mxu0 %v996
        %v1064 = vpop.f32.mrb[0].mxu0
        %v1065 = vadd.f32 0.0, %v1064
        %v1066 = vpop.f32.mrb[0].mxu0
        %v1067 = vadd.f32 0.0, %v1066
        %1068 = vdwg.mxu0
        %v1069 = vld [vmem:[#allocation2 + $0x3] ss:$0 sm:$0xff]
        %v1070 = vadd.f32 %v1065, %v1069
        %v1071 = vld [vmem:[#allocation2 + $0xc] ss:$0 sm:$0xff]
        %v1072 = vadd.f32 %v1067, %v1071
        %v1073 = vxor.u32 %v1070, 2147483648
        %v1074 = vmul.f32 %v1073, 1.442695
        %v1075 = vpow.pop %v1074
        %v1076 = vadd.f32 %v1075, 1.0
        %v1077 = vrcp.pop %v1076
        %v1078 = vmul.f32 1.0, %v1077
        %v1079 = vxor.u32 %v1072, 2147483648
        %v1080 = vmul.f32 %v1079, 1.442695
        %v1081 = vpow.pop %v1080
        %v1082 = vadd.f32 %v1081, 1.0
        %v1083 = vrcp.pop %v1082
        %v1084 = vmul.f32 1.0, %v1083
        %v1085 = vtanh.pop %v1070
        %v1086 = vtanh.pop %v1072
        %v1087 = vmul.f32 %v1078, %v960
        %1089 = vrot.lane.b32.xlu0 %v1085, 32
        %v1090 = vpop.permute.xlu0 %1089
        %v1092 = vmul.f32 %v1078, %v1090
        %1094 = vrot.lane.b32.xlu0 %v1092, 32
        %v1095 = vpop.permute.xlu0 %1094
        %v1097 = vadd.f32 %v1087, %v1095
        %v1098 = vmul.f32 %v1084, %v971
        %1100 = vrot.lane.b32.xlu0 %v1086, 32
        %v1101 = vpop.permute.xlu0 %1100
        %v1103 = vmul.f32 %v1084, %v1101
        %1105 = vrot.lane.b32.xlu0 %v1103, 32
        %v1106 = vpop.permute.xlu0 %1105
        %v1108 = vadd.f32 %v1098, %v1106
        %v1109 = vtanh.pop %v1097
        %1111 = vrot.lane.b32.xlu0 %v1109, 32
        %v1112 = vpop.permute.xlu0 %1111
        %v1114 = vmul.f32 %v1078, %v1112
        %v1115 = vtanh.pop %v1108
        %1117 = vrot.lane.b32.xlu0 %v1115, 32
        %v1118 = vpop.permute.xlu0 %1117
        %v1120 = vmul.f32 %v1084, %v1118
        %1122 = vrot.lane.b32.xlu0 %v1114, 64
        %v1123 = vpop.permute.xlu0 %1122
        %1125 = vst.msk [vmem:[#allocation3 + $0x3] sm:$0x1] %vm712, %v1123
        %1127 = vrot.lane.b32.xlu0 %v1120, 96
        %v1128 = vpop.permute.xlu0 %1127
        %1130 = vst.msk [vmem:[#allocation3 + $0x4] sm:$0x1] %vm718, %v1128
        %v1131 = vsel %vm437, %v1123, %v1128
        %v1133 = vsel %vm581, %v1131, 0
        %1135 = vmatprep.subr.mxu0 %v566
        %1136 = vmatpush1.msra.mxu0 %v565
        %1137 = vmatprep.subr.mxu0 %v568
        %1138 = vmatpush1.msra.mxu0 %v567
        %1139 = vmatprep.subr.mxu0 %v570
        %1140 = vmatpush1.msra.mxu0 %v569
        %1141 = vmatprep.subr.mxu0 %v572
        %1142 = vmatpush1.msra.mxu0 %v571
        %1143 = vmatprep.subr.mxu0 %v574
        %1144 = vmatpush1.msra.mxu0 %v573
        %1145 = vmatprep.subr.mxu0 %v576
        %1146 = vmatpush1.msra.mxu0 %v575
        %1147 = vmatprep.subr.mxu0 %v578
        %1148 = vmatpush1.msra.mxu0 %v577
        %1149 = vmatprep.subr.mxu0 %v580
        %1150 = vmatpush1.msra.mxu0 %v579
        %1151 = vmatprep.subr.mxu0 0.0
        %1152 = vmatpush1.msra.mxu0 0.0
        %1153 = vmatprep.subr.mxu0 0.0
        %1154 = vmatpush1.msra.mxu0 0.0
        %1155 = vmatprep.subr.mxu0 0.0
        %1156 = vmatpush1.msra.mxu0 0.0
        %1157 = vmatprep.subr.mxu0 0.0
        %1158 = vmatpush1.msra.mxu0 0.0
        %1159 = vmatprep.subr.mxu0 0.0
        %1160 = vmatpush1.msra.mxu0 0.0
        %1161 = vmatprep.subr.mxu0 0.0
        %1162 = vmatpush1.msra.mxu0 0.0
        %1163 = vmatprep.subr.mxu0 0.0
        %1164 = vmatpush1.msra.mxu0 0.0
        %1165 = vmatprep.subr.mxu0 0.0
        %1166 = vmatpush1.msra.mxu0 0.0
        %1167 = vmatprep.subr.mxu0 0.0
        %1168 = vmatpush1.msra.mxu0 0.0
        %1169 = vmatprep.subr.mxu0 0.0
        %1170 = vmatpush1.msra.mxu0 0.0
        %1171 = vmatprep.subr.mxu0 0.0
        %1172 = vmatpush1.msra.mxu0 0.0
        %1173 = vmatprep.subr.mxu0 0.0
        %1174 = vmatpush1.msra.mxu0 0.0
        %1175 = vmatprep.subr.mxu0 0.0
        %1176 = vmatpush1.msra.mxu0 0.0
        %1177 = vmatprep.subr.mxu0 0.0
        %1178 = vmatpush1.msra.mxu0 0.0
        %1179 = vmatprep.subr.mxu0 0.0
        %1180 = vmatpush1.msra.mxu0 0.0
        %1181 = vmatprep.subr.mxu0 0.0
        %1182 = vmatpush1.msra.mxu0 0.0
        %1183 = vmatprep.subr.mxu0 0.0
        %1184 = vmatpush1.msra.mxu0 0.0
        %1185 = vmatprep.subr.mxu0 0.0
        %1186 = vmatpush1.msra.mxu0 0.0
        %1187 = vmatprep.subr.mxu0 0.0
        %1188 = vmatpush1.msra.mxu0 0.0
        %1189 = vmatprep.subr.mxu0 0.0
        %1190 = vmatpush1.msra.mxu0 0.0
        %1191 = vmatprep.subr.mxu0 0.0
        %1192 = vmatpush1.msra.mxu0 0.0
        %1193 = vmatprep.subr.mxu0 0.0
        %1194 = vmatpush1.msra.mxu0 0.0
        %1195 = vmatprep.subr.mxu0 0.0
        %1196 = vmatpush1.msra.mxu0 0.0
        %1197 = vmatprep.subr.mxu0 0.0
        %1198 = vmatpush1.msra.mxu0 0.0
        %1199 = vmatprep.mubr.f32.mxu0 0.0
        %1200 = vmatmul.mubr.f32.gmra.mrb[0].mxu0 %v1133
        %v1201 = vpop.f32.mrb[0].mxu0
        %v1202 = vadd.f32 0.0, %v1201
        %v1203 = vpop.f32.mrb[0].mxu0
        %v1204 = vadd.f32 0.0, %v1203
        %1205 = vdwg.mxu0
        %v1206 = vld [vmem:[#allocation2 + $0x4] ss:$0 sm:$0xff]
        %v1207 = vadd.f32 %v1202, %v1206
        %v1208 = vld [vmem:[#allocation2 + $0xb] ss:$0 sm:$0xff]
        %v1209 = vadd.f32 %v1204, %v1208
        %v1210 = vxor.u32 %v1207, 2147483648
        %v1211 = vmul.f32 %v1210, 1.442695
        %v1212 = vpow.pop %v1211
        %v1213 = vadd.f32 %v1212, 1.0
        %v1214 = vrcp.pop %v1213
        %v1215 = vmul.f32 1.0, %v1214
        %v1216 = vxor.u32 %v1209, 2147483648
        %v1217 = vmul.f32 %v1216, 1.442695
        %v1218 = vpow.pop %v1217
        %v1219 = vadd.f32 %v1218, 1.0
        %v1220 = vrcp.pop %v1219
        %v1221 = vmul.f32 1.0, %v1220
        %v1222 = vtanh.pop %v1207
        %v1223 = vtanh.pop %v1209
        %v1224 = vmul.f32 %v1215, %v1097
        %1226 = vrot.lane.b32.xlu0 %v1222, 32
        %v1227 = vpop.permute.xlu0 %1226
        %v1229 = vmul.f32 %v1215, %v1227
        %1231 = vrot.lane.b32.xlu0 %v1229, 32
        %v1232 = vpop.permute.xlu0 %1231
        %v1234 = vadd.f32 %v1224, %v1232
        %v1235 = vmul.f32 %v1221, %v1108
        %1237 = vrot.lane.b32.xlu0 %v1223, 32
        %v1238 = vpop.permute.xlu0 %1237
        %v1240 = vmul.f32 %v1221, %v1238
        %1242 = vrot.lane.b32.xlu0 %v1240, 32
        %v1243 = vpop.permute.xlu0 %1242
        %v1245 = vadd.f32 %v1235, %v1243
        %v1246 = vtanh.pop %v1234
        %1248 = vrot.lane.b32.xlu0 %v1246, 32
        %v1249 = vpop.permute.xlu0 %1248
        %v1251 = vmul.f32 %v1215, %v1249
        %v1252 = vtanh.pop %v1245
        %1254 = vrot.lane.b32.xlu0 %v1252, 32
        %v1255 = vpop.permute.xlu0 %1254
        %v1257 = vmul.f32 %v1221, %v1255
        %1259 = vrot.lane.b32.xlu0 %v1251, 64
        %v1260 = vpop.permute.xlu0 %1259
        %1262 = vst.msk [vmem:[#allocation3 + $0x4] sm:$0x1] %vm712, %v1260
        %1264 = vrot.lane.b32.xlu0 %v1257, 96
        %v1265 = vpop.permute.xlu0 %1264
        %1267 = vst.msk [vmem:[#allocation3 + $0x3] sm:$0x1] %vm718, %v1265
        %v1268 = vsel %vm437, %v1260, %v1265
        %v1270 = vsel %vm581, %v1268, 0
        %1272 = vmatprep.subr.mxu0 %v566
        %1273 = vmatpush1.msra.mxu0 %v565
        %1274 = vmatprep.subr.mxu0 %v568
        %1275 = vmatpush1.msra.mxu0 %v567
        %1276 = vmatprep.subr.mxu0 %v570
        %1277 = vmatpush1.msra.mxu0 %v569
        %1278 = vmatprep.subr.mxu0 %v572
        %1279 = vmatpush1.msra.mxu0 %v571
        %1280 = vmatprep.subr.mxu0 %v574
        %1281 = vmatpush1.msra.mxu0 %v573
        %1282 = vmatprep.subr.mxu0 %v576
        %1283 = vmatpush1.msra.mxu0 %v575
        %1284 = vmatprep.subr.mxu0 %v578
        %1285 = vmatpush1.msra.mxu0 %v577
        %1286 = vmatprep.subr.mxu0 %v580
        %1287 = vmatpush1.msra.mxu0 %v579
        %1288 = vmatprep.subr.mxu0 0.0
        %1289 = vmatpush1.msra.mxu0 0.0
        %1290 = vmatprep.subr.mxu0 0.0
        %1291 = vmatpush1.msra.mxu0 0.0
        %1292 = vmatprep.subr.mxu0 0.0
        %1293 = vmatpush1.msra.mxu0 0.0
        %1294 = vmatprep.subr.mxu0 0.0
        %1295 = vmatpush1.msra.mxu0 0.0
        %1296 = vmatprep.subr.mxu0 0.0
        %1297 = vmatpush1.msra.mxu0 0.0
        %1298 = vmatprep.subr.mxu0 0.0
        %1299 = vmatpush1.msra.mxu0 0.0
        %1300 = vmatprep.subr.mxu0 0.0
        %1301 = vmatpush1.msra.mxu0 0.0
        %1302 = vmatprep.subr.mxu0 0.0
        %1303 = vmatpush1.msra.mxu0 0.0
        %1304 = vmatprep.subr.mxu0 0.0
        %1305 = vmatpush1.msra.mxu0 0.0
        %1306 = vmatprep.subr.mxu0 0.0
        %1307 = vmatpush1.msra.mxu0 0.0
        %1308 = vmatprep.subr.mxu0 0.0
        %1309 = vmatpush1.msra.mxu0 0.0
        %1310 = vmatprep.subr.mxu0 0.0
        %1311 = vmatpush1.msra.mxu0 0.0
        %1312 = vmatprep.subr.mxu0 0.0
        %1313 = vmatpush1.msra.mxu0 0.0
        %1314 = vmatprep.subr.mxu0 0.0
        %1315 = vmatpush1.msra.mxu0 0.0
        %1316 = vmatprep.subr.mxu0 0.0
        %1317 = vmatpush1.msra.mxu0 0.0
        %1318 = vmatprep.subr.mxu0 0.0
        %1319 = vmatpush1.msra.mxu0 0.0
        %1320 = vmatprep.subr.mxu0 0.0
        %1321 = vmatpush1.msra.mxu0 0.0
        %1322 = vmatprep.subr.mxu0 0.0
        %1323 = vmatpush1.msra.mxu0 0.0
        %1324 = vmatprep.subr.mxu0 0.0
        %1325 = vmatpush1.msra.mxu0 0.0
        %1326 = vmatprep.subr.mxu0 0.0
        %1327 = vmatpush1.msra.mxu0 0.0
        %1328 = vmatprep.subr.mxu0 0.0
        %1329 = vmatpush1.msra.mxu0 0.0
        %1330 = vmatprep.subr.mxu0 0.0
        %1331 = vmatpush1.msra.mxu0 0.0
        %1332 = vmatprep.subr.mxu0 0.0
        %1333 = vmatpush1.msra.mxu0 0.0
        %1334 = vmatprep.subr.mxu0 0.0
        %1335 = vmatpush1.msra.mxu0 0.0
        %1336 = vmatprep.mubr.f32.mxu0 0.0
        %1337 = vmatmul.mubr.f32.gmra.mrb[0].mxu0 %v1270
        %v1338 = vpop.f32.mrb[0].mxu0
        %v1339 = vadd.f32 0.0, %v1338
        %v1340 = vpop.f32.mrb[0].mxu0
        %v1341 = vadd.f32 0.0, %v1340
        %1342 = vdwg.mxu0
        %v1343 = vld [vmem:[#allocation2 + $0x5] ss:$0 sm:$0xff]
        %v1344 = vadd.f32 %v1339, %v1343
        %v1345 = vld [vmem:[#allocation2 + $0xa] ss:$0 sm:$0xff]
        %v1346 = vadd.f32 %v1341, %v1345
        %v1347 = vxor.u32 %v1344, 2147483648
        %v1348 = vmul.f32 %v1347, 1.442695
        %v1349 = vpow.pop %v1348
        %v1350 = vadd.f32 %v1349, 1.0
        %v1351 = vrcp.pop %v1350
        %v1352 = vmul.f32 1.0, %v1351
        %v1353 = vxor.u32 %v1346, 2147483648
        %v1354 = vmul.f32 %v1353, 1.442695
        %v1355 = vpow.pop %v1354
        %v1356 = vadd.f32 %v1355, 1.0
        %v1357 = vrcp.pop %v1356
        %v1358 = vmul.f32 1.0, %v1357
        %v1359 = vtanh.pop %v1344
        %v1360 = vtanh.pop %v1346
        %v1361 = vmul.f32 %v1352, %v1234
        %1363 = vrot.lane.b32.xlu0 %v1359, 32
        %v1364 = vpop.permute.xlu0 %1363
        %v1366 = vmul.f32 %v1352, %v1364
        %1368 = vrot.lane.b32.xlu0 %v1366, 32
        %v1369 = vpop.permute.xlu0 %1368
        %v1371 = vadd.f32 %v1361, %v1369
        %v1372 = vmul.f32 %v1358, %v1245
        %1374 = vrot.lane.b32.xlu0 %v1360, 32
        %v1375 = vpop.permute.xlu0 %1374
        %v1377 = vmul.f32 %v1358, %v1375
        %1379 = vrot.lane.b32.xlu0 %v1377, 32
        %v1380 = vpop.permute.xlu0 %1379
        %v1382 = vadd.f32 %v1372, %v1380
        %v1383 = vtanh.pop %v1371
        %1385 = vrot.lane.b32.xlu0 %v1383, 32
        %v1386 = vpop.permute.xlu0 %1385
        %v1388 = vmul.f32 %v1352, %v1386
        %v1389 = vtanh.pop %v1382
        %1391 = vrot.lane.b32.xlu0 %v1389, 32
        %v1392 = vpop.permute.xlu0 %1391
        %v1394 = vmul.f32 %v1358, %v1392
        %1396 = vrot.lane.b32.xlu0 %v1388, 64
        %v1397 = vpop.permute.xlu0 %1396
        %1399 = vst.msk [vmem:[#allocation3 + $0x5] sm:$0x1] %vm712, %v1397
        %1401 = vrot.lane.b32.xlu0 %v1394, 96
        %v1402 = vpop.permute.xlu0 %1401
        %1404 = vst.msk [vmem:[#allocation3 + $0x2] sm:$0x1] %vm718, %v1402
        %v1405 = vsel %vm437, %v1397, %v1402
        %v1407 = vsel %vm581, %v1405, 0
        %1409 = vmatprep.subr.mxu0 %v566
        %1410 = vmatpush1.msra.mxu0 %v565
        %1411 = vmatprep.subr.mxu0 %v568
        %1412 = vmatpush1.msra.mxu0 %v567
        %1413 = vmatprep.subr.mxu0 %v570
        %1414 = vmatpush1.msra.mxu0 %v569
        %1415 = vmatprep.subr.mxu0 %v572
        %1416 = vmatpush1.msra.mxu0 %v571
        %1417 = vmatprep.subr.mxu0 %v574
        %1418 = vmatpush1.msra.mxu0 %v573
        %1419 = vmatprep.subr.mxu0 %v576
        %1420 = vmatpush1.msra.mxu0 %v575
        %1421 = vmatprep.subr.mxu0 %v578
        %1422 = vmatpush1.msra.mxu0 %v577
        %1423 = vmatprep.subr.mxu0 %v580
        %1424 = vmatpush1.msra.mxu0 %v579
        %1425 = vmatprep.subr.mxu0 0.0
        %1426 = vmatpush1.msra.mxu0 0.0
        %1427 = vmatprep.subr.mxu0 0.0
        %1428 = vmatpush1.msra.mxu0 0.0
        %1429 = vmatprep.subr.mxu0 0.0
        %1430 = vmatpush1.msra.mxu0 0.0
        %1431 = vmatprep.subr.mxu0 0.0
        %1432 = vmatpush1.msra.mxu0 0.0
        %1433 = vmatprep.subr.mxu0 0.0
        %1434 = vmatpush1.msra.mxu0 0.0
        %1435 = vmatprep.subr.mxu0 0.0
        %1436 = vmatpush1.msra.mxu0 0.0
        %1437 = vmatprep.subr.mxu0 0.0
        %1438 = vmatpush1.msra.mxu0 0.0
        %1439 = vmatprep.subr.mxu0 0.0
        %1440 = vmatpush1.msra.mxu0 0.0
        %1441 = vmatprep.subr.mxu0 0.0
        %1442 = vmatpush1.msra.mxu0 0.0
        %1443 = vmatprep.subr.mxu0 0.0
        %1444 = vmatpush1.msra.mxu0 0.0
        %1445 = vmatprep.subr.mxu0 0.0
        %1446 = vmatpush1.msra.mxu0 0.0
        %1447 = vmatprep.subr.mxu0 0.0
        %1448 = vmatpush1.msra.mxu0 0.0
        %1449 = vmatprep.subr.mxu0 0.0
        %1450 = vmatpush1.msra.mxu0 0.0
        %1451 = vmatprep.subr.mxu0 0.0
        %1452 = vmatpush1.msra.mxu0 0.0
        %1453 = vmatprep.subr.mxu0 0.0
        %1454 = vmatpush1.msra.mxu0 0.0
        %1455 = vmatprep.subr.mxu0 0.0
        %1456 = vmatpush1.msra.mxu0 0.0
        %1457 = vmatprep.subr.mxu0 0.0
        %1458 = vmatpush1.msra.mxu0 0.0
        %1459 = vmatprep.subr.mxu0 0.0
        %1460 = vmatpush1.msra.mxu0 0.0
        %1461 = vmatprep.subr.mxu0 0.0
        %1462 = vmatpush1.msra.mxu0 0.0
        %1463 = vmatprep.subr.mxu0 0.0
        %1464 = vmatpush1.msra.mxu0 0.0
        %1465 = vmatprep.subr.mxu0 0.0
        %1466 = vmatpush1.msra.mxu0 0.0
        %1467 = vmatprep.subr.mxu0 0.0
        %1468 = vmatpush1.msra.mxu0 0.0
        %1469 = vmatprep.subr.mxu0 0.0
        %1470 = vmatpush1.msra.mxu0 0.0
        %1471 = vmatprep.subr.mxu0 0.0
        %1472 = vmatpush1.msra.mxu0 0.0
        %1473 = vmatprep.mubr.f32.mxu0 0.0
        %1474 = vmatmul.mubr.f32.gmra.mrb[0].mxu0 %v1407
        %v1475 = vpop.f32.mrb[0].mxu0
        %v1476 = vadd.f32 0.0, %v1475
        %v1477 = vpop.f32.mrb[0].mxu0
        %v1478 = vadd.f32 0.0, %v1477
        %1479 = vdwg.mxu0
        %v1480 = vld [vmem:[#allocation2 + $0x6] ss:$0 sm:$0xff]
        %v1481 = vadd.f32 %v1476, %v1480
        %v1482 = vld [vmem:[#allocation2 + $0x9] ss:$0 sm:$0xff]
        %v1483 = vadd.f32 %v1478, %v1482
        %v1484 = vxor.u32 %v1481, 2147483648
        %v1485 = vmul.f32 %v1484, 1.442695
        %v1486 = vpow.pop %v1485
        %v1487 = vadd.f32 %v1486, 1.0
        %v1488 = vrcp.pop %v1487
        %v1489 = vmul.f32 1.0, %v1488
        %v1490 = vxor.u32 %v1483, 2147483648
        %v1491 = vmul.f32 %v1490, 1.442695
        %v1492 = vpow.pop %v1491
        %v1493 = vadd.f32 %v1492, 1.0
        %v1494 = vrcp.pop %v1493
        %v1495 = vmul.f32 1.0, %v1494
        %v1496 = vtanh.pop %v1481
        %v1497 = vtanh.pop %v1483
        %v1498 = vmul.f32 %v1489, %v1371
        %1500 = vrot.lane.b32.xlu0 %v1496, 32
        %v1501 = vpop.permute.xlu0 %1500
        %v1503 = vmul.f32 %v1489, %v1501
        %1505 = vrot.lane.b32.xlu0 %v1503, 32
        %v1506 = vpop.permute.xlu0 %1505
        %v1508 = vadd.f32 %v1498, %v1506
        %v1509 = vmul.f32 %v1495, %v1382
        %1511 = vrot.lane.b32.xlu0 %v1497, 32
        %v1512 = vpop.permute.xlu0 %1511
        %v1514 = vmul.f32 %v1495, %v1512
        %1516 = vrot.lane.b32.xlu0 %v1514, 32
        %v1517 = vpop.permute.xlu0 %1516
        %v1519 = vadd.f32 %v1509, %v1517
        %v1520 = vtanh.pop %v1508
        %1522 = vrot.lane.b32.xlu0 %v1520, 32
        %v1523 = vpop.permute.xlu0 %1522
        %v1525 = vmul.f32 %v1489, %v1523
        %v1526 = vtanh.pop %v1519
        %1528 = vrot.lane.b32.xlu0 %v1526, 32
        %v1529 = vpop.permute.xlu0 %1528
        %v1531 = vmul.f32 %v1495, %v1529
        %1533 = vrot.lane.b32.xlu0 %v1525, 64
        %v1534 = vpop.permute.xlu0 %1533
        %1536 = vst.msk [vmem:[#allocation3 + $0x6] sm:$0x1] %vm712, %v1534
        %1538 = vrot.lane.b32.xlu0 %v1531, 96
        %v1539 = vpop.permute.xlu0 %1538
        %1541 = vst.msk [vmem:[#allocation3 + $0x1] sm:$0x1] %vm718, %v1539
        %v1542 = vsel %vm437, %v1534, %v1539
        %v1544 = vsel %vm581, %v1542, 0
        %1546 = vmatprep.subr.mxu0 %v566
        %1547 = vmatpush1.msra.mxu0 %v565
        %1548 = vmatprep.subr.mxu0 %v568
        %1549 = vmatpush1.msra.mxu0 %v567
        %1550 = vmatprep.subr.mxu0 %v570
        %1551 = vmatpush1.msra.mxu0 %v569
        %1552 = vmatprep.subr.mxu0 %v572
        %1553 = vmatpush1.msra.mxu0 %v571
        %1554 = vmatprep.subr.mxu0 %v574
        %1555 = vmatpush1.msra.mxu0 %v573
        %1556 = vmatprep.subr.mxu0 %v576
        %1557 = vmatpush1.msra.mxu0 %v575
        %1558 = vmatprep.subr.mxu0 %v578
        %1559 = vmatpush1.msra.mxu0 %v577
        %1560 = vmatprep.subr.mxu0 %v580
        %1561 = vmatpush1.msra.mxu0 %v579
        %1562 = vmatprep.subr.mxu0 0.0
        %1563 = vmatpush1.msra.mxu0 0.0
        %1564 = vmatprep.subr.mxu0 0.0
        %1565 = vmatpush1.msra.mxu0 0.0
        %1566 = vmatprep.subr.mxu0 0.0
        %1567 = vmatpush1.msra.mxu0 0.0
        %1568 = vmatprep.subr.mxu0 0.0
        %1569 = vmatpush1.msra.mxu0 0.0
        %1570 = vmatprep.subr.mxu0 0.0
        %1571 = vmatpush1.msra.mxu0 0.0
        %1572 = vmatprep.subr.mxu0 0.0
        %1573 = vmatpush1.msra.mxu0 0.0
        %1574 = vmatprep.subr.mxu0 0.0
        %1575 = vmatpush1.msra.mxu0 0.0
        %1576 = vmatprep.subr.mxu0 0.0
        %1577 = vmatpush1.msra.mxu0 0.0
        %1578 = vmatprep.subr.mxu0 0.0
        %1579 = vmatpush1.msra.mxu0 0.0
        %1580 = vmatprep.subr.mxu0 0.0
        %1581 = vmatpush1.msra.mxu0 0.0
        %1582 = vmatprep.subr.mxu0 0.0
        %1583 = vmatpush1.msra.mxu0 0.0
        %1584 = vmatprep.subr.mxu0 0.0
        %1585 = vmatpush1.msra.mxu0 0.0
        %1586 = vmatprep.subr.mxu0 0.0
        %1587 = vmatpush1.msra.mxu0 0.0
        %1588 = vmatprep.subr.mxu0 0.0
        %1589 = vmatpush1.msra.mxu0 0.0
        %1590 = vmatprep.subr.mxu0 0.0
        %1591 = vmatpush1.msra.mxu0 0.0
        %1592 = vmatprep.subr.mxu0 0.0
        %1593 = vmatpush1.msra.mxu0 0.0
        %1594 = vmatprep.subr.mxu0 0.0
        %1595 = vmatpush1.msra.mxu0 0.0
        %1596 = vmatprep.subr.mxu0 0.0
        %1597 = vmatpush1.msra.mxu0 0.0
        %1598 = vmatprep.subr.mxu0 0.0
        %1599 = vmatpush1.msra.mxu0 0.0
        %1600 = vmatprep.subr.mxu0 0.0
        %1601 = vmatpush1.msra.mxu0 0.0
        %1602 = vmatprep.subr.mxu0 0.0
        %1603 = vmatpush1.msra.mxu0 0.0
        %1604 = vmatprep.subr.mxu0 0.0
        %1605 = vmatpush1.msra.mxu0 0.0
        %1606 = vmatprep.subr.mxu0 0.0
        %1607 = vmatpush1.msra.mxu0 0.0
        %1608 = vmatprep.subr.mxu0 0.0
        %1609 = vmatpush1.msra.mxu0 0.0
        %1610 = vmatprep.mubr.f32.mxu0 0.0
        %1611 = vmatmul.mubr.f32.gmra.mrb[0].mxu0 %v1544
        %v1612 = vpop.f32.mrb[0].mxu0
        %v1613 = vadd.f32 0.0, %v1612
        %v1614 = vpop.f32.mrb[0].mxu0
        %v1615 = vadd.f32 0.0, %v1614
        %1616 = vdwg.mxu0
        %v1617 = vld [vmem:[#allocation2 + $0x7] ss:$0 sm:$0xff]
        %v1618 = vadd.f32 %v1613, %v1617
        %v1619 = vld [vmem:[#allocation2 + $0x8] ss:$0 sm:$0xff]
        %v1620 = vadd.f32 %v1615, %v1619
        %v1621 = vxor.u32 %v1618, 2147483648
        %v1622 = vmul.f32 %v1621, 1.442695
        %v1623 = vpow.pop %v1622
        %v1624 = vadd.f32 %v1623, 1.0
        %v1625 = vrcp.pop %v1624
        %v1626 = vmul.f32 1.0, %v1625
        %v1627 = vxor.u32 %v1620, 2147483648
        %v1628 = vmul.f32 %v1627, 1.442695
        %v1629 = vpow.pop %v1628
        %v1630 = vadd.f32 %v1629, 1.0
        %v1631 = vrcp.pop %v1630
        %v1632 = vmul.f32 1.0, %v1631
        %v1633 = vtanh.pop %v1618
        %v1634 = vtanh.pop %v1620
        %v1635 = vmul.f32 %v1626, %v1508
        %1637 = vrot.lane.b32.xlu0 %v1633, 32
        %v1638 = vpop.permute.xlu0 %1637
        %v1640 = vmul.f32 %v1626, %v1638
        %1642 = vrot.lane.b32.xlu0 %v1640, 32
        %v1643 = vpop.permute.xlu0 %1642
        %v1645 = vadd.f32 %v1635, %v1643
        %v1646 = vmul.f32 %v1632, %v1519
        %1648 = vrot.lane.b32.xlu0 %v1634, 32
        %v1649 = vpop.permute.xlu0 %1648
        %v1651 = vmul.f32 %v1632, %v1649
        %1653 = vrot.lane.b32.xlu0 %v1651, 32
        %v1654 = vpop.permute.xlu0 %1653
        %v1656 = vadd.f32 %v1646, %v1654
        %v1657 = vtanh.pop %v1645
        %1659 = vrot.lane.b32.xlu0 %v1657, 32
        %v1660 = vpop.permute.xlu0 %1659
        %v1662 = vmul.f32 %v1626, %v1660
        %v1663 = vtanh.pop %v1656
        %1665 = vrot.lane.b32.xlu0 %v1663, 32
        %v1666 = vpop.permute.xlu0 %1665
        %v1668 = vmul.f32 %v1632, %v1666
        %1670 = vrot.lane.b32.xlu0 %v1662, 64
        %v1671 = vpop.permute.xlu0 %1670
        %1673 = vst.msk [vmem:[#allocation3 + $0x7] sm:$0x1] %vm712, %v1671
        %1675 = vrot.lane.b32.xlu0 %v1668, 96
        %v1676 = vpop.permute.xlu0 %1675
        %1678 = vst.msk [vmem:[#allocation3] sm:$0x1] %vm718, %v1676
        %v1679 = vld [vmem:[#allocation3] sm:$0xff]
        %v1680 = vld [vmem:[%s6] sm:$0xff]
        %v1681 = vld [vmem:[%s6 + $0x8] sm:$0xff]
        %v1682 = vld [vmem:[%s6 + $0x10] sm:$0xff]
        %v1683 = vld [vmem:[%s6 + $0x18] sm:$0xff]
        %v1684 = vld [vmem:[%s6 + $0x20] sm:$0xff]
        %v1685 = vld [vmem:[%s6 + $0x28] sm:$0xff]
        %v1686 = vld [vmem:[%s6 + $0x30] sm:$0xff]
        %v1687 = vld [vmem:[%s6 + $0x38] sm:$0xff]
        %v1688 = vld [vmem:[%s6 + $0x40] sm:$0xff]
        %v1689 = vld [vmem:[%s6 + $0x48] sm:$0xff]
        %v1690 = vld [vmem:[%s6 + $0x50] sm:$0xff]
        %v1691 = vld [vmem:[%s6 + $0x58] sm:$0xff]
        %v1692 = vld [vmem:[%s6 + $0x60] sm:$0xff]
        %v1693 = vld [vmem:[%s6 + $0x68] sm:$0xff]
        %v1694 = vld [vmem:[%s6 + $0x70] sm:$0xff]
        %v1695 = vld [vmem:[%s6 + $0x78] sm:$0xff]
        %v1696 = vld [vmem:[%s7] sm:$0x3]
        %v1698 = vlaneseq
        %v1699 = vshrl.u32 %v1698, 7
        %v1700 = vsub.s32 0, %v1699
        %v1701 = vrot.slane %v1696, %v1700
        %v1702 = vlaneseq
        %v1703 = vshrl.u32 %v1702, 7
        %v1704 = vsub.s32 1, %v1703
        %v1705 = vrot.slane %v1696, %v1704
        %v1709 = vsel %vm581, %v1679, 0
        %1711 = vmatprep.subr.mxu0 %v1681
        %1712 = vmatpush1.msra.mxu0 %v1680
        %1713 = vmatprep.subr.mxu0 %v1683
        %1714 = vmatpush1.msra.mxu0 %v1682
        %1715 = vmatprep.subr.mxu0 %v1685
        %1716 = vmatpush1.msra.mxu0 %v1684
        %1717 = vmatprep.subr.mxu0 %v1687
        %1718 = vmatpush1.msra.mxu0 %v1686
        %1719 = vmatprep.subr.mxu0 %v1689
        %1720 = vmatpush1.msra.mxu0 %v1688
        %1721 = vmatprep.subr.mxu0 %v1691
        %1722 = vmatpush1.msra.mxu0 %v1690
        %1723 = vmatprep.subr.mxu0 %v1693
        %1724 = vmatpush1.msra.mxu0 %v1692
        %1725 = vmatprep.subr.mxu0 %v1695
        %1726 = vmatpush1.msra.mxu0 %v1694
        %1727 = vmatprep.subr.mxu0 0.0
        %1728 = vmatpush1.msra.mxu0 0.0
        %1729 = vmatprep.subr.mxu0 0.0
        %1730 = vmatpush1.msra.mxu0 0.0
        %1731 = vmatprep.subr.mxu0 0.0
        %1732 = vmatpush1.msra.mxu0 0.0
        %1733 = vmatprep.subr.mxu0 0.0
        %1734 = vmatpush1.msra.mxu0 0.0
        %1735 = vmatprep.subr.mxu0 0.0
        %1736 = vmatpush1.msra.mxu0 0.0
        %1737 = vmatprep.subr.mxu0 0.0
        %1738 = vmatpush1.msra.mxu0 0.0
        %1739 = vmatprep.subr.mxu0 0.0
        %1740 = vmatpush1.msra.mxu0 0.0
        %1741 = vmatprep.subr.mxu0 0.0
        %1742 = vmatpush1.msra.mxu0 0.0
        %1743 = vmatprep.subr.mxu0 0.0
        %1744 = vmatpush1.msra.mxu0 0.0
        %1745 = vmatprep.subr.mxu0 0.0
        %1746 = vmatpush1.msra.mxu0 0.0
        %1747 = vmatprep.subr.mxu0 0.0
        %1748 = vmatpush1.msra.mxu0 0.0
        %1749 = vmatprep.subr.mxu0 0.0
        %1750 = vmatpush1.msra.mxu0 0.0
        %1751 = vmatprep.subr.mxu0 0.0
        %1752 = vmatpush1.msra.mxu0 0.0
        %1753 = vmatprep.subr.mxu0 0.0
        %1754 = vmatpush1.msra.mxu0 0.0
        %1755 = vmatprep.subr.mxu0 0.0
        %1756 = vmatpush1.msra.mxu0 0.0
        %1757 = vmatprep.subr.mxu0 0.0
        %1758 = vmatpush1.msra.mxu0 0.0
        %1759 = vmatprep.subr.mxu0 0.0
        %1760 = vmatpush1.msra.mxu0 0.0
        %1761 = vmatprep.subr.mxu0 0.0
        %1762 = vmatpush1.msra.mxu0 0.0
        %1763 = vmatprep.subr.mxu0 0.0
        %1764 = vmatpush1.msra.mxu0 0.0
        %1765 = vmatprep.subr.mxu0 0.0
        %1766 = vmatpush1.msra.mxu0 0.0
        %1767 = vmatprep.subr.mxu0 0.0
        %1768 = vmatpush1.msra.mxu0 0.0
        %1769 = vmatprep.subr.mxu0 0.0
        %1770 = vmatpush1.msra.mxu0 0.0
        %1771 = vmatprep.subr.mxu0 0.0
        %1772 = vmatpush1.msra.mxu0 0.0
        %1773 = vmatprep.subr.mxu0 0.0
        %1774 = vmatpush1.msra.mxu0 0.0
        %1775 = vmatprep.mubr.f32.mxu0 0.0
        %1776 = vmatmul.mubr.f32.gmra.mrb[0].mxu0 %v1709
        %v1777 = vpop.f32.mrb[0].mxu0
        %v1778 = vadd.f32 %v1701, %v1777
        %v1779 = vpop.f32.mrb[0].mxu0
        %v1780 = vadd.f32 %v1705, %v1779
        %1781 = vdwg.mxu0
        %1782 = vst [vmem:[#allocation2] sm:$0xff] %v1778
        %1783 = vst [vmem:[#allocation2 + $0x8] sm:$0xff] %v1780
        %v1784 = vld [vmem:[%s8] sm:$0xff]
        %v1785 = vld [vmem:[%s8 + $0x8] sm:$0xff]
        %v1786 = vld [vmem:[%s8 + $0x10] sm:$0xff]
        %v1787 = vld [vmem:[%s8 + $0x18] sm:$0xff]
        %v1788 = vld [vmem:[%s8 + $0x20] sm:$0xff]
        %v1789 = vld [vmem:[%s8 + $0x28] sm:$0xff]
        %v1790 = vld [vmem:[%s8 + $0x30] sm:$0xff]
        %v1791 = vld [vmem:[%s8 + $0x38] sm:$0xff]
        %v1792 = vld [vmem:[%s8 + $0x40] sm:$0xff]
        %v1793 = vld [vmem:[%s8 + $0x48] sm:$0xff]
        %v1794 = vld [vmem:[%s8 + $0x50] sm:$0xff]
        %v1795 = vld [vmem:[%s8 + $0x58] sm:$0xff]
        %v1796 = vld [vmem:[%s8 + $0x60] sm:$0xff]
        %v1797 = vld [vmem:[%s8 + $0x68] sm:$0xff]
        %v1798 = vld [vmem:[%s8 + $0x70] sm:$0xff]
        %v1799 = vld [vmem:[%s8 + $0x78] sm:$0xff]
        %1800 = vmatprep.subr.mxu0 %v1785
        %1801 = vmatpush1.msra.mxu0 %v1784
        %1802 = vmatprep.subr.mxu0 %v1787
        %1803 = vmatpush1.msra.mxu0 %v1786
        %1804 = vmatprep.subr.mxu0 %v1789
        %1805 = vmatpush1.msra.mxu0 %v1788
        %1806 = vmatprep.subr.mxu0 %v1791
        %1807 = vmatpush1.msra.mxu0 %v1790
        %1808 = vmatprep.subr.mxu0 %v1793
        %1809 = vmatpush1.msra.mxu0 %v1792
        %1810 = vmatprep.subr.mxu0 %v1795
        %1811 = vmatpush1.msra.mxu0 %v1794
        %1812 = vmatprep.subr.mxu0 %v1797
        %1813 = vmatpush1.msra.mxu0 %v1796
        %1814 = vmatprep.subr.mxu0 %v1799
        %1815 = vmatpush1.msra.mxu0 %v1798
        %1816 = vmatprep.subr.mxu0 0.0
        %1817 = vmatpush1.msra.mxu0 0.0
        %1818 = vmatprep.subr.mxu0 0.0
        %1819 = vmatpush1.msra.mxu0 0.0
        %1820 = vmatprep.subr.mxu0 0.0
        %1821 = vmatpush1.msra.mxu0 0.0
        %1822 = vmatprep.subr.mxu0 0.0
        %1823 = vmatpush1.msra.mxu0 0.0
        %1824 = vmatprep.subr.mxu0 0.0
        %1825 = vmatpush1.msra.mxu0 0.0
        %1826 = vmatprep.subr.mxu0 0.0
        %1827 = vmatpush1.msra.mxu0 0.0
        %1828 = vmatprep.subr.mxu0 0.0
        %1829 = vmatpush1.msra.mxu0 0.0
        %1830 = vmatprep.subr.mxu0 0.0
        %1831 = vmatpush1.msra.mxu0 0.0
        %1832 = vmatprep.subr.mxu0 0.0
        %1833 = vmatpush1.msra.mxu0 0.0
        %1834 = vmatprep.subr.mxu0 0.0
        %1835 = vmatpush1.msra.mxu0 0.0
        %1836 = vmatprep.subr.mxu0 0.0
        %1837 = vmatpush1.msra.mxu0 0.0
        %1838 = vmatprep.subr.mxu0 0.0
        %1839 = vmatpush1.msra.mxu0 0.0
        %1840 = vmatprep.subr.mxu0 0.0
        %1841 = vmatpush1.msra.mxu0 0.0
        %1842 = vmatprep.subr.mxu0 0.0
        %1843 = vmatpush1.msra.mxu0 0.0
        %1844 = vmatprep.subr.mxu0 0.0
        %1845 = vmatpush1.msra.mxu0 0.0
        %1846 = vmatprep.subr.mxu0 0.0
        %1847 = vmatpush1.msra.mxu0 0.0
        %1848 = vmatprep.subr.mxu0 0.0
        %1849 = vmatpush1.msra.mxu0 0.0
        %1850 = vmatprep.subr.mxu0 0.0
        %1851 = vmatpush1.msra.mxu0 0.0
        %1852 = vmatprep.subr.mxu0 0.0
        %1853 = vmatpush1.msra.mxu0 0.0
        %1854 = vmatprep.subr.mxu0 0.0
        %1855 = vmatpush1.msra.mxu0 0.0
        %1856 = vmatprep.subr.mxu0 0.0
        %1857 = vmatpush1.msra.mxu0 0.0
        %1858 = vmatprep.subr.mxu0 0.0
        %1859 = vmatpush1.msra.mxu0 0.0
        %1860 = vmatprep.subr.mxu0 0.0
        %1861 = vmatpush1.msra.mxu0 0.0
        %1862 = vmatprep.subr.mxu0 0.0
        %1863 = vmatpush1.msra.mxu0 0.0
        %1864 = vmatprep.mubr.f32.mxu0 0.0
        %1865 = vmatmul.mubr.f32.gmra.mrb[0].mxu0 %v583
        %v1866 = vpop.f32.mrb[0].mxu0
        %v1867 = vadd.f32 0.0, %v1866
        %v1868 = vpop.f32.mrb[0].mxu0
        %v1869 = vadd.f32 0.0, %v1868
        %1870 = vdwg.mxu0
        %v1871 = vld [vmem:[#allocation2] ss:$0 sm:$0xff]
        %v1872 = vadd.f32 %v1867, %v1871
        %v1873 = vld [vmem:[#allocation2 + $0xf] ss:$0 sm:$0xff]
        %v1874 = vadd.f32 %v1869, %v1873
        %v1875 = vxor.u32 %v1872, 2147483648
        %v1876 = vmul.f32 %v1875, 1.442695
        %v1877 = vpow.pop %v1876
        %v1878 = vadd.f32 %v1877, 1.0
        %v1879 = vrcp.pop %v1878
        %v1880 = vmul.f32 1.0, %v1879
        %v1881 = vxor.u32 %v1874, 2147483648
        %v1882 = vmul.f32 %v1881, 1.442695
        %v1883 = vpow.pop %v1882
        %v1884 = vadd.f32 %v1883, 1.0
        %v1885 = vrcp.pop %v1884
        %v1886 = vmul.f32 1.0, %v1885
        %v1887 = vtanh.pop %v1872
        %v1888 = vtanh.pop %v1874
        %v1889 = vmul.f32 %v1880, 0.0
        %1891 = vrot.lane.b32.xlu0 %v1887, 32
        %v1892 = vpop.permute.xlu0 %1891
        %v1894 = vmul.f32 %v1880, %v1892
        %1896 = vrot.lane.b32.xlu0 %v1894, 32
        %v1897 = vpop.permute.xlu0 %1896
        %v1899 = vadd.f32 %v1889, %v1897
        %v1900 = vmul.f32 %v1886, 0.0
        %1902 = vrot.lane.b32.xlu0 %v1888, 32
        %v1903 = vpop.permute.xlu0 %1902
        %v1905 = vmul.f32 %v1886, %v1903
        %1907 = vrot.lane.b32.xlu0 %v1905, 32
        %v1908 = vpop.permute.xlu0 %1907
        %v1910 = vadd.f32 %v1900, %v1908
        %v1911 = vtanh.pop %v1899
        %1913 = vrot.lane.b32.xlu0 %v1911, 32
        %v1914 = vpop.permute.xlu0 %1913
        %v1916 = vmul.f32 %v1880, %v1914
        %v1917 = vtanh.pop %v1910
        %1919 = vrot.lane.b32.xlu0 %v1917, 32
        %v1920 = vpop.permute.xlu0 %1919
        %v1922 = vmul.f32 %v1886, %v1920
        %1924 = vrot.lane.b32.xlu0 %v1916, 64
        %v1925 = vpop.permute.xlu0 %1924
        %1927 = vst.msk [vmem:[#allocation3] sm:$0x1] %vm712, %v1925
        %1929 = vrot.lane.b32.xlu0 %v1922, 96
        %v1930 = vpop.permute.xlu0 %1929
        %1932 = vst.msk [vmem:[#allocation3 + $0x7] sm:$0x1] %vm718, %v1930
        %v1933 = vsel %vm437, %v1925, %v1930
        %v1935 = vsel %vm581, %v1933, 0
        %1937 = vmatprep.subr.mxu0 %v1785
        %1938 = vmatpush1.msra.mxu0 %v1784
        %1939 = vmatprep.subr.mxu0 %v1787
        %1940 = vmatpush1.msra.mxu0 %v1786
        %1941 = vmatprep.subr.mxu0 %v1789
        %1942 = vmatpush1.msra.mxu0 %v1788
        %1943 = vmatprep.subr.mxu0 %v1791
        %1944 = vmatpush1.msra.mxu0 %v1790
        %1945 = vmatprep.subr.mxu0 %v1793
        %1946 = vmatpush1.msra.mxu0 %v1792
        %1947 = vmatprep.subr.mxu0 %v1795
        %1948 = vmatpush1.msra.mxu0 %v1794
        %1949 = vmatprep.subr.mxu0 %v1797
        %1950 = vmatpush1.msra.mxu0 %v1796
        %1951 = vmatprep.subr.mxu0 %v1799
        %1952 = vmatpush1.msra.mxu0 %v1798
        %1953 = vmatprep.subr.mxu0 0.0
        %1954 = vmatpush1.msra.mxu0 0.0
        %1955 = vmatprep.subr.mxu0 0.0
        %1956 = vmatpush1.msra.mxu0 0.0
        %1957 = vmatprep.subr.mxu0 0.0
        %1958 = vmatpush1.msra.mxu0 0.0
        %1959 = vmatprep.subr.mxu0 0.0
        %1960 = vmatpush1.msra.mxu0 0.0
        %1961 = vmatprep.subr.mxu0 0.0
        %1962 = vmatpush1.msra.mxu0 0.0
        %1963 = vmatprep.subr.mxu0 0.0
        %1964 = vmatpush1.msra.mxu0 0.0
        %1965 = vmatprep.subr.mxu0 0.0
        %1966 = vmatpush1.msra.mxu0 0.0
        %1967 = vmatprep.subr.mxu0 0.0
        %1968 = vmatpush1.msra.mxu0 0.0
        %1969 = vmatprep.subr.mxu0 0.0
        %1970 = vmatpush1.msra.mxu0 0.0
        %1971 = vmatprep.subr.mxu0 0.0
        %1972 = vmatpush1.msra.mxu0 0.0
        %1973 = vmatprep.subr.mxu0 0.0
        %1974 = vmatpush1.msra.mxu0 0.0
        %1975 = vmatprep.subr.mxu0 0.0
        %1976 = vmatpush1.msra.mxu0 0.0
        %1977 = vmatprep.subr.mxu0 0.0
        %1978 = vmatpush1.msra.mxu0 0.0
        %1979 = vmatprep.subr.mxu0 0.0
        %1980 = vmatpush1.msra.mxu0 0.0
        %1981 = vmatprep.subr.mxu0 0.0
        %1982 = vmatpush1.msra.mxu0 0.0
        %1983 = vmatprep.subr.mxu0 0.0
        %1984 = vmatpush1.msra.mxu0 0.0
        %1985 = vmatprep.subr.mxu0 0.0
        %1986 = vmatpush1.msra.mxu0 0.0
        %1987 = vmatprep.subr.mxu0 0.0
        %1988 = vmatpush1.msra.mxu0 0.0
        %1989 = vmatprep.subr.mxu0 0.0
        %1990 = vmatpush1.msra.mxu0 0.0
        %1991 = vmatprep.subr.mxu0 0.0
        %1992 = vmatpush1.msra.mxu0 0.0
        %1993 = vmatprep.subr.mxu0 0.0
        %1994 = vmatpush1.msra.mxu0 0.0
        %1995 = vmatprep.subr.mxu0 0.0
        %1996 = vmatpush1.msra.mxu0 0.0
        %1997 = vmatprep.subr.mxu0 0.0
        %1998 = vmatpush1.msra.mxu0 0.0
        %1999 = vmatprep.subr.mxu0 0.0
        %2000 = vmatpush1.msra.mxu0 0.0
        %2001 = vmatprep.mubr.f32.mxu0 0.0
        %2002 = vmatmul.mubr.f32.gmra.mrb[0].mxu0 %v1935
        %v2003 = vpop.f32.mrb[0].mxu0
        %v2004 = vadd.f32 0.0, %v2003
        %v2005 = vpop.f32.mrb[0].mxu0
        %v2006 = vadd.f32 0.0, %v2005
        %2007 = vdwg.mxu0
        %v2008 = vld [vmem:[#allocation2 + $0x1] ss:$0 sm:$0xff]
        %v2009 = vadd.f32 %v2004, %v2008
        %v2010 = vld [vmem:[#allocation2 + $0xe] ss:$0 sm:$0xff]
        %v2011 = vadd.f32 %v2006, %v2010
        %v2012 = vxor.u32 %v2009, 2147483648
        %v2013 = vmul.f32 %v2012, 1.442695
        %v2014 = vpow.pop %v2013
        %v2015 = vadd.f32 %v2014, 1.0
        %v2016 = vrcp.pop %v2015
        %v2017 = vmul.f32 1.0, %v2016
        %v2018 = vxor.u32 %v2011, 2147483648
        %v2019 = vmul.f32 %v2018, 1.442695
        %v2020 = vpow.pop %v2019
        %v2021 = vadd.f32 %v2020, 1.0
        %v2022 = vrcp.pop %v2021
        %v2023 = vmul.f32 1.0, %v2022
        %v2024 = vtanh.pop %v2009
        %v2025 = vtanh.pop %v2011
        %v2026 = vmul.f32 %v2017, %v1899
        %2028 = vrot.lane.b32.xlu0 %v2024, 32
        %v2029 = vpop.permute.xlu0 %2028
        %v2031 = vmul.f32 %v2017, %v2029
        %2033 = vrot.lane.b32.xlu0 %v2031, 32
        %v2034 = vpop.permute.xlu0 %2033
        %v2036 = vadd.f32 %v2026, %v2034
        %v2037 = vmul.f32 %v2023, %v1910
        %2039 = vrot.lane.b32.xlu0 %v2025, 32
        %v2040 = vpop.permute.xlu0 %2039
        %v2042 = vmul.f32 %v2023, %v2040
        %2044 = vrot.lane.b32.xlu0 %v2042, 32
        %v2045 = vpop.permute.xlu0 %2044
        %v2047 = vadd.f32 %v2037, %v2045
        %v2048 = vtanh.pop %v2036
        %2050 = vrot.lane.b32.xlu0 %v2048, 32
        %v2051 = vpop.permute.xlu0 %2050
        %v2053 = vmul.f32 %v2017, %v2051
        %v2054 = vtanh.pop %v2047
        %2056 = vrot.lane.b32.xlu0 %v2054, 32
        %v2057 = vpop.permute.xlu0 %2056
        %v2059 = vmul.f32 %v2023, %v2057
        %2061 = vrot.lane.b32.xlu0 %v2053, 64
        %v2062 = vpop.permute.xlu0 %2061
        %2064 = vst.msk [vmem:[#allocation3 + $0x1] sm:$0x1] %vm712, %v2062
        %2066 = vrot.lane.b32.xlu0 %v2059, 96
        %v2067 = vpop.permute.xlu0 %2066
        %2069 = vst.msk [vmem:[#allocation3 + $0x6] sm:$0x1] %vm718, %v2067
        %v2070 = vsel %vm437, %v2062, %v2067
        %v2072 = vsel %vm581, %v2070, 0
        %2074 = vmatprep.subr.mxu0 %v1785
        %2075 = vmatpush1.msra.mxu0 %v1784
        %2076 = vmatprep.subr.mxu0 %v1787
        %2077 = vmatpush1.msra.mxu0 %v1786
        %2078 = vmatprep.subr.mxu0 %v1789
        %2079 = vmatpush1.msra.mxu0 %v1788
        %2080 = vmatprep.subr.mxu0 %v1791
        %2081 = vmatpush1.msra.mxu0 %v1790
        %2082 = vmatprep.subr.mxu0 %v1793
        %2083 = vmatpush1.msra.mxu0 %v1792
        %2084 = vmatprep.subr.mxu0 %v1795
        %2085 = vmatpush1.msra.mxu0 %v1794
        %2086 = vmatprep.subr.mxu0 %v1797
        %2087 = vmatpush1.msra.mxu0 %v1796
        %2088 = vmatprep.subr.mxu0 %v1799
        %2089 = vmatpush1.msra.mxu0 %v1798
        %2090 = vmatprep.subr.mxu0 0.0
        %2091 = vmatpush1.msra.mxu0 0.0
        %2092 = vmatprep.subr.mxu0 0.0
        %2093 = vmatpush1.msra.mxu0 0.0
        %2094 = vmatprep.subr.mxu0 0.0
        %2095 = vmatpush1.msra.mxu0 0.0
        %2096 = vmatprep.subr.mxu0 0.0
        %2097 = vmatpush1.msra.mxu0 0.0
        %2098 = vmatprep.subr.mxu0 0.0
        %2099 = vmatpush1.msra.mxu0 0.0
        %2100 = vmatprep.subr.mxu0 0.0
        %2101 = vmatpush1.msra.mxu0 0.0
        %2102 = vmatprep.subr.mxu0 0.0
        %2103 = vmatpush1.msra.mxu0 0.0
        %2104 = vmatprep.subr.mxu0 0.0
        %2105 = vmatpush1.msra.mxu0 0.0
        %2106 = vmatprep.subr.mxu0 0.0
        %2107 = vmatpush1.msra.mxu0 0.0
        %2108 = vmatprep.subr.mxu0 0.0
        %2109 = vmatpush1.msra.mxu0 0.0
        %2110 = vmatprep.subr.mxu0 0.0
        %2111 = vmatpush1.msra.mxu0 0.0
        %2112 = vmatprep.subr.mxu0 0.0
        %2113 = vmatpush1.msra.mxu0 0.0
        %2114 = vmatprep.subr.mxu0 0.0
        %2115 = vmatpush1.msra.mxu0 0.0
        %2116 = vmatprep.subr.mxu0 0.0
        %2117 = vmatpush1.msra.mxu0 0.0
        %2118 = vmatprep.subr.mxu0 0.0
        %2119 = vmatpush1.msra.mxu0 0.0
        %2120 = vmatprep.subr.mxu0 0.0
        %2121 = vmatpush1.msra.mxu0 0.0
        %2122 = vmatprep.subr.mxu0 0.0
        %2123 = vmatpush1.msra.mxu0 0.0
        %2124 = vmatprep.subr.mxu0 0.0
        %2125 = vmatpush1.msra.mxu0 0.0
        %2126 = vmatprep.subr.mxu0 0.0
        %2127 = vmatpush1.msra.mxu0 0.0
        %2128 = vmatprep.subr.mxu0 0.0
        %2129 = vmatpush1.msra.mxu0 0.0
        %2130 = vmatprep.subr.mxu0 0.0
        %2131 = vmatpush1.msra.mxu0 0.0
        %2132 = vmatprep.subr.mxu0 0.0
        %2133 = vmatpush1.msra.mxu0 0.0
        %2134 = vmatprep.subr.mxu0 0.0
        %2135 = vmatpush1.msra.mxu0 0.0
        %2136 = vmatprep.subr.mxu0 0.0
        %2137 = vmatpush1.msra.mxu0 0.0
        %2138 = vmatprep.mubr.f32.mxu0 0.0
        %2139 = vmatmul.mubr.f32.gmra.mrb[0].mxu0 %v2072
        %v2140 = vpop.f32.mrb[0].mxu0
        %v2141 = vadd.f32 0.0, %v2140
        %v2142 = vpop.f32.mrb[0].mxu0
        %v2143 = vadd.f32 0.0, %v2142
        %2144 = vdwg.mxu0
        %v2145 = vld [vmem:[#allocation2 + $0x2] ss:$0 sm:$0xff]
        %v2146 = vadd.f32 %v2141, %v2145
        %v2147 = vld [vmem:[#allocation2 + $0xd] ss:$0 sm:$0xff]
        %v2148 = vadd.f32 %v2143, %v2147
        %v2149 = vxor.u32 %v2146, 2147483648
        %v2150 = vmul.f32 %v2149, 1.442695
        %v2151 = vpow.pop %v2150
        %v2152 = vadd.f32 %v2151, 1.0
        %v2153 = vrcp.pop %v2152
        %v2154 = vmul.f32 1.0, %v2153
        %v2155 = vxor.u32 %v2148, 2147483648
        %v2156 = vmul.f32 %v2155, 1.442695
        %v2157 = vpow.pop %v2156
        %v2158 = vadd.f32 %v2157, 1.0
        %v2159 = vrcp.pop %v2158
        %v2160 = vmul.f32 1.0, %v2159
        %v2161 = vtanh.pop %v2146
        %v2162 = vtanh.pop %v2148
        %v2163 = vmul.f32 %v2154, %v2036
        %2165 = vrot.lane.b32.xlu0 %v2161, 32
        %v2166 = vpop.permute.xlu0 %2165
        %v2168 = vmul.f32 %v2154, %v2166
        %2170 = vrot.lane.b32.xlu0 %v2168, 32
        %v2171 = vpop.permute.xlu0 %2170
        %v2173 = vadd.f32 %v2163, %v2171
        %v2174 = vmul.f32 %v2160, %v2047
        %2176 = vrot.lane.b32.xlu0 %v2162, 32
        %v2177 = vpop.permute.xlu0 %2176
        %v2179 = vmul.f32 %v2160, %v2177
        %2181 = vrot.lane.b32.xlu0 %v2179, 32
        %v2182 = vpop.permute.xlu0 %2181
        %v2184 = vadd.f32 %v2174, %v2182
        %v2185 = vtanh.pop %v2173
        %2187 = vrot.lane.b32.xlu0 %v2185, 32
        %v2188 = vpop.permute.xlu0 %2187
        %v2190 = vmul.f32 %v2154, %v2188
        %v2191 = vtanh.pop %v2184
        %2193 = vrot.lane.b32.xlu0 %v2191, 32
        %v2194 = vpop.permute.xlu0 %2193
        %v2196 = vmul.f32 %v2160, %v2194
        %2198 = vrot.lane.b32.xlu0 %v2190, 64
        %v2199 = vpop.permute.xlu0 %2198
        %2201 = vst.msk [vmem:[#allocation3 + $0x2] sm:$0x1] %vm712, %v2199
        %2203 = vrot.lane.b32.xlu0 %v2196, 96
        %v2204 = vpop.permute.xlu0 %2203
        %2206 = vst.msk [vmem:[#allocation3 + $0x5] sm:$0x1] %vm718, %v2204
        %v2207 = vsel %vm437, %v2199, %v2204
        %v2209 = vsel %vm581, %v2207, 0
        %2211 = vmatprep.subr.mxu0 %v1785
        %2212 = vmatpush1.msra.mxu0 %v1784
        %2213 = vmatprep.subr.mxu0 %v1787
        %2214 = vmatpush1.msra.mxu0 %v1786
        %2215 = vmatprep.subr.mxu0 %v1789
        %2216 = vmatpush1.msra.mxu0 %v1788
        %2217 = vmatprep.subr.mxu0 %v1791
        %2218 = vmatpush1.msra.mxu0 %v1790
        %2219 = vmatprep.subr.mxu0 %v1793
        %2220 = vmatpush1.msra.mxu0 %v1792
        %2221 = vmatprep.subr.mxu0 %v1795
        %2222 = vmatpush1.msra.mxu0 %v1794
        %2223 = vmatprep.subr.mxu0 %v1797
        %2224 = vmatpush1.msra.mxu0 %v1796
        %2225 = vmatprep.subr.mxu0 %v1799
        %2226 = vmatpush1.msra.mxu0 %v1798
        %2227 = vmatprep.subr.mxu0 0.0
        %2228 = vmatpush1.msra.mxu0 0.0
        %2229 = vmatprep.subr.mxu0 0.0
        %2230 = vmatpush1.msra.mxu0 0.0
        %2231 = vmatprep.subr.mxu0 0.0
        %2232 = vmatpush1.msra.mxu0 0.0
        %2233 = vmatprep.subr.mxu0 0.0
        %2234 = vmatpush1.msra.mxu0 0.0
        %2235 = vmatprep.subr.mxu0 0.0
        %2236 = vmatpush1.msra.mxu0 0.0
        %2237 = vmatprep.subr.mxu0 0.0
        %2238 = vmatpush1.msra.mxu0 0.0
        %2239 = vmatprep.subr.mxu0 0.0
        %2240 = vmatpush1.msra.mxu0 0.0
        %2241 = vmatprep.subr.mxu0 0.0
        %2242 = vmatpush1.msra.mxu0 0.0
        %2243 = vmatprep.subr.mxu0 0.0
        %2244 = vmatpush1.msra.mxu0 0.0
        %2245 = vmatprep.subr.mxu0 0.0
        %2246 = vmatpush1.msra.mxu0 0.0
        %2247 = vmatprep.subr.mxu0 0.0
        %2248 = vmatpush1.msra.mxu0 0.0
        %2249 = vmatprep.subr.mxu0 0.0
        %2250 = vmatpush1.msra.mxu0 0.0
        %2251 = vmatprep.subr.mxu0 0.0
        %2252 = vmatpush1.msra.mxu0 0.0
        %2253 = vmatprep.subr.mxu0 0.0
        %2254 = vmatpush1.msra.mxu0 0.0
        %2255 = vmatprep.subr.mxu0 0.0
        %2256 = vmatpush1.msra.mxu0 0.0
        %2257 = vmatprep.subr.mxu0 0.0
        %2258 = vmatpush1.msra.mxu0 0.0
        %2259 = vmatprep.subr.mxu0 0.0
        %2260 = vmatpush1.msra.mxu0 0.0
        %2261 = vmatprep.subr.mxu0 0.0
        %2262 = vmatpush1.msra.mxu0 0.0
        %2263 = vmatprep.subr.mxu0 0.0
        %2264 = vmatpush1.msra.mxu0 0.0
        %2265 = vmatprep.subr.mxu0 0.0
        %2266 = vmatpush1.msra.mxu0 0.0
        %2267 = vmatprep.subr.mxu0 0.0
        %2268 = vmatpush1.msra.mxu0 0.0
        %2269 = vmatprep.subr.mxu0 0.0
        %2270 = vmatpush1.msra.mxu0 0.0
        %2271 = vmatprep.subr.mxu0 0.0
        %2272 = vmatpush1.msra.mxu0 0.0
        %2273 = vmatprep.subr.mxu0 0.0
        %2274 = vmatpush1.msra.mxu0 0.0
        %2275 = vmatprep.mubr.f32.mxu0 0.0
        %2276 = vmatmul.mubr.f32.gmra.mrb[0].mxu0 %v2209
        %v2277 = vpop.f32.mrb[0].mxu0
        %v2278 = vadd.f32 0.0, %v2277
        %v2279 = vpop.f32.mrb[0].mxu0
        %v2280 = vadd.f32 0.0, %v2279
        %2281 = vdwg.mxu0
        %v2282 = vld [vmem:[#allocation2 + $0x3] ss:$0 sm:$0xff]
        %v2283 = vadd.f32 %v2278, %v2282
        %v2284 = vld [vmem:[#allocation2 + $0xc] ss:$0 sm:$0xff]
        %v2285 = vadd.f32 %v2280, %v2284
        %v2286 = vxor.u32 %v2283, 2147483648
        %v2287 = vmul.f32 %v2286, 1.442695
        %v2288 = vpow.pop %v2287
        %v2289 = vadd.f32 %v2288, 1.0
        %v2290 = vrcp.pop %v2289
        %v2291 = vmul.f32 1.0, %v2290
        %v2292 = vxor.u32 %v2285, 2147483648
        %v2293 = vmul.f32 %v2292, 1.442695
        %v2294 = vpow.pop %v2293
        %v2295 = vadd.f32 %v2294, 1.0
        %v2296 = vrcp.pop %v2295
        %v2297 = vmul.f32 1.0, %v2296
        %v2298 = vtanh.pop %v2283
        %v2299 = vtanh.pop %v2285
        %v2300 = vmul.f32 %v2291, %v2173
        %2302 = vrot.lane.b32.xlu0 %v2298, 32
        %v2303 = vpop.permute.xlu0 %2302
        %v2305 = vmul.f32 %v2291, %v2303
        %2307 = vrot.lane.b32.xlu0 %v2305, 32
        %v2308 = vpop.permute.xlu0 %2307
        %v2310 = vadd.f32 %v2300, %v2308
        %v2311 = vmul.f32 %v2297, %v2184
        %2313 = vrot.lane.b32.xlu0 %v2299, 32
        %v2314 = vpop.permute.xlu0 %2313
        %v2316 = vmul.f32 %v2297, %v2314
        %2318 = vrot.lane.b32.xlu0 %v2316, 32
        %v2319 = vpop.permute.xlu0 %2318
        %v2321 = vadd.f32 %v2311, %v2319
        %v2322 = vtanh.pop %v2310
        %2324 = vrot.lane.b32.xlu0 %v2322, 32
        %v2325 = vpop.permute.xlu0 %2324
        %v2327 = vmul.f32 %v2291, %v2325
        %v2328 = vtanh.pop %v2321
        %2330 = vrot.lane.b32.xlu0 %v2328, 32
        %v2331 = vpop.permute.xlu0 %2330
        %v2333 = vmul.f32 %v2297, %v2331
        %2335 = vrot.lane.b32.xlu0 %v2327, 64
        %v2336 = vpop.permute.xlu0 %2335
        %2338 = vst.msk [vmem:[#allocation3 + $0x3] sm:$0x1] %vm712, %v2336
        %2340 = vrot.lane.b32.xlu0 %v2333, 96
        %v2341 = vpop.permute.xlu0 %2340
        %2343 = vst.msk [vmem:[#allocation3 + $0x4] sm:$0x1] %vm718, %v2341
        %v2344 = vsel %vm437, %v2336, %v2341
        %v2346 = vsel %vm581, %v2344, 0
        %2348 = vmatprep.subr.mxu0 %v1785
        %2349 = vmatpush1.msra.mxu0 %v1784
        %2350 = vmatprep.subr.mxu0 %v1787
        %2351 = vmatpush1.msra.mxu0 %v1786
        %2352 = vmatprep.subr.mxu0 %v1789
        %2353 = vmatpush1.msra.mxu0 %v1788
        %2354 = vmatprep.subr.mxu0 %v1791
        %2355 = vmatpush1.msra.mxu0 %v1790
        %2356 = vmatprep.subr.mxu0 %v1793
        %2357 = vmatpush1.msra.mxu0 %v1792
        %2358 = vmatprep.subr.mxu0 %v1795
        %2359 = vmatpush1.msra.mxu0 %v1794
        %2360 = vmatprep.subr.mxu0 %v1797
        %2361 = vmatpush1.msra.mxu0 %v1796
        %2362 = vmatprep.subr.mxu0 %v1799
        %2363 = vmatpush1.msra.mxu0 %v1798
        %2364 = vmatprep.subr.mxu0 0.0
        %2365 = vmatpush1.msra.mxu0 0.0
        %2366 = vmatprep.subr.mxu0 0.0
        %2367 = vmatpush1.msra.mxu0 0.0
        %2368 = vmatprep.subr.mxu0 0.0
        %2369 = vmatpush1.msra.mxu0 0.0
        %2370 = vmatprep.subr.mxu0 0.0
        %2371 = vmatpush1.msra.mxu0 0.0
        %2372 = vmatprep.subr.mxu0 0.0
        %2373 = vmatpush1.msra.mxu0 0.0
        %2374 = vmatprep.subr.mxu0 0.0
        %2375 = vmatpush1.msra.mxu0 0.0
        %2376 = vmatprep.subr.mxu0 0.0
        %2377 = vmatpush1.msra.mxu0 0.0
        %2378 = vmatprep.subr.mxu0 0.0
        %2379 = vmatpush1.msra.mxu0 0.0
        %2380 = vmatprep.subr.mxu0 0.0
        %2381 = vmatpush1.msra.mxu0 0.0
        %2382 = vmatprep.subr.mxu0 0.0
        %2383 = vmatpush1.msra.mxu0 0.0
        %2384 = vmatprep.subr.mxu0 0.0
        %2385 = vmatpush1.msra.mxu0 0.0
        %2386 = vmatprep.subr.mxu0 0.0
        %2387 = vmatpush1.msra.mxu0 0.0
        %2388 = vmatprep.subr.mxu0 0.0
        %2389 = vmatpush1.msra.mxu0 0.0
        %2390 = vmatprep.subr.mxu0 0.0
        %2391 = vmatpush1.msra.mxu0 0.0
        %2392 = vmatprep.subr.mxu0 0.0
        %2393 = vmatpush1.msra.mxu0 0.0
        %2394 = vmatprep.subr.mxu0 0.0
        %2395 = vmatpush1.msra.mxu0 0.0
        %2396 = vmatprep.subr.mxu0 0.0
        %2397 = vmatpush1.msra.mxu0 0.0
        %2398 = vmatprep.subr.mxu0 0.0
        %2399 = vmatpush1.msra.mxu0 0.0
        %2400 = vmatprep.subr.mxu0 0.0
        %2401 = vmatpush1.msra.mxu0 0.0
        %2402 = vmatprep.subr.mxu0 0.0
        %2403 = vmatpush1.msra.mxu0 0.0
        %2404 = vmatprep.subr.mxu0 0.0
        %2405 = vmatpush1.msra.mxu0 0.0
        %2406 = vmatprep.subr.mxu0 0.0
        %2407 = vmatpush1.msra.mxu0 0.0
        %2408 = vmatprep.subr.mxu0 0.0
        %2409 = vmatpush1.msra.mxu0 0.0
        %2410 = vmatprep.subr.mxu0 0.0
        %2411 = vmatpush1.msra.mxu0 0.0
        %2412 = vmatprep.mubr.f32.mxu0 0.0
        %2413 = vmatmul.mubr.f32.gmra.mrb[0].mxu0 %v2346
        %v2414 = vpop.f32.mrb[0].mxu0
        %v2415 = vadd.f32 0.0, %v2414
        %v2416 = vpop.f32.mrb[0].mxu0
        %v2417 = vadd.f32 0.0, %v2416
        %2418 = vdwg.mxu0
        %v2419 = vld [vmem:[#allocation2 + $0x4] ss:$0 sm:$0xff]
        %v2420 = vadd.f32 %v2415, %v2419
        %v2421 = vld [vmem:[#allocation2 + $0xb] ss:$0 sm:$0xff]
        %v2422 = vadd.f32 %v2417, %v2421
        %v2423 = vxor.u32 %v2420, 2147483648
        %v2424 = vmul.f32 %v2423, 1.442695
        %v2425 = vpow.pop %v2424
        %v2426 = vadd.f32 %v2425, 1.0
        %v2427 = vrcp.pop %v2426
        %v2428 = vmul.f32 1.0, %v2427
        %v2429 = vxor.u32 %v2422, 2147483648
        %v2430 = vmul.f32 %v2429, 1.442695
        %v2431 = vpow.pop %v2430
        %v2432 = vadd.f32 %v2431, 1.0
        %v2433 = vrcp.pop %v2432
        %v2434 = vmul.f32 1.0, %v2433
        %v2435 = vtanh.pop %v2420
        %v2436 = vtanh.pop %v2422
        %v2437 = vmul.f32 %v2428, %v2310
        %2439 = vrot.lane.b32.xlu0 %v2435, 32
        %v2440 = vpop.permute.xlu0 %2439
        %v2442 = vmul.f32 %v2428, %v2440
        %2444 = vrot.lane.b32.xlu0 %v2442, 32
        %v2445 = vpop.permute.xlu0 %2444
        %v2447 = vadd.f32 %v2437, %v2445
        %v2448 = vmul.f32 %v2434, %v2321
        %2450 = vrot.lane.b32.xlu0 %v2436, 32
        %v2451 = vpop.permute.xlu0 %2450
        %v2453 = vmul.f32 %v2434, %v2451
        %2455 = vrot.lane.b32.xlu0 %v2453, 32
        %v2456 = vpop.permute.xlu0 %2455
        %v2458 = vadd.f32 %v2448, %v2456
        %v2459 = vtanh.pop %v2447
        %2461 = vrot.lane.b32.xlu0 %v2459, 32
        %v2462 = vpop.permute.xlu0 %2461
        %v2464 = vmul.f32 %v2428, %v2462
        %v2465 = vtanh.pop %v2458
        %2467 = vrot.lane.b32.xlu0 %v2465, 32
        %v2468 = vpop.permute.xlu0 %2467
        %v2470 = vmul.f32 %v2434, %v2468
        %2472 = vrot.lane.b32.xlu0 %v2464, 64
        %v2473 = vpop.permute.xlu0 %2472
        %2475 = vst.msk [vmem:[#allocation3 + $0x4] sm:$0x1] %vm712, %v2473
        %2477 = vrot.lane.b32.xlu0 %v2470, 96
        %v2478 = vpop.permute.xlu0 %2477
        %2480 = vst.msk [vmem:[#allocation3 + $0x3] sm:$0x1] %vm718, %v2478
        %v2481 = vsel %vm437, %v2473, %v2478
        %v2483 = vsel %vm581, %v2481, 0
        %2485 = vmatprep.subr.mxu0 %v1785
        %2486 = vmatpush1.msra.mxu0 %v1784
        %2487 = vmatprep.subr.mxu0 %v1787
        %2488 = vmatpush1.msra.mxu0 %v1786
        %2489 = vmatprep.subr.mxu0 %v1789
        %2490 = vmatpush1.msra.mxu0 %v1788
        %2491 = vmatprep.subr.mxu0 %v1791
        %2492 = vmatpush1.msra.mxu0 %v1790
        %2493 = vmatprep.subr.mxu0 %v1793
        %2494 = vmatpush1.msra.mxu0 %v1792
        %2495 = vmatprep.subr.mxu0 %v1795
        %2496 = vmatpush1.msra.mxu0 %v1794
        %2497 = vmatprep.subr.mxu0 %v1797
        %2498 = vmatpush1.msra.mxu0 %v1796
        %2499 = vmatprep.subr.mxu0 %v1799
        %2500 = vmatpush1.msra.mxu0 %v1798
        %2501 = vmatprep.subr.mxu0 0.0
        %2502 = vmatpush1.msra.mxu0 0.0
        %2503 = vmatprep.subr.mxu0 0.0
        %2504 = vmatpush1.msra.mxu0 0.0
        %2505 = vmatprep.subr.mxu0 0.0
        %2506 = vmatpush1.msra.mxu0 0.0
        %2507 = vmatprep.subr.mxu0 0.0
        %2508 = vmatpush1.msra.mxu0 0.0
        %2509 = vmatprep.subr.mxu0 0.0
        %2510 = vmatpush1.msra.mxu0 0.0
        %2511 = vmatprep.subr.mxu0 0.0
        %2512 = vmatpush1.msra.mxu0 0.0
        %2513 = vmatprep.subr.mxu0 0.0
        %2514 = vmatpush1.msra.mxu0 0.0
        %2515 = vmatprep.subr.mxu0 0.0
        %2516 = vmatpush1.msra.mxu0 0.0
        %2517 = vmatprep.subr.mxu0 0.0
        %2518 = vmatpush1.msra.mxu0 0.0
        %2519 = vmatprep.subr.mxu0 0.0
        %2520 = vmatpush1.msra.mxu0 0.0
        %2521 = vmatprep.subr.mxu0 0.0
        %2522 = vmatpush1.msra.mxu0 0.0
        %2523 = vmatprep.subr.mxu0 0.0
        %2524 = vmatpush1.msra.mxu0 0.0
        %2525 = vmatprep.subr.mxu0 0.0
        %2526 = vmatpush1.msra.mxu0 0.0
        %2527 = vmatprep.subr.mxu0 0.0
        %2528 = vmatpush1.msra.mxu0 0.0
        %2529 = vmatprep.subr.mxu0 0.0
        %2530 = vmatpush1.msra.mxu0 0.0
        %2531 = vmatprep.subr.mxu0 0.0
        %2532 = vmatpush1.msra.mxu0 0.0
        %2533 = vmatprep.subr.mxu0 0.0
        %2534 = vmatpush1.msra.mxu0 0.0
        %2535 = vmatprep.subr.mxu0 0.0
        %2536 = vmatpush1.msra.mxu0 0.0
        %2537 = vmatprep.subr.mxu0 0.0
        %2538 = vmatpush1.msra.mxu0 0.0
        %2539 = vmatprep.subr.mxu0 0.0
        %2540 = vmatpush1.msra.mxu0 0.0
        %2541 = vmatprep.subr.mxu0 0.0
        %2542 = vmatpush1.msra.mxu0 0.0
        %2543 = vmatprep.subr.mxu0 0.0
        %2544 = vmatpush1.msra.mxu0 0.0
        %2545 = vmatprep.subr.mxu0 0.0
        %2546 = vmatpush1.msra.mxu0 0.0
        %2547 = vmatprep.subr.mxu0 0.0
        %2548 = vmatpush1.msra.mxu0 0.0
        %2549 = vmatprep.mubr.f32.mxu0 0.0
        %2550 = vmatmul.mubr.f32.gmra.mrb[0].mxu0 %v2483
        %v2551 = vpop.f32.mrb[0].mxu0
        %v2552 = vadd.f32 0.0, %v2551
        %v2553 = vpop.f32.mrb[0].mxu0
        %v2554 = vadd.f32 0.0, %v2553
        %2555 = vdwg.mxu0
        %v2556 = vld [vmem:[#allocation2 + $0x5] ss:$0 sm:$0xff]
        %v2557 = vadd.f32 %v2552, %v2556
        %v2558 = vld [vmem:[#allocation2 + $0xa] ss:$0 sm:$0xff]
        %v2559 = vadd.f32 %v2554, %v2558
        %v2560 = vxor.u32 %v2557, 2147483648
        %v2561 = vmul.f32 %v2560, 1.442695
        %v2562 = vpow.pop %v2561
        %v2563 = vadd.f32 %v2562, 1.0
        %v2564 = vrcp.pop %v2563
        %v2565 = vmul.f32 1.0, %v2564
        %v2566 = vxor.u32 %v2559, 2147483648
        %v2567 = vmul.f32 %v2566, 1.442695
        %v2568 = vpow.pop %v2567
        %v2569 = vadd.f32 %v2568, 1.0
        %v2570 = vrcp.pop %v2569
        %v2571 = vmul.f32 1.0, %v2570
        %v2572 = vtanh.pop %v2557
        %v2573 = vtanh.pop %v2559
        %v2574 = vmul.f32 %v2565, %v2447
        %2576 = vrot.lane.b32.xlu0 %v2572, 32
        %v2577 = vpop.permute.xlu0 %2576
        %v2579 = vmul.f32 %v2565, %v2577
        %2581 = vrot.lane.b32.xlu0 %v2579, 32
        %v2582 = vpop.permute.xlu0 %2581
        %v2584 = vadd.f32 %v2574, %v2582
        %v2585 = vmul.f32 %v2571, %v2458
        %2587 = vrot.lane.b32.xlu0 %v2573, 32
        %v2588 = vpop.permute.xlu0 %2587
        %v2590 = vmul.f32 %v2571, %v2588
        %2592 = vrot.lane.b32.xlu0 %v2590, 32
        %v2593 = vpop.permute.xlu0 %2592
        %v2595 = vadd.f32 %v2585, %v2593
        %v2596 = vtanh.pop %v2584
        %2598 = vrot.lane.b32.xlu0 %v2596, 32
        %v2599 = vpop.permute.xlu0 %2598
        %v2601 = vmul.f32 %v2565, %v2599
        %v2602 = vtanh.pop %v2595
        %2604 = vrot.lane.b32.xlu0 %v2602, 32
        %v2605 = vpop.permute.xlu0 %2604
        %v2607 = vmul.f32 %v2571, %v2605
        %2609 = vrot.lane.b32.xlu0 %v2601, 64
        %v2610 = vpop.permute.xlu0 %2609
        %2612 = vst.msk [vmem:[#allocation3 + $0x5] sm:$0x1] %vm712, %v2610
        %2614 = vrot.lane.b32.xlu0 %v2607, 96
        %v2615 = vpop.permute.xlu0 %2614
        %2617 = vst.msk [vmem:[#allocation3 + $0x2] sm:$0x1] %vm718, %v2615
        %v2618 = vsel %vm437, %v2610, %v2615
        %v2620 = vsel %vm581, %v2618, 0
        %2622 = vmatprep.subr.mxu0 %v1785
        %2623 = vmatpush1.msra.mxu0 %v1784
        %2624 = vmatprep.subr.mxu0 %v1787
        %2625 = vmatpush1.msra.mxu0 %v1786
        %2626 = vmatprep.subr.mxu0 %v1789
        %2627 = vmatpush1.msra.mxu0 %v1788
        %2628 = vmatprep.subr.mxu0 %v1791
        %2629 = vmatpush1.msra.mxu0 %v1790
        %2630 = vmatprep.subr.mxu0 %v1793
        %2631 = vmatpush1.msra.mxu0 %v1792
        %2632 = vmatprep.subr.mxu0 %v1795
        %2633 = vmatpush1.msra.mxu0 %v1794
        %2634 = vmatprep.subr.mxu0 %v1797
        %2635 = vmatpush1.msra.mxu0 %v1796
        %2636 = vmatprep.subr.mxu0 %v1799
        %2637 = vmatpush1.msra.mxu0 %v1798
        %2638 = vmatprep.subr.mxu0 0.0
        %2639 = vmatpush1.msra.mxu0 0.0
        %2640 = vmatprep.subr.mxu0 0.0
        %2641 = vmatpush1.msra.mxu0 0.0
        %2642 = vmatprep.subr.mxu0 0.0
        %2643 = vmatpush1.msra.mxu0 0.0
        %2644 = vmatprep.subr.mxu0 0.0
        %2645 = vmatpush1.msra.mxu0 0.0
        %2646 = vmatprep.subr.mxu0 0.0
        %2647 = vmatpush1.msra.mxu0 0.0
        %2648 = vmatprep.subr.mxu0 0.0
        %2649 = vmatpush1.msra.mxu0 0.0
        %2650 = vmatprep.subr.mxu0 0.0
        %2651 = vmatpush1.msra.mxu0 0.0
        %2652 = vmatprep.subr.mxu0 0.0
        %2653 = vmatpush1.msra.mxu0 0.0
        %2654 = vmatprep.subr.mxu0 0.0
        %2655 = vmatpush1.msra.mxu0 0.0
        %2656 = vmatprep.subr.mxu0 0.0
        %2657 = vmatpush1.msra.mxu0 0.0
        %2658 = vmatprep.subr.mxu0 0.0
        %2659 = vmatpush1.msra.mxu0 0.0
        %2660 = vmatprep.subr.mxu0 0.0
        %2661 = vmatpush1.msra.mxu0 0.0
        %2662 = vmatprep.subr.mxu0 0.0
        %2663 = vmatpush1.msra.mxu0 0.0
        %2664 = vmatprep.subr.mxu0 0.0
        %2665 = vmatpush1.msra.mxu0 0.0
        %2666 = vmatprep.subr.mxu0 0.0
        %2667 = vmatpush1.msra.mxu0 0.0
        %2668 = vmatprep.subr.mxu0 0.0
        %2669 = vmatpush1.msra.mxu0 0.0
        %2670 = vmatprep.subr.mxu0 0.0
        %2671 = vmatpush1.msra.mxu0 0.0
        %2672 = vmatprep.subr.mxu0 0.0
        %2673 = vmatpush1.msra.mxu0 0.0
        %2674 = vmatprep.subr.mxu0 0.0
        %2675 = vmatpush1.msra.mxu0 0.0
        %2676 = vmatprep.subr.mxu0 0.0
        %2677 = vmatpush1.msra.mxu0 0.0
        %2678 = vmatprep.subr.mxu0 0.0
        %2679 = vmatpush1.msra.mxu0 0.0
        %2680 = vmatprep.subr.mxu0 0.0
        %2681 = vmatpush1.msra.mxu0 0.0
        %2682 = vmatprep.subr.mxu0 0.0
        %2683 = vmatpush1.msra.mxu0 0.0
        %2684 = vmatprep.subr.mxu0 0.0
        %2685 = vmatpush1.msra.mxu0 0.0
        %2686 = vmatprep.mubr.f32.mxu0 0.0
        %2687 = vmatmul.mubr.f32.gmra.mrb[0].mxu0 %v2620
        %v2688 = vpop.f32.mrb[0].mxu0
        %v2689 = vadd.f32 0.0, %v2688
        %v2690 = vpop.f32.mrb[0].mxu0
        %v2691 = vadd.f32 0.0, %v2690
        %2692 = vdwg.mxu0
        %v2693 = vld [vmem:[#allocation2 + $0x6] ss:$0 sm:$0xff]
        %v2694 = vadd.f32 %v2689, %v2693
        %v2695 = vld [vmem:[#allocation2 + $0x9] ss:$0 sm:$0xff]
        %v2696 = vadd.f32 %v2691, %v2695
        %v2697 = vxor.u32 %v2694, 2147483648
        %v2698 = vmul.f32 %v2697, 1.442695
        %v2699 = vpow.pop %v2698
        %v2700 = vadd.f32 %v2699, 1.0
        %v2701 = vrcp.pop %v2700
        %v2702 = vmul.f32 1.0, %v2701
        %v2703 = vxor.u32 %v2696, 2147483648
        %v2704 = vmul.f32 %v2703, 1.442695
        %v2705 = vpow.pop %v2704
        %v2706 = vadd.f32 %v2705, 1.0
        %v2707 = vrcp.pop %v2706
        %v2708 = vmul.f32 1.0, %v2707
        %v2709 = vtanh.pop %v2694
        %v2710 = vtanh.pop %v2696
        %v2711 = vmul.f32 %v2702, %v2584
        %2713 = vrot.lane.b32.xlu0 %v2709, 32
        %v2714 = vpop.permute.xlu0 %2713
        %v2716 = vmul.f32 %v2702, %v2714
        %2718 = vrot.lane.b32.xlu0 %v2716, 32
        %v2719 = vpop.permute.xlu0 %2718
        %v2721 = vadd.f32 %v2711, %v2719
        %v2722 = vmul.f32 %v2708, %v2595
        %2724 = vrot.lane.b32.xlu0 %v2710, 32
        %v2725 = vpop.permute.xlu0 %2724
        %v2727 = vmul.f32 %v2708, %v2725
        %2729 = vrot.lane.b32.xlu0 %v2727, 32
        %v2730 = vpop.permute.xlu0 %2729
        %v2732 = vadd.f32 %v2722, %v2730
        %v2733 = vtanh.pop %v2721
        %2735 = vrot.lane.b32.xlu0 %v2733, 32
        %v2736 = vpop.permute.xlu0 %2735
        %v2738 = vmul.f32 %v2702, %v2736
        %v2739 = vtanh.pop %v2732
        %2741 = vrot.lane.b32.xlu0 %v2739, 32
        %v2742 = vpop.permute.xlu0 %2741
        %v2744 = vmul.f32 %v2708, %v2742
        %2746 = vrot.lane.b32.xlu0 %v2738, 64
        %v2747 = vpop.permute.xlu0 %2746
        %2749 = vst.msk [vmem:[#allocation3 + $0x6] sm:$0x1] %vm712, %v2747
        %2751 = vrot.lane.b32.xlu0 %v2744, 96
        %v2752 = vpop.permute.xlu0 %2751
        %2754 = vst.msk [vmem:[#allocation3 + $0x1] sm:$0x1] %vm718, %v2752
        %v2755 = vsel %vm437, %v2747, %v2752
        %v2757 = vsel %vm581, %v2755, 0
        %2759 = vmatprep.subr.mxu0 %v1785
        %2760 = vmatpush1.msra.mxu0 %v1784
        %2761 = vmatprep.subr.mxu0 %v1787
        %2762 = vmatpush1.msra.mxu0 %v1786
        %2763 = vmatprep.subr.mxu0 %v1789
        %2764 = vmatpush1.msra.mxu0 %v1788
        %2765 = vmatprep.subr.mxu0 %v1791
        %2766 = vmatpush1.msra.mxu0 %v1790
        %2767 = vmatprep.subr.mxu0 %v1793
        %2768 = vmatpush1.msra.mxu0 %v1792
        %2769 = vmatprep.subr.mxu0 %v1795
        %2770 = vmatpush1.msra.mxu0 %v1794
        %2771 = vmatprep.subr.mxu0 %v1797
        %2772 = vmatpush1.msra.mxu0 %v1796
        %2773 = vmatprep.subr.mxu0 %v1799
        %2774 = vmatpush1.msra.mxu0 %v1798
        %2775 = vmatprep.subr.mxu0 0.0
        %2776 = vmatpush1.msra.mxu0 0.0
        %2777 = vmatprep.subr.mxu0 0.0
        %2778 = vmatpush1.msra.mxu0 0.0
        %2779 = vmatprep.subr.mxu0 0.0
        %2780 = vmatpush1.msra.mxu0 0.0
        %2781 = vmatprep.subr.mxu0 0.0
        %2782 = vmatpush1.msra.mxu0 0.0
        %2783 = vmatprep.subr.mxu0 0.0
        %2784 = vmatpush1.msra.mxu0 0.0
        %2785 = vmatprep.subr.mxu0 0.0
        %2786 = vmatpush1.msra.mxu0 0.0
        %2787 = vmatprep.subr.mxu0 0.0
        %2788 = vmatpush1.msra.mxu0 0.0
        %2789 = vmatprep.subr.mxu0 0.0
        %2790 = vmatpush1.msra.mxu0 0.0
        %2791 = vmatprep.subr.mxu0 0.0
        %2792 = vmatpush1.msra.mxu0 0.0
        %2793 = vmatprep.subr.mxu0 0.0
        %2794 = vmatpush1.msra.mxu0 0.0
        %2795 = vmatprep.subr.mxu0 0.0
        %2796 = vmatpush1.msra.mxu0 0.0
        %2797 = vmatprep.subr.mxu0 0.0
        %2798 = vmatpush1.msra.mxu0 0.0
        %2799 = vmatprep.subr.mxu0 0.0
        %2800 = vmatpush1.msra.mxu0 0.0
        %2801 = vmatprep.subr.mxu0 0.0
        %2802 = vmatpush1.msra.mxu0 0.0
        %2803 = vmatprep.subr.mxu0 0.0
        %2804 = vmatpush1.msra.mxu0 0.0
        %2805 = vmatprep.subr.mxu0 0.0
        %2806 = vmatpush1.msra.mxu0 0.0
        %2807 = vmatprep.subr.mxu0 0.0
        %2808 = vmatpush1.msra.mxu0 0.0
        %2809 = vmatprep.subr.mxu0 0.0
        %2810 = vmatpush1.msra.mxu0 0.0
        %2811 = vmatprep.subr.mxu0 0.0
        %2812 = vmatpush1.msra.mxu0 0.0
        %2813 = vmatprep.subr.mxu0 0.0
        %2814 = vmatpush1.msra.mxu0 0.0
        %2815 = vmatprep.subr.mxu0 0.0
        %2816 = vmatpush1.msra.mxu0 0.0
        %2817 = vmatprep.subr.mxu0 0.0
        %2818 = vmatpush1.msra.mxu0 0.0
        %2819 = vmatprep.subr.mxu0 0.0
        %2820 = vmatpush1.msra.mxu0 0.0
        %2821 = vmatprep.subr.mxu0 0.0
        %2822 = vmatpush1.msra.mxu0 0.0
        %2823 = vmatprep.mubr.f32.mxu0 0.0
        %2824 = vmatmul.mubr.f32.gmra.mrb[0].mxu0 %v2757
        %v2825 = vpop.f32.mrb[0].mxu0
        %v2826 = vadd.f32 0.0, %v2825
        %v2827 = vpop.f32.mrb[0].mxu0
        %v2828 = vadd.f32 0.0, %v2827
        %2829 = vdwg.mxu0
        %v2830 = vld [vmem:[#allocation2 + $0x7] ss:$0 sm:$0xff]
        %v2831 = vadd.f32 %v2826, %v2830
        %v2832 = vld [vmem:[#allocation2 + $0x8] ss:$0 sm:$0xff]
        %v2833 = vadd.f32 %v2828, %v2832
        %v2834 = vxor.u32 %v2831, 2147483648
        %v2835 = vmul.f32 %v2834, 1.442695
        %v2836 = vpow.pop %v2835
        %v2837 = vadd.f32 %v2836, 1.0
        %v2838 = vrcp.pop %v2837
        %v2839 = vmul.f32 1.0, %v2838
        %v2840 = vxor.u32 %v2833, 2147483648
        %v2841 = vmul.f32 %v2840, 1.442695
        %v2842 = vpow.pop %v2841
        %v2843 = vadd.f32 %v2842, 1.0
        %v2844 = vrcp.pop %v2843
        %v2845 = vmul.f32 1.0, %v2844
        %v2846 = vtanh.pop %v2831
        %v2847 = vtanh.pop %v2833
        %v2848 = vmul.f32 %v2839, %v2721
        %2850 = vrot.lane.b32.xlu0 %v2846, 32
        %v2851 = vpop.permute.xlu0 %2850
        %v2853 = vmul.f32 %v2839, %v2851
        %2855 = vrot.lane.b32.xlu0 %v2853, 32
        %v2856 = vpop.permute.xlu0 %2855
        %v2858 = vadd.f32 %v2848, %v2856
        %v2859 = vmul.f32 %v2845, %v2732
        %2861 = vrot.lane.b32.xlu0 %v2847, 32
        %v2862 = vpop.permute.xlu0 %2861
        %v2864 = vmul.f32 %v2845, %v2862
        %2866 = vrot.lane.b32.xlu0 %v2864, 32
        %v2867 = vpop.permute.xlu0 %2866
        %v2869 = vadd.f32 %v2859, %v2867
        %v2870 = vtanh.pop %v2858
        %2872 = vrot.lane.b32.xlu0 %v2870, 32
        %v2873 = vpop.permute.xlu0 %2872
        %v2875 = vmul.f32 %v2839, %v2873
        %v2876 = vtanh.pop %v2869
        %2878 = vrot.lane.b32.xlu0 %v2876, 32
        %v2879 = vpop.permute.xlu0 %2878
        %v2881 = vmul.f32 %v2845, %v2879
        %2883 = vrot.lane.b32.xlu0 %v2875, 64
        %v2884 = vpop.permute.xlu0 %2883
        %2886 = vst.msk [vmem:[#allocation3 + $0x7] sm:$0x1] %vm712, %v2884
        %2888 = vrot.lane.b32.xlu0 %v2881, 96
        %v2889 = vpop.permute.xlu0 %2888
        %2891 = vst.msk [vmem:[#allocation3] sm:$0x1] %vm718, %v2889
        %v2892 = vld [vmem:[#allocation3] sm:$0xff]
        %v2893 = vld [vmem:[%s9] sm:$0xff]
        %v2894 = vld [vmem:[%s9 + $0x8] sm:$0xff]
        %v2895 = vld [vmem:[%s9 + $0x10] sm:$0xff]
        %v2896 = vld [vmem:[%s9 + $0x18] sm:$0xff]
        %v2897 = vld [vmem:[%s9 + $0x20] sm:$0xff]
        %v2898 = vld [vmem:[%s9 + $0x28] sm:$0xff]
        %v2899 = vld [vmem:[%s9 + $0x30] sm:$0xff]
        %v2900 = vld [vmem:[%s9 + $0x38] sm:$0xff]
        %v2901 = vld [vmem:[%s10] sm:$0x1]
        %v2903 = vlaneseq
        %v2904 = vshrl.u32 %v2903, 7
        %v2905 = vsub.s32 0, %v2904
        %v2906 = vrot.slane %v2901, %v2905
        %v2909 = vsel %vm581, %v2892, 0
        %2911 = vmatprep.subr.mxu0 0.0
        %2912 = vmatpush1.msra.mxu0 %v2893
        %2913 = vmatprep.subr.mxu0 0.0
        %2914 = vmatpush1.msra.mxu0 %v2894
        %2915 = vmatprep.subr.mxu0 0.0
        %2916 = vmatpush1.msra.mxu0 %v2895
        %2917 = vmatprep.subr.mxu0 0.0
        %2918 = vmatpush1.msra.mxu0 %v2896
        %2919 = vmatprep.subr.mxu0 0.0
        %2920 = vmatpush1.msra.mxu0 %v2897
        %2921 = vmatprep.subr.mxu0 0.0
        %2922 = vmatpush1.msra.mxu0 %v2898
        %2923 = vmatprep.subr.mxu0 0.0
        %2924 = vmatpush1.msra.mxu0 %v2899
        %2925 = vmatprep.subr.mxu0 0.0
        %2926 = vmatpush1.msra.mxu0 %v2900
        %2927 = vmatprep.subr.mxu0 0.0
        %2928 = vmatpush1.msra.mxu0 0.0
        %2929 = vmatprep.subr.mxu0 0.0
        %2930 = vmatpush1.msra.mxu0 0.0
        %2931 = vmatprep.subr.mxu0 0.0
        %2932 = vmatpush1.msra.mxu0 0.0
        %2933 = vmatprep.subr.mxu0 0.0
        %2934 = vmatpush1.msra.mxu0 0.0
        %2935 = vmatprep.subr.mxu0 0.0
        %2936 = vmatpush1.msra.mxu0 0.0
        %2937 = vmatprep.subr.mxu0 0.0
        %2938 = vmatpush1.msra.mxu0 0.0
        %2939 = vmatprep.subr.mxu0 0.0
        %2940 = vmatpush1.msra.mxu0 0.0
        %2941 = vmatprep.subr.mxu0 0.0
        %2942 = vmatpush1.msra.mxu0 0.0
        %2943 = vmatprep.subr.mxu0 0.0
        %2944 = vmatpush1.msra.mxu0 0.0
        %2945 = vmatprep.subr.mxu0 0.0
        %2946 = vmatpush1.msra.mxu0 0.0
        %2947 = vmatprep.subr.mxu0 0.0
        %2948 = vmatpush1.msra.mxu0 0.0
        %2949 = vmatprep.subr.mxu0 0.0
        %2950 = vmatpush1.msra.mxu0 0.0
        %2951 = vmatprep.subr.mxu0 0.0
        %2952 = vmatpush1.msra.mxu0 0.0
        %2953 = vmatprep.subr.mxu0 0.0
        %2954 = vmatpush1.msra.mxu0 0.0
        %2955 = vmatprep.subr.mxu0 0.0
        %2956 = vmatpush1.msra.mxu0 0.0
        %2957 = vmatprep.subr.mxu0 0.0
        %2958 = vmatpush1.msra.mxu0 0.0
        %2959 = vmatprep.subr.mxu0 0.0
        %2960 = vmatpush1.msra.mxu0 0.0
        %2961 = vmatprep.subr.mxu0 0.0
        %2962 = vmatpush1.msra.mxu0 0.0
        %2963 = vmatprep.subr.mxu0 0.0
        %2964 = vmatpush1.msra.mxu0 0.0
        %2965 = vmatprep.subr.mxu0 0.0
        %2966 = vmatpush1.msra.mxu0 0.0
        %2967 = vmatprep.subr.mxu0 0.0
        %2968 = vmatpush1.msra.mxu0 0.0
        %2969 = vmatprep.subr.mxu0 0.0
        %2970 = vmatpush1.msra.mxu0 0.0
        %2971 = vmatprep.subr.mxu0 0.0
        %2972 = vmatpush1.msra.mxu0 0.0
        %2973 = vmatprep.subr.mxu0 0.0
        %2974 = vmatpush1.msra.mxu0 0.0
        %2975 = vmatprep.mubr.f32.mxu0 0.0
        %2976 = vmatmul.mubr.f32.gmra.mrb[0].mxu0 %v2909
        %v2977 = vpop.f32.mrb[0].mxu0
        %v2978 = vadd.f32 %v2906, %v2977
        %v2979 = vpop.f32.mrb[0].mxu0
        %2980 = vdwg.mxu0
        %vm2981 = vcmp.gt.f32.partialorder %v2978, 0.0
        %v2982 = vmul.f32 %v2978, 0.01
        %v2983 = vsel %vm2981, %v2978, %v2982
        %v2984 = vld [vmem:[%s11] sm:$0xff]
        %v2985 = vld [vmem:[%s11 + $0x8] sm:$0xff]
        %v2986 = vld [vmem:[%s12] sm:$0x1]
        %v2988 = vlaneseq
        %v2989 = vshrl.u32 %v2988, 7
        %v2990 = vsub.s32 0, %v2989
        %v2991 = vrot.slane %v2986, %v2990
        %vm2993 = vcmask 130048
        %v2995 = vsel %vm2993, %v2983, 0
        %2997 = vmatprep.subr.mxu0 0.0
        %2998 = vmatpush1.msra.mxu0 %v2984
        %2999 = vmatprep.subr.mxu0 0.0
        %3000 = vmatpush1.msra.mxu0 %v2985
        %3001 = vmatprep.subr.mxu0 0.0
        %3002 = vmatpush1.msra.mxu0 0.0
        %3003 = vmatprep.subr.mxu0 0.0
        %3004 = vmatpush1.msra.mxu0 0.0
        %3005 = vmatprep.subr.mxu0 0.0
        %3006 = vmatpush1.msra.mxu0 0.0
        %3007 = vmatprep.subr.mxu0 0.0
        %3008 = vmatpush1.msra.mxu0 0.0
        %3009 = vmatprep.subr.mxu0 0.0
        %3010 = vmatpush1.msra.mxu0 0.0
        %3011 = vmatprep.subr.mxu0 0.0
        %3012 = vmatpush1.msra.mxu0 0.0
        %3013 = vmatprep.subr.mxu0 0.0
        %3014 = vmatpush1.msra.mxu0 0.0
        %3015 = vmatprep.subr.mxu0 0.0
        %3016 = vmatpush1.msra.mxu0 0.0
        %3017 = vmatprep.subr.mxu0 0.0
        %3018 = vmatpush1.msra.mxu0 0.0
        %3019 = vmatprep.subr.mxu0 0.0
        %3020 = vmatpush1.msra.mxu0 0.0
        %3021 = vmatprep.subr.mxu0 0.0
        %3022 = vmatpush1.msra.mxu0 0.0
        %3023 = vmatprep.subr.mxu0 0.0
        %3024 = vmatpush1.msra.mxu0 0.0
        %3025 = vmatprep.subr.mxu0 0.0
        %3026 = vmatpush1.msra.mxu0 0.0
        %3027 = vmatprep.subr.mxu0 0.0
        %3028 = vmatpush1.msra.mxu0 0.0
        %3029 = vmatprep.subr.mxu0 0.0
        %3030 = vmatpush1.msra.mxu0 0.0
        %3031 = vmatprep.subr.mxu0 0.0
        %3032 = vmatpush1.msra.mxu0 0.0
        %3033 = vmatprep.subr.mxu0 0.0
        %3034 = vmatpush1.msra.mxu0 0.0
        %3035 = vmatprep.subr.mxu0 0.0
        %3036 = vmatpush1.msra.mxu0 0.0
        %3037 = vmatprep.subr.mxu0 0.0
        %3038 = vmatpush1.msra.mxu0 0.0
        %3039 = vmatprep.subr.mxu0 0.0
        %3040 = vmatpush1.msra.mxu0 0.0
        %3041 = vmatprep.subr.mxu0 0.0
        %3042 = vmatpush1.msra.mxu0 0.0
        %3043 = vmatprep.subr.mxu0 0.0
        %3044 = vmatpush1.msra.mxu0 0.0
        %3045 = vmatprep.subr.mxu0 0.0
        %3046 = vmatpush1.msra.mxu0 0.0
        %3047 = vmatprep.subr.mxu0 0.0
        %3048 = vmatpush1.msra.mxu0 0.0
        %3049 = vmatprep.subr.mxu0 0.0
        %3050 = vmatpush1.msra.mxu0 0.0
        %3051 = vmatprep.subr.mxu0 0.0
        %3052 = vmatpush1.msra.mxu0 0.0
        %3053 = vmatprep.subr.mxu0 0.0
        %3054 = vmatpush1.msra.mxu0 0.0
        %3055 = vmatprep.subr.mxu0 0.0
        %3056 = vmatpush1.msra.mxu0 0.0
        %3057 = vmatprep.subr.mxu0 0.0
        %3058 = vmatpush1.msra.mxu0 0.0
        %3059 = vmatprep.subr.mxu0 0.0
        %3060 = vmatpush1.msra.mxu0 0.0
        %3061 = vmatprep.mubr.f32.mxu0 0.0
        %3062 = vmatmul.mubr.f32.gmra.mrb[0].mxu0 %v2995
        %v3063 = vpop.f32.mrb[0].mxu0
        %v3064 = vadd.f32 %v2991, %v3063
        %v3065 = vpop.f32.mrb[0].mxu0
        %3066 = vdwg.mxu0
        %3067 = vst.msk [vmem:[%s431] sm:$0xff] %vm2993, %v3064
        %s3068 = sand.u32 %s313, 1
        %s3069 = scalar_lea.sflag [#allocation5], %s3068
        %s3070 = sand.u32 %s313, 1
        %s3071 = smul.addr %s3070, 8
        %s3072 = scalar_lea.vmem [#allocation4], %s3071
        // Predicated region
        $region73: #{rnn_forward.1} parent=71 // pred_check
          %p3073 = pneg %p323
        $region74: #{rnn_forward.1} parent=71 // pred_check_branch
          %3075 = sbr.rel (%p3073) target = $region76
        $region75: #{rnn_forward.1} parent=71 // pred_region
          %s3077 = ssub.s32 128, 128
          %3078 = vsyncadd %s3069, %s3077
          %s3079 = smul.addr %s27, 128
          %s3080 = scalar_lea.hbm %s13, %s3079
          %s3082 = sshll.u32 %s3072, 4
          %s3083 = int_to_ptr.vmem [resolvable:$true] %s3082
          %3085 = dma.vmem_to_hbm [thread:$0]  %s3083, 128, %s3080, %s3069
        $region76: #{rnn_forward.1} parent=71 // pred_fallthru
          _
      $region72: #{rnn_forward.1} parent=5 // pred_fallthru
        _
      %p3086 = scmp.le.s32.totalorder 2, %s22
      // Predicated region
      $region77: #{rnn_forward.1} parent=5 // pred_check
        %p3087 = pneg %p3086
      $region78: #{rnn_forward.1} parent=5 // pred_check_branch
        %3089 = sbr.rel (%p3087) target = $region80
      $region79: #{rnn_forward.1} parent=5 // pred_region
        %s3090 = ssub.s32 %s22, 2
        // Predicated region
        $region81: #{rnn_forward.1} parent=79 // pred_check
          %p3091 = pneg %p329
        $region82: #{rnn_forward.1} parent=79 // pred_check_branch
          %3093 = sbr.rel (%p3091) target = $region84
        $region83: #{rnn_forward.1} parent=79 // pred_region
          %s3094 = sand.u32 %s314, 1
          %s3095 = scalar_lea.sflag [#allocation5], %s3094
          %s3096 = sand.u32 %s314, 1
          %s3097 = smul.addr %s3096, 8
          %s3098 = scalar_lea.vmem [#allocation4], %s3097
          %3099 = dma.done %s3095, 128
        $region84: #{rnn_forward.1} parent=79 // pred_fallthru
          _
      $region80: #{rnn_forward.1} parent=5 // pred_fallthru
        _
    $region6: #{rnn_forward.1} parent=1 // loop_footer
      %s26 = sadd.s32 1, %s22
    $region7: #{rnn_forward.1} parent=1 // loop_footer_branch
      %21 = sbr.rel target = $region3
    $region8: #{rnn_forward.1} parent=1 // loop_exit
      _
    %3100 = vsyncpa [#allocation5], 1
    %s3101 = scalar_lea.sflag [#allocation5], 1
    %3102 = vsyncpa %s3101, 1

</llo_original>
